<compile_context>
chip_gen: v7x
topology: tpu7x:2x2x1
jax: 0.10.0
libtpu: 0.0.40
codegen_flags: <defaults>
</compile_context>

<pallas_src>
import functools

import jax
import jax.numpy as jnp
from jax.experimental import pallas as pl
from jax.experimental.pallas import tpu as pltpu


def _round_up(x, m):
    return (x + m - 1) // m * m


# ------------------------------------------------------------------
# matmul + bias [+ ReLU] kernel (BatchNorm already folded into w/b).
# Used for: conv (im2col, NHWC) layers.
# ------------------------------------------------------------------
def _matmul_bias_kernel(x_ref, w_ref, b_ref, o_ref, *, relu):
    acc = jnp.dot(x_ref[...], w_ref[...], preferred_element_type=jnp.float32)
    acc = acc + b_ref[...]
    if relu:
        acc = jnp.maximum(acc, 0.0)
    o_ref[...] = acc


def fused_linear(x, w, b, relu=False, tm=384):
    """out = act(x @ w + b), tiled over rows; edge block masked by Pallas."""
    M, K = x.shape
    N = w.shape[1]
    tm = min(tm, _round_up(M, 8))
    return pl.pallas_call(
        functools.partial(_matmul_bias_kernel, relu=relu),
        grid=(pl.cdiv(M, tm),),
        in_specs=[
            pl.BlockSpec((tm, K), lambda i: (i, 0)),
            pl.BlockSpec((K, N), lambda i: (0, 0)),
            pl.BlockSpec((1, N), lambda i: (0, 0)),
        ],
        out_specs=pl.BlockSpec((tm, N), lambda i: (i, 0)),
        out_shape=jax.ShapeDtypeStruct((M, N), jnp.float32),
        compiler_params=pltpu.CompilerParams(dimension_semantics=("parallel",)),
    )(x, w, b.reshape(1, N))


# ------------------------------------------------------------------
# Conv2d (3x3, stride 1, same padding) + BatchNorm(eval) + ReLU, NHWC layout.
# BN is folded into the conv weight/bias; im2col concatenates the 9 shifted
# views along channels so no full-tensor transpose is needed anywhere.
# ------------------------------------------------------------------
def conv_bn_relu_nhwc(x_nhwc, w, b, gamma, beta, mean, var, eps=1e-3):
    N, H, W, _ = x_nhwc.shape
    Cout, Cin, kh, kw = w.shape

    # Fold eval-mode BatchNorm into the conv weights/bias.
    scale = gamma * jax.lax.rsqrt(var + eps)               # (Cout,)
    # row index = (i*kw + j)*Cin + c  maps to  w[cout, c, i, j]
    w_mat = w.transpose(2, 3, 1, 0).reshape(kh * kw * Cin, Cout) * scale
    b_f = (b - mean) * scale + beta

    xp = jnp.pad(x_nhwc, ((0, 0), (kh // 2, kh // 2), (kw // 2, kw // 2), (0, 0)))
    taps = [xp[:, i:i + H, j:j + W, :] for i in range(kh) for j in range(kw)]
    patches = jnp.concatenate(taps, axis=-1).reshape(N * H * W, kh * kw * Cin)

    out = fused_linear(patches, w_mat, b_f, relu=True)
    return out.reshape(N, H, W, Cout)


# ------------------------------------------------------------------
# fc1 + ReLU + GRU1 input projection, fused in one kernel:
#   out = relu(x @ W_fc1 + b_fc1) @ W_ih1 + b_ih1        (B*T, 3*H1)
# ------------------------------------------------------------------
def _fc1_proj_kernel(x_ref, w1_ref, b1_ref, wih_ref, bih_ref, o_ref):
    h = jnp.dot(x_ref[...], w1_ref[...], preferred_element_type=jnp.float32)
    h = jnp.maximum(h + b1_ref[...], 0.0)
    o_ref[...] = (jnp.dot(h, wih_ref[...], preferred_element_type=jnp.float32)
                  + bih_ref[...])


def fc1_gru_proj(x, w1, b1, wih, bih, tm=384):
    M, K = x.shape
    F = w1.shape[1]
    G = wih.shape[1]
    tm = min(tm, _round_up(M, 8))
    return pl.pallas_call(
        _fc1_proj_kernel,
        grid=(pl.cdiv(M, tm),),
        in_specs=[
            pl.BlockSpec((tm, K), lambda i: (i, 0)),
            pl.BlockSpec((K, F), lambda i: (0, 0)),
            pl.BlockSpec((1, F), lambda i: (0, 0)),
            pl.BlockSpec((F, G), lambda i: (0, 0)),
            pl.BlockSpec((1, G), lambda i: (0, 0)),
        ],
        out_specs=pl.BlockSpec((tm, G), lambda i: (i, 0)),
        out_shape=jax.ShapeDtypeStruct((M, G), jnp.float32),
        compiler_params=pltpu.CompilerParams(dimension_semantics=("parallel",)),
    )(x, w1, b1.reshape(1, F), wih, bih.reshape(1, G))


# ------------------------------------------------------------------
# Fused GRU1 -> GRU2 -> fc2 -> softmax kernel.
# Grid iterates over time; both hidden states are carried in VMEM scratch.
# GRU1's input projections (x @ W_ih1 + b_ih1) are precomputed outside.
# Only the final (B, n_cls) softmax is written back (at t == T-1).
# Gate order matches PyTorch nn.GRU: [r | z | n] along the 3H axis.
# ------------------------------------------------------------------
def _gru_stack_kernel(xp1_ref, whh1_ref, bhh1_ref,
                      wih2_ref, bih2_ref, whh2_ref, bhh2_ref,
                      w3_ref, b3_ref, out_ref, h1_ref, h2_ref,
                      *, h1_sz, h2_sz):
    t = pl.program_id(0)

    @pl.when(t == 0)
    def _():
        h1_ref[...] = jnp.zeros_like(h1_ref)
        h2_ref[...] = jnp.zeros_like(h2_ref)

    def gru_step(gx, h, whh_ref, bhh_ref, hsz):
        gh = jnp.dot(h, whh_ref[...], preferred_element_type=jnp.float32)
        gh = gh + bhh_ref[...]
        r = jax.nn.sigmoid(gx[:, :hsz] + gh[:, :hsz])
        z = jax.nn.sigmoid(gx[:, hsz:2 * hsz] + gh[:, hsz:2 * hsz])
        n = jnp.tanh(gx[:, 2 * hsz:] + r * gh[:, 2 * hsz:])
        return (1.0 - z) * n + z * h

    # GRU layer 1 (input projection precomputed, already includes b_ih1).
    gx1 = xp1_ref[0]                                  # (B, 3*H1)
    h1_new = gru_step(gx1, h1_ref[...], whh1_ref, bhh1_ref, h1_sz)
    h1_ref[...] = h1_new

    # GRU layer 2 (input is GRU1's output at this step).
    gx2 = (jnp.dot(h1_new, wih2_ref[...], preferred_element_type=jnp.float32)
           + bih2_ref[...])
    h2_new = gru_step(gx2, h2_ref[...], whh2_ref, bhh2_ref, h2_sz)
    h2_ref[...] = h2_new

    # Final FC + softmax(dim=1) on the last hidden state only.
    @pl.when(t == pl.num_programs(0) - 1)
    def _():
        logits = (jnp.dot(h2_new, w3_ref[...], preferred_element_type=jnp.float32)
                  + b3_ref[...])
        m = jnp.max(logits, axis=-1, keepdims=True)
        e = jnp.exp(logits - m)
        out_ref[...] = e / jnp.sum(e, axis=-1, keepdims=True)


def gru_stack_fc_softmax(xproj1, whh1, bhh1, wih2, bih2, whh2, bhh2, fc2_w, fc2_b):
    """xproj1: (T, B, 3*H1) time-major; returns softmax probs (B, n_cls)."""
    T, B, G1 = xproj1.shape
    H1 = whh1.shape[0]
    H2 = whh2.shape[0]
    G2 = 3 * H2
    n_cls = fc2_w.shape[1]
    kern = functools.partial(_gru_stack_kernel, h1_sz=H1, h2_sz=H2)
    return pl.pallas_call(
        kern,
        grid=(T,),
        in_specs=[
            pl.BlockSpec((1, B, G1), lambda t: (t, 0, 0)),
            pl.BlockSpec((H1, G1), lambda t: (0, 0)),
            pl.BlockSpec((1, G1), lambda t: (0, 0)),
            pl.BlockSpec((H1, G2), lambda t: (0, 0)),
            pl.BlockSpec((1, G2), lambda t: (0, 0)),
            pl.BlockSpec((H2, G2), lambda t: (0, 0)),
            pl.BlockSpec((1, G2), lambda t: (0, 0)),
            pl.BlockSpec((H2, n_cls), lambda t: (0, 0)),
            pl.BlockSpec((1, n_cls), lambda t: (0, 0)),
        ],
        out_specs=pl.BlockSpec((B, n_cls), lambda t: (0, 0)),
        out_shape=jax.ShapeDtypeStruct((B, n_cls), jnp.float32),
        scratch_shapes=[pltpu.VMEM((B, H1), jnp.float32),
                        pltpu.VMEM((B, H2), jnp.float32)],
        compiler_params=pltpu.CompilerParams(dimension_semantics=("arbitrary",)),
    )(xproj1, whh1, bhh1.reshape(1, G1), wih2, bih2.reshape(1, G2),
      whh2, bhh2.reshape(1, G2), fc2_w, fc2_b.reshape(1, n_cls))


# ------------------------------------------------------------------
# Parameter initialization (deterministic, synthetic).
# GRU weights stored gate-concatenated: W_ih (F, 3H), W_hh (H, 3H), order r|z|n.
# ------------------------------------------------------------------
def init_params(key, sfreq, mesh, filters, fc1_out, units, n_cls):
    def u(key, shape, scale=0.1):
        return jax.random.uniform(key, shape, jnp.float32, -scale, scale)

    keys = jax.random.split(key, 32)
    ki = iter(range(32))
    params = {}

    convs = []
    cins = (sfreq,) + tuple(filters[:-1])
    for cin, cout in zip(cins, filters):
        convs.append(dict(
            w=u(keys[next(ki)], (cout, cin, 3, 3)),
            b=u(keys[next(ki)], (cout,)),
            gamma=1.0 + u(keys[next(ki)], (cout,)),
            beta=u(keys[next(ki)], (cout,)),
            mean=jnp.zeros((cout,), jnp.float32),
            var=jnp.ones((cout,), jnp.float32),
        ))
    params["convs"] = convs

    in_feats = filters[-1] * mesh * mesh
    params["fc1_w"] = u(keys[next(ki)], (in_feats, fc1_out))  # NCHW-flatten row order
    params["fc1_b"] = u(keys[next(ki)], (fc1_out,))

    grus = []
    gins = (fc1_out, units[0])
    for gin, hsz in zip(gins, units):
        grus.append(dict(
            wih=u(keys[next(ki)], (gin, 3 * hsz)),
            whh=u(keys[next(ki)], (hsz, 3 * hsz)),
            bih=u(keys[next(ki)], (3 * hsz,)),
            bhh=u(keys[next(ki)], (3 * hsz,)),
        ))
    params["gru1"], params["gru2"] = grus

    params["fc2_w"] = u(keys[next(ki)], (units[-1], n_cls))
    params["fc2_b"] = u(keys[next(ki)], (n_cls,))
    return params


# ------------------------------------------------------------------
# Full forward pass (matches CNN_RNN.forward, eval-mode).
# ------------------------------------------------------------------
def cnn_rnn_forward(params, x):
    # x: (B, T, sfreq, mesh, mesh)
    B, T, C, H, W = x.shape
    # NCHW -> NHWC once; all conv kernels keep channels in lanes from here on.
    h = x.reshape(B * T, C, H, W).transpose(0, 2, 3, 1)
    for conv in params["convs"]:
        h = conv_bn_relu_nhwc(h, conv["w"], conv["b"], conv["gamma"],
                              conv["beta"], conv["mean"], conv["var"], eps=1e-3)

    N, Hs, Ws, Cc = h.shape
    flat = h.reshape(N, Hs * Ws * Cc)                 # NHWC flatten (free reshape)
    # PyTorch's Flatten runs on NCHW; permute the fc1 weight rows instead of
    # transposing the activation (weight is tiny, activation path stays clean).
    fc1_w = params["fc1_w"]
    fc1_out = fc1_w.shape[1]
    fc1_w_nhwc = (fc1_w.reshape(Cc, Hs, Ws, fc1_out)
                  .transpose(1, 2, 0, 3).reshape(Hs * Ws * Cc, fc1_out))

    g1, g2 = params["gru1"], params["gru2"]
    # fc1 + ReLU + GRU1 input projection in one batched kernel: (B*T, 3*H1).
    xproj1 = fc1_gru_proj(flat, fc1_w_nhwc, params["fc1_b"], g1["wih"], g1["bih"])
    H1 = g1["whh"].shape[0]
    xproj1 = xproj1.reshape(B, T, 3 * H1).transpose(1, 0, 2)  # time-major

    return gru_stack_fc_softmax(xproj1, g1["whh"], g1["bhh"],
                                g2["wih"], g2["bih"], g2["whh"], g2["bhh"],
                                params["fc2_w"], params["fc2_b"])


if __name__ == "__main__":
    # Small, module-consistent shapes.
    B, T = 2, 4
    sfreq, mesh = 4, 9
    filters = (16, 8, 8)
    fc1_out = 32
    units = (16, 8)
    n_cls = 5

    key = jax.random.PRNGKey(0)
    k_x, k_p = jax.random.split(key)
    x = jax.random.normal(k_x, (B, T, sfreq, mesh, mesh), dtype=jnp.float32)
    params = init_params(k_p, sfreq, mesh, filters, fc1_out, units, n_cls)

    out = jax.jit(cnn_rnn_forward)(params, x)
    out = jax.block_until_ready(out)

    assert out.shape == (B, n_cls), out.shape
    assert bool(jnp.all(jnp.isfinite(out)))
    # rows of a softmax sum to 1
    assert bool(jnp.allclose(jnp.sum(out, axis=1), 1.0, atol=1e-5))
    print("KERNEL_OK")
</pallas_src>

<mosaic_0001>
module attributes {stable_mosaic.version = 11 : i64} {
  func.func @_matmul_bias_kernel(%arg0: i32, %arg1: memref<384x36xf32, #tpu.memory_space<vmem>>, %arg2: memref<36x16xf32, #tpu.memory_space<vmem>>, %arg3: memref<1x16xf32, #tpu.memory_space<vmem>>, %arg4: memref<384x16xf32, #tpu.memory_space<vmem>>) attributes {dimension_semantics = [#tpu.dimension_semantics<parallel>], iteration_bounds = array<i64: 2>, scalar_prefetch = 0 : i64, scratch_operands = 0 : i64, tpu.core_type = #tpu.core_type<tc>, window_params = [{transform_indices = @transform_0, window_bounds = array<i64: 384, 36>}, {pipeline_mode = #tpu.pipeline_mode<synchronous>, transform_indices = @transform_1, window_bounds = array<i64: 36, 16>}, {pipeline_mode = #tpu.pipeline_mode<synchronous>, transform_indices = @transform_2, window_bounds = array<i64: 1, 16>}, {transform_indices = @transform_3, window_bounds = array<i64: 384, 16>}]} {
    %c0 = arith.constant 0 : index
    %c0_0 = arith.constant 0 : index
    %0 = vector.load %arg1[%c0, %c0_0] : memref<384x36xf32, #tpu.memory_space<vmem>>, vector<384x36xf32>
    %c0_1 = arith.constant 0 : index
    %c0_2 = arith.constant 0 : index
    %1 = vector.load %arg2[%c0_1, %c0_2] : memref<36x16xf32, #tpu.memory_space<vmem>>, vector<36x16xf32>
    %cst = arith.constant dense<0.000000e+00> : vector<384x16xf32>
    %2 = tpu.matmul %0, %1, %cst {dimension_numbers = #tpu.dot_dimension_numbers<[1], [0], [0], [1], [0, 0, 1, 1], [], []>} : vector<384x36xf32>, vector<36x16xf32>, vector<384x16xf32> -> vector<384x16xf32>
    %c0_3 = arith.constant 0 : index
    %c0_4 = arith.constant 0 : index
    %3 = vector.load %arg3[%c0_3, %c0_4] : memref<1x16xf32, #tpu.memory_space<vmem>>, vector<1x16xf32>
    %4 = vector.broadcast %3 : vector<1x16xf32> to vector<384x16xf32>
    %5 = arith.addf %2, %4 : vector<384x16xf32>
    %cst_5 = arith.constant 0.000000e+00 : f32
    %6 = vector.broadcast %cst_5 : f32 to vector<384x16xf32>
    %7 = arith.maximumf %5, %6 : vector<384x16xf32>
    %c0_6 = arith.constant 0 : index
    %c0_7 = arith.constant 0 : index
    %8 = vector.load %arg4[%c0_6, %c0_7] : memref<384x16xf32, #tpu.memory_space<vmem>>, vector<384x16xf32>
    tpu.vector_store %arg4[%c0_6, %c0_7], %7 {strides = array<i32>} : memref<384x16xf32, #tpu.memory_space<vmem>>, vector<384x16xf32>,
    return
  }
  func.func @transform_0(%arg0: i32) -> (i32, i32) {
    %c0_i32 = arith.constant 0 : i32
    %c0_i32_0 = arith.constant 0 : i32
    return %arg0, %c0_i32 : i32, i32
  }
  func.func @transform_1(%arg0: i32) -> (i32, i32) {
    %c0_i32 = arith.constant 0 : i32
    %c0_i32_0 = arith.constant 0 : i32
    %c0_i32_1 = arith.constant 0 : i32
    return %c0_i32, %c0_i32_0 : i32, i32
  }
  func.func @transform_2(%arg0: i32) -> (i32, i32) {
    %c0_i32 = arith.constant 0 : i32
    %c0_i32_0 = arith.constant 0 : i32
    %c0_i32_1 = arith.constant 0 : i32
    return %c0_i32, %c0_i32_0 : i32, i32
  }
  func.func @transform_3(%arg0: i32) -> (i32, i32) {
    %c0_i32 = arith.constant 0 : i32
    %c0_i32_0 = arith.constant 0 : i32
    return %arg0, %c0_i32 : i32, i32
  }
}

module attributes {stable_mosaic.version = 11 : i64} {
  func.func @_matmul_bias_kernel(%arg0: i32, %arg1: memref<384x144xf32, #tpu.memory_space<vmem>>, %arg2: memref<144x8xf32, #tpu.memory_space<vmem>>, %arg3: memref<1x8xf32, #tpu.memory_space<vmem>>, %arg4: memref<384x8xf32, #tpu.memory_space<vmem>>) attributes {dimension_semantics = [#tpu.dimension_semantics<parallel>], iteration_bounds = array<i64: 2>, scalar_prefetch = 0 : i64, scratch_operands = 0 : i64, tpu.core_type = #tpu.core_type<tc>, window_params = [{transform_indices = @transform_0, window_bounds = array<i64: 384, 144>}, {pipeline_mode = #tpu.pipeline_mode<synchronous>, transform_indices = @transform_1, window_bounds = array<i64: 144, 8>}, {pipeline_mode = #tpu.pipeline_mode<synchronous>, transform_indices = @transform_2, window_bounds = array<i64: 1, 8>}, {transform_indices = @transform_3, window_bounds = array<i64: 384, 8>}]} {
    %c0 = arith.constant 0 : index
    %c0_0 = arith.constant 0 : index
    %0 = vector.load %arg1[%c0, %c0_0] : memref<384x144xf32, #tpu.memory_space<vmem>>, vector<384x144xf32>
    %c0_1 = arith.constant 0 : index
    %c0_2 = arith.constant 0 : index
    %1 = vector.load %arg2[%c0_1, %c0_2] : memref<144x8xf32, #tpu.memory_space<vmem>>, vector<144x8xf32>
    %cst = arith.constant dense<0.000000e+00> : vector<384x8xf32>
    %2 = tpu.matmul %0, %1, %cst {dimension_numbers = #tpu.dot_dimension_numbers<[1], [0], [0], [1], [0, 0, 1, 1], [], []>} : vector<384x144xf32>, vector<144x8xf32>, vector<384x8xf32> -> vector<384x8xf32>
    %c0_3 = arith.constant 0 : index
    %c0_4 = arith.constant 0 : index
    %3 = vector.load %arg3[%c0_3, %c0_4] : memref<1x8xf32, #tpu.memory_space<vmem>>, vector<1x8xf32>
    %4 = vector.broadcast %3 : vector<1x8xf32> to vector<384x8xf32>
    %5 = arith.addf %2, %4 : vector<384x8xf32>
    %cst_5 = arith.constant 0.000000e+00 : f32
    %6 = vector.broadcast %cst_5 : f32 to vector<384x8xf32>
    %7 = arith.maximumf %5, %6 : vector<384x8xf32>
    %c0_6 = arith.constant 0 : index
    %c0_7 = arith.constant 0 : index
    %8 = vector.load %arg4[%c0_6, %c0_7] : memref<384x8xf32, #tpu.memory_space<vmem>>, vector<384x8xf32>
    tpu.vector_store %arg4[%c0_6, %c0_7], %7 {strides = array<i32>} : memref<384x8xf32, #tpu.memory_space<vmem>>, vector<384x8xf32>,
    return
  }
  func.func @transform_0(%arg0: i32) -> (i32, i32) {
    %c0_i32 = arith.constant 0 : i32
    %c0_i32_0 = arith.constant 0 : i32
    return %arg0, %c0_i32 : i32, i32
  }
  func.func @transform_1(%arg0: i32) -> (i32, i32) {
    %c0_i32 = arith.constant 0 : i32
    %c0_i32_0 = arith.constant 0 : i32
    %c0_i32_1 = arith.constant 0 : i32
    return %c0_i32, %c0_i32_0 : i32, i32
  }
  func.func @transform_2(%arg0: i32) -> (i32, i32) {
    %c0_i32 = arith.constant 0 : i32
    %c0_i32_0 = arith.constant 0 : i32
    %c0_i32_1 = arith.constant 0 : i32
    return %c0_i32, %c0_i32_0 : i32, i32
  }
  func.func @transform_3(%arg0: i32) -> (i32, i32) {
    %c0_i32 = arith.constant 0 : i32
    %c0_i32_0 = arith.constant 0 : i32
    return %arg0, %c0_i32 : i32, i32
  }
}

module attributes {stable_mosaic.version = 11 : i64} {
  func.func @_matmul_bias_kernel(%arg0: i32, %arg1: memref<384x72xf32, #tpu.memory_space<vmem>>, %arg2: memref<72x8xf32, #tpu.memory_space<vmem>>, %arg3: memref<1x8xf32, #tpu.memory_space<vmem>>, %arg4: memref<384x8xf32, #tpu.memory_space<vmem>>) attributes {dimension_semantics = [#tpu.dimension_semantics<parallel>], iteration_bounds = array<i64: 2>, scalar_prefetch = 0 : i64, scratch_operands = 0 : i64, tpu.core_type = #tpu.core_type<tc>, window_params = [{transform_indices = @transform_0, window_bounds = array<i64: 384, 72>}, {pipeline_mode = #tpu.pipeline_mode<synchronous>, transform_indices = @transform_1, window_bounds = array<i64: 72, 8>}, {pipeline_mode = #tpu.pipeline_mode<synchronous>, transform_indices = @transform_2, window_bounds = array<i64: 1, 8>}, {transform_indices = @transform_3, window_bounds = array<i64: 384, 8>}]} {
    %c0 = arith.constant 0 : index
    %c0_0 = arith.constant 0 : index
    %0 = vector.load %arg1[%c0, %c0_0] : memref<384x72xf32, #tpu.memory_space<vmem>>, vector<384x72xf32>
    %c0_1 = arith.constant 0 : index
    %c0_2 = arith.constant 0 : index
    %1 = vector.load %arg2[%c0_1, %c0_2] : memref<72x8xf32, #tpu.memory_space<vmem>>, vector<72x8xf32>
    %cst = arith.constant dense<0.000000e+00> : vector<384x8xf32>
    %2 = tpu.matmul %0, %1, %cst {dimension_numbers = #tpu.dot_dimension_numbers<[1], [0], [0], [1], [0, 0, 1, 1], [], []>} : vector<384x72xf32>, vector<72x8xf32>, vector<384x8xf32> -> vector<384x8xf32>
    %c0_3 = arith.constant 0 : index
    %c0_4 = arith.constant 0 : index
    %3 = vector.load %arg3[%c0_3, %c0_4] : memref<1x8xf32, #tpu.memory_space<vmem>>, vector<1x8xf32>
    %4 = vector.broadcast %3 : vector<1x8xf32> to vector<384x8xf32>
    %5 = arith.addf %2, %4 : vector<384x8xf32>
    %cst_5 = arith.constant 0.000000e+00 : f32
    %6 = vector.broadcast %cst_5 : f32 to vector<384x8xf32>
    %7 = arith.maximumf %5, %6 : vector<384x8xf32>
    %c0_6 = arith.constant 0 : index
    %c0_7 = arith.constant 0 : index
    %8 = vector.load %arg4[%c0_6, %c0_7] : memref<384x8xf32, #tpu.memory_space<vmem>>, vector<384x8xf32>
    tpu.vector_store %arg4[%c0_6, %c0_7], %7 {strides = array<i32>} : memref<384x8xf32, #tpu.memory_space<vmem>>, vector<384x8xf32>,
    return
  }
  func.func @transform_0(%arg0: i32) -> (i32, i32) {
    %c0_i32 = arith.constant 0 : i32
    %c0_i32_0 = arith.constant 0 : i32
    return %arg0, %c0_i32 : i32, i32
  }
  func.func @transform_1(%arg0: i32) -> (i32, i32) {
    %c0_i32 = arith.constant 0 : i32
    %c0_i32_0 = arith.constant 0 : i32
    %c0_i32_1 = arith.constant 0 : i32
    return %c0_i32, %c0_i32_0 : i32, i32
  }
  func.func @transform_2(%arg0: i32) -> (i32, i32) {
    %c0_i32 = arith.constant 0 : i32
    %c0_i32_0 = arith.constant 0 : i32
    %c0_i32_1 = arith.constant 0 : i32
    return %c0_i32, %c0_i32_0 : i32, i32
  }
  func.func @transform_3(%arg0: i32) -> (i32, i32) {
    %c0_i32 = arith.constant 0 : i32
    %c0_i32_0 = arith.constant 0 : i32
    return %arg0, %c0_i32 : i32, i32
  }
}

module attributes {stable_mosaic.version = 11 : i64} {
  func.func @_gru_stack_kernel(%arg0: i32, %arg1: memref<1x2x48xf32, #tpu.memory_space<vmem>>, %arg2: memref<16x48xf32, #tpu.memory_space<vmem>>, %arg3: memref<1x48xf32, #tpu.memory_space<vmem>>, %arg4: memref<16x24xf32, #tpu.memory_space<vmem>>, %arg5: memref<1x24xf32, #tpu.memory_space<vmem>>, %arg6: memref<8x24xf32, #tpu.memory_space<vmem>>, %arg7: memref<1x24xf32, #tpu.memory_space<vmem>>, %arg8: memref<8x5xf32, #tpu.memory_space<vmem>>, %arg9: memref<1x5xf32, #tpu.memory_space<vmem>>, %arg10: memref<2x5xf32, #tpu.memory_space<vmem>>, %arg11: memref<2x16xf32, #tpu.memory_space<vmem>>, %arg12: memref<2x8xf32, #tpu.memory_space<vmem>>) attributes {dimension_semantics = [#tpu.dimension_semantics<arbitrary>], iteration_bounds = array<i64: 4>, scalar_prefetch = 0 : i64, scratch_operands = 2 : i64, tpu.core_type = #tpu.core_type<tc>, window_params = [{transform_indices = @transform_0, window_bounds = array<i64: 1, 2, 48>}, {pipeline_mode = #tpu.pipeline_mode<synchronous>, transform_indices = @transform_1, window_bounds = array<i64: 16, 48>}, {pipeline_mode = #tpu.pipeline_mode<synchronous>, transform_indices = @transform_2, window_bounds = array<i64: 1, 48>}, {pipeline_mode = #tpu.pipeline_mode<synchronous>, transform_indices = @transform_3, window_bounds = array<i64: 16, 24>}, {pipeline_mode = #tpu.pipeline_mode<synchronous>, transform_indices = @transform_4, window_bounds = array<i64: 1, 24>}, {pipeline_mode = #tpu.pipeline_mode<synchronous>, transform_indices = @transform_5, window_bounds = array<i64: 8, 24>}, {pipeline_mode = #tpu.pipeline_mode<synchronous>, transform_indices = @transform_6, window_bounds = array<i64: 1, 24>}, {pipeline_mode = #tpu.pipeline_mode<synchronous>, transform_indices = @transform_7, window_bounds = array<i64: 8, 5>}, {pipeline_mode = #tpu.pipeline_mode<synchronous>, transform_indices = @transform_8, window_bounds = array<i64: 1, 5>}, {pipeline_mode = #tpu.pipeline_mode<synchronous>, transform_indices = @transform_9, window_bounds = array<i64: 2, 5>}]} {
    %c0_i32 = arith.constant 0 : i32
    %0 = arith.cmpi eq, %arg0, %c0_i32 : i32
    %1 = arith.extui %0 : i1 to i32
    %c0_i32_0 = arith.constant 0 : i32
    %2 = arith.cmpi ne, %1, %c0_i32_0 : i32
    scf.if %2 {
      %cst_32 = arith.constant 0.000000e+00 : f32
      %79 = vector.broadcast %cst_32 : f32 to vector<2x16xf32>
      %c0_33 = arith.constant 0 : index
      %c0_34 = arith.constant 0 : index
      %80 = vector.load %arg11[%c0_33, %c0_34] : memref<2x16xf32, #tpu.memory_space<vmem>>, vector<2x16xf32>
      tpu.vector_store %arg11[%c0_33, %c0_34], %79 {strides = array<i32>} : memref<2x16xf32, #tpu.memory_space<vmem>>, vector<2x16xf32>,
      %cst_35 = arith.constant 0.000000e+00 : f32
      %81 = vector.broadcast %cst_35 : f32 to vector<2x8xf32>
      %c0_36 = arith.constant 0 : index
      %c0_37 = arith.constant 0 : index
      %82 = vector.load %arg12[%c0_36, %c0_37] : memref<2x8xf32, #tpu.memory_space<vmem>>, vector<2x8xf32>
      tpu.vector_store %arg12[%c0_36, %c0_37], %81 {strides = array<i32>} : memref<2x8xf32, #tpu.memory_space<vmem>>, vector<2x8xf32>,
    } else {
    }
    %c0 = arith.constant 0 : index
    %c0_1 = arith.constant 0 : index
    %c0_2 = arith.constant 0 : index
    %3 = vector.load %arg1[%c0, %c0_1, %c0_2] : memref<1x2x48xf32, #tpu.memory_space<vmem>>, vector<1x2x48xf32>
    %4 = vector.shape_cast %3 : vector<1x2x48xf32> to vector<2x48xf32>
    %c0_3 = arith.constant 0 : index
    %c0_4 = arith.constant 0 : index
    %5 = vector.load %arg11[%c0_3, %c0_4] : memref<2x16xf32, #tpu.memory_space<vmem>>, vector<2x16xf32>
    %c0_5 = arith.constant 0 : index
    %c0_6 = arith.constant 0 : index
    %6 = vector.load %arg2[%c0_5, %c0_6] : memref<16x48xf32, #tpu.memory_space<vmem>>, vector<16x48xf32>
    %cst = arith.constant dense<0.000000e+00> : vector<2x48xf32>
    %7 = tpu.matmul %5, %6, %cst {dimension_numbers = #tpu.dot_dimension_numbers<[1], [0], [0], [1], [0, 0, 1, 1], [], []>} : vector<2x16xf32>, vector<16x48xf32>, vector<2x48xf32> -> vector<2x48xf32>
    %c0_7 = arith.constant 0 : index
    %c0_8 = arith.constant 0 : index
    %8 = vector.load %arg3[%c0_7, %c0_8] : memref<1x48xf32, #tpu.memory_space<vmem>>, vector<1x48xf32>
    %9 = vector.broadcast %8 : vector<1x48xf32> to vector<2x48xf32>
    %10 = arith.addf %7, %9 : vector<2x48xf32>
    %11 = vector.extract_strided_slice %4 {offsets = [0, 0], sizes = [2, 16], strides = [1, 1]} : vector<2x48xf32> to vector<2x16xf32>
    %12 = vector.extract_strided_slice %10 {offsets = [0, 0], sizes = [2, 16], strides = [1, 1]} : vector<2x48xf32> to vector<2x16xf32>
    %13 = arith.addf %11, %12 : vector<2x16xf32>
    %14 = arith.negf %13 : vector<2x16xf32>
    %15 = math.exp %14 : vector<2x16xf32>
    %cst_9 = arith.constant 1.000000e+00 : f32
    %16 = vector.broadcast %cst_9 : f32 to vector<2x16xf32>
    %17 = arith.addf %16, %15 : vector<2x16xf32>
    %18 = arith.divf %16, %17 : vector<2x16xf32>
    %19 = vector.extract_strided_slice %4 {offsets = [0, 16], sizes = [2, 16], strides = [1, 1]} : vector<2x48xf32> to vector<2x16xf32>
    %20 = vector.extract_strided_slice %10 {offsets = [0, 16], sizes = [2, 16], strides = [1, 1]} : vector<2x48xf32> to vector<2x16xf32>
    %21 = arith.addf %19, %20 : vector<2x16xf32>
    %22 = arith.negf %21 : vector<2x16xf32>
    %23 = math.exp %22 : vector<2x16xf32>
    %cst_10 = arith.constant 1.000000e+00 : f32
    %24 = vector.broadcast %cst_10 : f32 to vector<2x16xf32>
    %25 = arith.addf %24, %23 : vector<2x16xf32>
    %26 = arith.divf %24, %25 : vector<2x16xf32>
    %27 = vector.extract_strided_slice %4 {offsets = [0, 32], sizes = [2, 16], strides = [1, 1]} : vector<2x48xf32> to vector<2x16xf32>
    %28 = vector.extract_strided_slice %10 {offsets = [0, 32], sizes = [2, 16], strides = [1, 1]} : vector<2x48xf32> to vector<2x16xf32>
    %29 = arith.mulf %18, %28 : vector<2x16xf32>
    %30 = arith.addf %27, %29 : vector<2x16xf32>
    %31 = math.tanh %30 : vector<2x16xf32>
    %cst_11 = arith.constant 1.000000e+00 : f32
    %32 = vector.broadcast %cst_11 : f32 to vector<2x16xf32>
    %33 = arith.subf %32, %26 : vector<2x16xf32>
    %34 = arith.mulf %33, %31 : vector<2x16xf32>
    %35 = arith.mulf %26, %5 : vector<2x16xf32>
    %36 = arith.addf %34, %35 : vector<2x16xf32>
    %c0_12 = arith.constant 0 : index
    %c0_13 = arith.constant 0 : index
    %37 = vector.load %arg11[%c0_12, %c0_13] : memref<2x16xf32, #tpu.memory_space<vmem>>, vector<2x16xf32>
    tpu.vector_store %arg11[%c0_12, %c0_13], %36 {strides = array<i32>} : memref<2x16xf32, #tpu.memory_space<vmem>>, vector<2x16xf32>,
    %c0_14 = arith.constant 0 : index
    %c0_15 = arith.constant 0 : index
    %38 = vector.load %arg4[%c0_14, %c0_15] : memref<16x24xf32, #tpu.memory_space<vmem>>, vector<16x24xf32>
    %cst_16 = arith.constant dense<0.000000e+00> : vector<2x24xf32>
    %39 = tpu.matmul %36, %38, %cst_16 {dimension_numbers = #tpu.dot_dimension_numbers<[1], [0], [0], [1], [0, 0, 1, 1], [], []>} : vector<2x16xf32>, vector<16x24xf32>, vector<2x24xf32> -> vector<2x24xf32>
    %c0_17 = arith.constant 0 : index
    %c0_18 = arith.constant 0 : index
    %40 = vector.load %arg5[%c0_17, %c0_18] : memref<1x24xf32, #tpu.memory_space<vmem>>, vector<1x24xf32>
    %41 = vector.broadcast %40 : vector<1x24xf32> to vector<2x24xf32>
    %42 = arith.addf %39, %41 : vector<2x24xf32>
    %c0_19 = arith.constant 0 : index
    %c0_20 = arith.constant 0 : index
    %43 = vector.load %arg12[%c0_19, %c0_20] : memref<2x8xf32, #tpu.memory_space<vmem>>, vector<2x8xf32>
    %c0_21 = arith.constant 0 : index
    %c0_22 = arith.constant 0 : index
    %44 = vector.load %arg6[%c0_21, %c0_22] : memref<8x24xf32, #tpu.memory_space<vmem>>, vector<8x24xf32>
    %cst_23 = arith.constant dense<0.000000e+00> : vector<2x24xf32>
    %45 = tpu.matmul %43, %44, %cst_23 {dimension_numbers = #tpu.dot_dimension_numbers<[1], [0], [0], [1], [0, 0, 1, 1], [], []>} : vector<2x8xf32>, vector<8x24xf32>, vector<2x24xf32> -> vector<2x24xf32>
    %c0_24 = arith.constant 0 : index
    %c0_25 = arith.constant 0 : index
    %46 = vector.load %arg7[%c0_24, %c0_25] : memref<1x24xf32, #tpu.memory_space<vmem>>, vector<1x24xf32>
    %47 = vector.broadcast %46 : vector<1x24xf32> to vector<2x24xf32>
    %48 = arith.addf %45, %47 : vector<2x24xf32>
    %49 = vector.extract_strided_slice %42 {offsets = [0, 0], sizes = [2, 8], strides = [1, 1]} : vector<2x24xf32> to vector<2x8xf32>
    %50 = vector.extract_strided_slice %48 {offsets = [0, 0], sizes = [2, 8], strides = [1, 1]} : vector<2x24xf32> to vector<2x8xf32>
    %51 = arith.addf %49, %50 : vector<2x8xf32>
    %52 = arith.negf %51 : vector<2x8xf32>
    %53 = math.exp %52 : vector<2x8xf32>
    %cst_26 = arith.constant 1.000000e+00 : f32
    %54 = vector.broadcast %cst_26 : f32 to vector<2x8xf32>
    %55 = arith.addf %54, %53 : vector<2x8xf32>
    %56 = arith.divf %54, %55 : vector<2x8xf32>
    %57 = vector.extract_strided_slice %42 {offsets = [0, 8], sizes = [2, 8], strides = [1, 1]} : vector<2x24xf32> to vector<2x8xf32>
    %58 = vector.extract_strided_slice %48 {offsets = [0, 8], sizes = [2, 8], strides = [1, 1]} : vector<2x24xf32> to vector<2x8xf32>
    %59 = arith.addf %57, %58 : vector<2x8xf32>
    %60 = arith.negf %59 : vector<2x8xf32>
    %61 = math.exp %60 : vector<2x8xf32>
    %cst_27 = arith.constant 1.000000e+00 : f32
    %62 = vector.broadcast %cst_27 : f32 to vector<2x8xf32>
    %63 = arith.addf %62, %61 : vector<2x8xf32>
    %64 = arith.divf %62, %63 : vector<2x8xf32>
    %65 = vector.extract_strided_slice %42 {offsets = [0, 16], sizes = [2, 8], strides = [1, 1]} : vector<2x24xf32> to vector<2x8xf32>
    %66 = vector.extract_strided_slice %48 {offsets = [0, 16], sizes = [2, 8], strides = [1, 1]} : vector<2x24xf32> to vector<2x8xf32>
    %67 = arith.mulf %56, %66 : vector<2x8xf32>
    %68 = arith.addf %65, %67 : vector<2x8xf32>
    %69 = math.tanh %68 : vector<2x8xf32>
    %cst_28 = arith.constant 1.000000e+00 : f32
    %70 = vector.broadcast %cst_28 : f32 to vector<2x8xf32>
    %71 = arith.subf %70, %64 : vector<2x8xf32>
    %72 = arith.mulf %71, %69 : vector<2x8xf32>
    %73 = arith.mulf %64, %43 : vector<2x8xf32>
    %74 = arith.addf %72, %73 : vector<2x8xf32>
    %c0_29 = arith.constant 0 : index
    %c0_30 = arith.constant 0 : index
    %75 = vector.load %arg12[%c0_29, %c0_30] : memref<2x8xf32, #tpu.memory_space<vmem>>, vector<2x8xf32>
    tpu.vector_store %arg12[%c0_29, %c0_30], %74 {strides = array<i32>} : memref<2x8xf32, #tpu.memory_space<vmem>>, vector<2x8xf32>,
    %c3_i32 = arith.constant 3 : i32
    %76 = arith.cmpi eq, %arg0, %c3_i32 : i32
    %77 = arith.extui %76 : i1 to i32
    %c0_i32_31 = arith.constant 0 : i32
    %78 = arith.cmpi ne, %77, %c0_i32_31 : i32
    scf.if %78 {
      %c0_32 = arith.constant 0 : index
      %c0_33 = arith.constant 0 : index
      %79 = vector.load %arg8[%c0_32, %c0_33] : memref<8x5xf32, #tpu.memory_space<vmem>>, vector<8x5xf32>
      %cst_34 = arith.constant dense<0.000000e+00> : vector<2x5xf32>
      %80 = tpu.matmul %74, %79, %cst_34 {dimension_numbers = #tpu.dot_dimension_numbers<[1], [0], [0], [1], [0, 0, 1, 1], [], []>} : vector<2x8xf32>, vector<8x5xf32>, vector<2x5xf32> -> vector<2x5xf32>
      %c0_35 = arith.constant 0 : index
      %c0_36 = arith.constant 0 : index
      %81 = vector.load %arg9[%c0_35, %c0_36] : memref<1x5xf32, #tpu.memory_space<vmem>>, vector<1x5xf32>
      %82 = vector.broadcast %81 : vector<1x5xf32> to vector<2x5xf32>
      %83 = arith.addf %80, %82 : vector<2x5xf32>
      %cst_37 = arith.constant dense<0xFF800000> : vector<2xf32>
      %84 = vector.multi_reduction <maximumf>, %83, %cst_37 [1] : vector<2x5xf32> to vector<2xf32>
      %85 = vector.shape_cast %84 : vector<2xf32> to vector<2x1xf32>
      %86 = vector.broadcast %85 : vector<2x1xf32> to vector<2x5xf32>
      %87 = arith.subf %83, %86 : vector<2x5xf32>
      %88 = math.exp %87 : vector<2x5xf32>
      %cst_38 = arith.constant dense<0.000000e+00> : vector<2xf32>
      %89 = vector.multi_reduction <add>, %88, %cst_38 [1] : vector<2x5xf32> to vector<2xf32>
      %90 = vector.shape_cast %89 : vector<2xf32> to vector<2x1xf32>
      %91 = vector.broadcast %90 : vector<2x1xf32> to vector<2x5xf32>
      %92 = arith.divf %88, %91 : vector<2x5xf32>
      %c0_39 = arith.constant 0 : index
      %c0_40 = arith.constant 0 : index
      %93 = vector.load %arg10[%c0_39, %c0_40] : memref<2x5xf32, #tpu.memory_space<vmem>>, vector<2x5xf32>
      tpu.vector_store %arg10[%c0_39, %c0_40], %92 {strides = array<i32>} : memref<2x5xf32, #tpu.memory_space<vmem>>, vector<2x5xf32>,
    } else {
    }
    return
  }
  func.func @transform_0(%arg0: i32) -> (i32, i32, i32) {
    %c0_i32 = arith.constant 0 : i32
    %c0_i32_0 = arith.constant 0 : i32
    %c0_i32_1 = arith.constant 0 : i32
    return %arg0, %c0_i32, %c0_i32_0 : i32, i32, i32
  }
  func.func @transform_1(%arg0: i32) -> (i32, i32) {
    %c0_i32 = arith.constant 0 : i32
    %c0_i32_0 = arith.constant 0 : i32
    %c0_i32_1 = arith.constant 0 : i32
    return %c0_i32, %c0_i32_0 : i32, i32
  }
  func.func @transform_2(%arg0: i32) -> (i32, i32) {
    %c0_i32 = arith.constant 0 : i32
    %c0_i32_0 = arith.constant 0 : i32
    %c0_i32_1 = arith.constant 0 : i32
    return %c0_i32, %c0_i32_0 : i32, i32
  }
  func.func @transform_3(%arg0: i32) -> (i32, i32) {
    %c0_i32 = arith.constant 0 : i32
    %c0_i32_0 = arith.constant 0 : i32
    %c0_i32_1 = arith.constant 0 : i32
    return %c0_i32, %c0_i32_0 : i32, i32
  }
  func.func @transform_4(%arg0: i32) -> (i32, i32) {
    %c0_i32 = arith.constant 0 : i32
    %c0_i32_0 = arith.constant 0 : i32
    %c0_i32_1 = arith.constant 0 : i32
    return %c0_i32, %c0_i32_0 : i32, i32
  }
  func.func @transform_5(%arg0: i32) -> (i32, i32) {
    %c0_i32 = arith.constant 0 : i32
    %c0_i32_0 = arith.constant 0 : i32
    %c0_i32_1 = arith.constant 0 : i32
    return %c0_i32, %c0_i32_0 : i32, i32
  }
  func.func @transform_6(%arg0: i32) -> (i32, i32) {
    %c0_i32 = arith.constant 0 : i32
    %c0_i32_0 = arith.constant 0 : i32
    %c0_i32_1 = arith.constant 0 : i32
    return %c0_i32, %c0_i32_0 : i32, i32
  }
  func.func @transform_7(%arg0: i32) -> (i32, i32) {
    %c0_i32 = arith.constant 0 : i32
    %c0_i32_0 = arith.constant 0 : i32
    %c0_i32_1 = arith.constant 0 : i32
    return %c0_i32, %c0_i32_0 : i32, i32
  }
  func.func @transform_8(%arg0: i32) -> (i32, i32) {
    %c0_i32 = arith.constant 0 : i32
    %c0_i32_0 = arith.constant 0 : i32
    %c0_i32_1 = arith.constant 0 : i32
    return %c0_i32, %c0_i32_0 : i32, i32
  }
  func.func @transform_9(%arg0: i32) -> (i32, i32) {
    %c0_i32 = arith.constant 0 : i32
    %c0_i32_0 = arith.constant 0 : i32
    %c0_i32_1 = arith.constant 0 : i32
    return %c0_i32, %c0_i32_0 : i32, i32
  }
}

module attributes {stable_mosaic.version = 11 : i64} {
  func.func @_fc1_proj_kernel(%arg0: i32, %arg1: memref<8x648xf32, #tpu.memory_space<vmem>>, %arg2: memref<648x32xf32, #tpu.memory_space<vmem>>, %arg3: memref<1x32xf32, #tpu.memory_space<vmem>>, %arg4: memref<32x48xf32, #tpu.memory_space<vmem>>, %arg5: memref<1x48xf32, #tpu.memory_space<vmem>>, %arg6: memref<8x48xf32, #tpu.memory_space<vmem>>) attributes {dimension_semantics = [#tpu.dimension_semantics<parallel>], iteration_bounds = array<i64: 1>, scalar_prefetch = 0 : i64, scratch_operands = 0 : i64, tpu.core_type = #tpu.core_type<tc>, window_params = [{transform_indices = @transform_0, window_bounds = array<i64: 8, 648>}, {pipeline_mode = #tpu.pipeline_mode<synchronous>, transform_indices = @transform_1, window_bounds = array<i64: 648, 32>}, {pipeline_mode = #tpu.pipeline_mode<synchronous>, transform_indices = @transform_2, window_bounds = array<i64: 1, 32>}, {pipeline_mode = #tpu.pipeline_mode<synchronous>, transform_indices = @transform_3, window_bounds = array<i64: 32, 48>}, {pipeline_mode = #tpu.pipeline_mode<synchronous>, transform_indices = @transform_4, window_bounds = array<i64: 1, 48>}, {transform_indices = @transform_5, window_bounds = array<i64: 8, 48>}]} {
    %c0 = arith.constant 0 : index
    %c0_0 = arith.constant 0 : index
    %0 = vector.load %arg1[%c0, %c0_0] : memref<8x648xf32, #tpu.memory_space<vmem>>, vector<8x648xf32>
    %c0_1 = arith.constant 0 : index
    %c0_2 = arith.constant 0 : index
    %1 = vector.load %arg2[%c0_1, %c0_2] : memref<648x32xf32, #tpu.memory_space<vmem>>, vector<648x32xf32>
    %cst = arith.constant dense<0.000000e+00> : vector<8x32xf32>
    %2 = tpu.matmul %0, %1, %cst {dimension_numbers = #tpu.dot_dimension_numbers<[1], [0], [0], [1], [0, 0, 1, 1], [], []>} : vector<8x648xf32>, vector<648x32xf32>, vector<8x32xf32> -> vector<8x32xf32>
    %c0_3 = arith.constant 0 : index
    %c0_4 = arith.constant 0 : index
    %3 = vector.load %arg3[%c0_3, %c0_4] : memref<1x32xf32, #tpu.memory_space<vmem>>, vector<1x32xf32>
    %4 = vector.broadcast %3 : vector<1x32xf32> to vector<8x32xf32>
    %5 = arith.addf %2, %4 : vector<8x32xf32>
    %cst_5 = arith.constant 0.000000e+00 : f32
    %6 = vector.broadcast %cst_5 : f32 to vector<8x32xf32>
    %7 = arith.maximumf %5, %6 : vector<8x32xf32>
    %c0_6 = arith.constant 0 : index
    %c0_7 = arith.constant 0 : index
    %8 = vector.load %arg4[%c0_6, %c0_7] : memref<32x48xf32, #tpu.memory_space<vmem>>, vector<32x48xf32>
    %cst_8 = arith.constant dense<0.000000e+00> : vector<8x48xf32>
    %9 = tpu.matmul %7, %8, %cst_8 {dimension_numbers = #tpu.dot_dimension_numbers<[1], [0], [0], [1], [0, 0, 1, 1], [], []>} : vector<8x32xf32>, vector<32x48xf32>, vector<8x48xf32> -> vector<8x48xf32>
    %c0_9 = arith.constant 0 : index
    %c0_10 = arith.constant 0 : index
    %10 = vector.load %arg5[%c0_9, %c0_10] : memref<1x48xf32, #tpu.memory_space<vmem>>, vector<1x48xf32>
    %11 = vector.broadcast %10 : vector<1x48xf32> to vector<8x48xf32>
    %12 = arith.addf %9, %11 : vector<8x48xf32>
    %c0_11 = arith.constant 0 : index
    %c0_12 = arith.constant 0 : index
    %13 = vector.load %arg6[%c0_11, %c0_12] : memref<8x48xf32, #tpu.memory_space<vmem>>, vector<8x48xf32>
    tpu.vector_store %arg6[%c0_11, %c0_12], %12 {strides = array<i32>} : memref<8x48xf32, #tpu.memory_space<vmem>>, vector<8x48xf32>,
    return
  }
  func.func @transform_0(%arg0: i32) -> (i32, i32) {
    %c0_i32 = arith.constant 0 : i32
    %c0_i32_0 = arith.constant 0 : i32
    return %arg0, %c0_i32 : i32, i32
  }
  func.func @transform_1(%arg0: i32) -> (i32, i32) {
    %c0_i32 = arith.constant 0 : i32
    %c0_i32_0 = arith.constant 0 : i32
    %c0_i32_1 = arith.constant 0 : i32
    return %c0_i32, %c0_i32_0 : i32, i32
  }
  func.func @transform_2(%arg0: i32) -> (i32, i32) {
    %c0_i32 = arith.constant 0 : i32
    %c0_i32_0 = arith.constant 0 : i32
    %c0_i32_1 = arith.constant 0 : i32
    return %c0_i32, %c0_i32_0 : i32, i32
  }
  func.func @transform_3(%arg0: i32) -> (i32, i32) {
    %c0_i32 = arith.constant 0 : i32
    %c0_i32_0 = arith.constant 0 : i32
    %c0_i32_1 = arith.constant 0 : i32
    return %c0_i32, %c0_i32_0 : i32, i32
  }
  func.func @transform_4(%arg0: i32) -> (i32, i32) {
    %c0_i32 = arith.constant 0 : i32
    %c0_i32_0 = arith.constant 0 : i32
    %c0_i32_1 = arith.constant 0 : i32
    return %c0_i32, %c0_i32_0 : i32, i32
  }
  func.func @transform_5(%arg0: i32) -> (i32, i32) {
    %c0_i32 = arith.constant 0 : i32
    %c0_i32_0 = arith.constant 0 : i32
    return %arg0, %c0_i32 : i32, i32
  }
}

</mosaic_0001>

<llo_original>
// kernel: cnn_rnn_forward.5
$region0: #{cnn_rnn_forward.5}
  #allocation0 [shape = 'u32[]', space=smem, size = 0x4, offset = 0x4, fixed_abs, tag = 'smem constant byte address 0x4 - core index']
  #allocation1 [shape = 'u32[144,128]{1,0:T(1,128)}', space=vmem, size = 0x12000, scoped, tag = 'internal scratch']
  %s0 = inlined_call_operand.vmem [shape: f32[648,36], index: 0, kind: input, shape index: {}]
  %s1 = inlined_call_operand.vmem [shape: f32[36,16], index: 1, kind: input, shape index: {}]
  %s2 = inlined_call_operand.vmem [shape: f32[1,16], index: 2, kind: input, shape index: {}]
  %s3 = inlined_call_operand.vmem [shape: f32[648,16], index: 3, kind: output, shape index: {}]
  %s4 = sld [smem:[#allocation0]]
  $region93: #{cnn_rnn_forward.5} parent=0
    _
  %s6 = ssub.s32 1, %s4
  %s7 = scalar_select 0, %s6, %s4
  $region1: #{cnn_rnn_forward.5} parent=0
    #allocation2 [shape = 'u8[393216]{0}', space=vmem, size = 0x60000, scoped, tag = 'output window, operand 0']
    loop: start=0, step=1, limit=4
    $region2: #{cnn_rnn_forward.5} parent=1 // loop_pre_header
      _
    $region3: #{cnn_rnn_forward.5} parent=1 // loop_header
      %s9 = sphi 0, %s13
      %p10 = scmp.ge.s32.totalorder %s9, 4
      %s19 = sphi 0, %s21
      %s22 = sphi 0, %s19
      %s23 = sphi 0, %s22
      %s39 = sphi 0, %s23
      %s43 = sphi 0, %s43
      %s45 = sphi 0, %s43
      %s46 = sphi 0, %s45
      %s60 = sphi 0, %s46
      %s64 = sphi 0, %s64
      %s66 = sphi 0, %s64
      %s67 = sphi 0, %s66
      %s81 = sphi 0, %s67
      %s87 = sphi 0, %s89
      %s90 = sphi 0, %s87
      %s91 = sphi 0, %s90
      %s107 = sphi 0, %s91
    $region4: #{cnn_rnn_forward.5} parent=1 // loop_header_branch
      %12 = sbr.rel (%p10) target = $region8
    $region5: #{cnn_rnn_forward.5} parent=1 // loop_body
      %s14 = ssub.s32 %s9, 1
      %s15 = ssub.s32 %s9, 2
      %s16 = sadd.s32 %s9, 1
      %s17 = ssub.s32 %s9, %s16
      %p18 = scmp.eq.s32.totalorder %s17, 0
      %s20 = sadd.s32 %s19, 1
      %s21 = scalar_select %p18, %s19, %s20
      %p24 = pneg %p18
      %p25 = scmp.eq.s32.totalorder %s9, 1
      %p26 = por %p24, %p25
      %p27 = scmp.ne.s32.totalorder %s19, %s22
      %p28 = scmp.eq.s32.totalorder %s9, 0
      %p29 = por %p27, %p28
      %p30 = scmp.ne.s32.totalorder %s19, %s22
      %p31 = scmp.eq.s32.totalorder %s14, 1
      %p32 = por %p30, %p31
      %p33 = scmp.ne.s32.totalorder %s22, %s23
      %p34 = scmp.eq.s32.totalorder %s14, 0
      %p35 = por %p33, %p34
      %p36 = scmp.ne.s32.totalorder %s22, %s23
      %p37 = scmp.eq.s32.totalorder %s15, 1
      %p38 = por %p36, %p37
      %p40 = scmp.ne.s32.totalorder %s23, %s39
      %p41 = scmp.eq.s32.totalorder %s15, 0
      %p42 = por %p40, %p41
      %s44 = sadd.s32 %s43, 1
      %p47 = scmp.eq.s32.totalorder %s9, 1
      %p48 = scmp.ne.s32.totalorder %s43, %s45
      %p49 = scmp.eq.s32.totalorder %s9, 0
      %p50 = por %p48, %p49
      %p51 = scmp.ne.s32.totalorder %s43, %s45
      %p52 = scmp.eq.s32.totalorder %s14, 1
      %p53 = por %p51, %p52
      %p54 = scmp.ne.s32.totalorder %s45, %s46
      %p55 = scmp.eq.s32.totalorder %s14, 0
      %p56 = por %p54, %p55
      %p57 = scmp.ne.s32.totalorder %s45, %s46
      %p58 = scmp.eq.s32.totalorder %s15, 1
      %p59 = por %p57, %p58
      %p61 = scmp.ne.s32.totalorder %s46, %s60
      %p62 = scmp.eq.s32.totalorder %s15, 0
      %p63 = por %p61, %p62
      %s65 = sadd.s32 %s64, 1
      %p68 = scmp.eq.s32.totalorder %s9, 1
      %p69 = scmp.ne.s32.totalorder %s64, %s66
      %p70 = scmp.eq.s32.totalorder %s9, 0
      %p71 = por %p69, %p70
      %p72 = scmp.ne.s32.totalorder %s64, %s66
      %p73 = scmp.eq.s32.totalorder %s14, 1
      %p74 = por %p72, %p73
      %p75 = scmp.ne.s32.totalorder %s66, %s67
      %p76 = scmp.eq.s32.totalorder %s14, 0
      %p77 = por %p75, %p76
      %p78 = scmp.ne.s32.totalorder %s66, %s67
      %p79 = scmp.eq.s32.totalorder %s15, 1
      %p80 = por %p78, %p79
      %p82 = scmp.ne.s32.totalorder %s67, %s81
      %p83 = scmp.eq.s32.totalorder %s15, 0
      %p84 = por %p82, %p83
      %s85 = ssub.s32 %s9, %s16
      %p86 = scmp.eq.s32.totalorder %s85, 0
      %s88 = sadd.s32 %s87, 1
      %s89 = scalar_select %p86, %s87, %s88
      %p92 = pneg %p86
      %p93 = scmp.eq.s32.totalorder %s9, 1
      %p94 = por %p92, %p93
      %p95 = scmp.ne.s32.totalorder %s87, %s90
      %p96 = scmp.eq.s32.totalorder %s9, 0
      %p97 = por %p95, %p96
      %p98 = scmp.ne.s32.totalorder %s87, %s90
      %p99 = scmp.eq.s32.totalorder %s14, 1
      %p100 = por %p98, %p99
      %p101 = scmp.ne.s32.totalorder %s90, %s91
      %p102 = scmp.eq.s32.totalorder %s14, 0
      %p103 = por %p101, %p102
      %p104 = scmp.ne.s32.totalorder %s90, %s91
      %p105 = scmp.eq.s32.totalorder %s15, 1
      %p106 = por %p104, %p105
      %p108 = scmp.ne.s32.totalorder %s91, %s107
      %p109 = scmp.eq.s32.totalorder %s15, 0
      %p110 = por %p108, %p109
      %p111 = scmp.le.s32.totalorder 1, %s9
      %p112 = scmp.lt.s32.totalorder %s9, 3
      %p113 = pnand %p111, %p112
      %p114 = pneg %p113
      // Predicated region
      $region9: #{cnn_rnn_forward.5} parent=5 // pred_check
        _
      $region10: #{cnn_rnn_forward.5} parent=5 // pred_check_branch
        %116 = sbr.rel (%p113) target = $region12
      $region11: #{cnn_rnn_forward.5} parent=5 // pred_region
        %s117 = ssub.s32 %s9, 1
        // Predicated region
        $region13: #{cnn_rnn_forward.5} parent=11 // pred_check
          %p118 = pneg %p56
        $region14: #{cnn_rnn_forward.5} parent=11 // pred_check_branch
          %120 = sbr.rel (%p118) target = $region16
        $region15: #{cnn_rnn_forward.5} parent=11 // pred_region
          _
        $region16: #{cnn_rnn_forward.5} parent=11 // pred_fallthru
          _
        // Predicated region
        $region17: #{cnn_rnn_forward.5} parent=11 // pred_check
          %p121 = pneg %p77
        $region18: #{cnn_rnn_forward.5} parent=11 // pred_check_branch
          %123 = sbr.rel (%p121) target = $region20
        $region19: #{cnn_rnn_forward.5} parent=11 // pred_region
          _
        $region20: #{cnn_rnn_forward.5} parent=11 // pred_fallthru
          _
      $region12: #{cnn_rnn_forward.5} parent=5 // pred_fallthru
        _
      %p124 = scmp.lt.s32.totalorder %s9, 2
      // Predicated region
      $region21: #{cnn_rnn_forward.5} parent=5 // pred_check
        %p125 = pneg %p124
      $region22: #{cnn_rnn_forward.5} parent=5 // pred_check_branch
        %127 = sbr.rel (%p125) target = $region24
      $region23: #{cnn_rnn_forward.5} parent=5 // pred_region
        // Predicated region
        $region25: #{cnn_rnn_forward.5} parent=23 // pred_check
          %p128 = pneg %p29
        $region26: #{cnn_rnn_forward.5} parent=23 // pred_check_branch
          %130 = sbr.rel (%p128) target = $region28
        $region27: #{cnn_rnn_forward.5} parent=23 // pred_region
          %s131 = smul.u32 48, %s9
          %s132 = ssub.s32 81, %s131
          %p133 = scmp.lt.s32.totalorder %s132, 48
          %s134 = scalar_select %p133, %s132, 48
          %s135 = smul.u32 128, %s134
          %p136 = scmp.lt.s32.totalorder %s131, 80
          %s137 = scalar_select %p136, %s131, 80
          %s138 = smul.addr %s137, 8
          %s139 = scalar_lea.vmem %s0, %s138
          %s140 = smul.u32 48, %s9
          %s141 = ssub.s32 81, %s140
          %p142 = scmp.lt.s32.totalorder %s141, 48
          %s143 = scalar_select %p142, %s141, 48
          %s144 = smul.u32 128, %s143
        $region28: #{cnn_rnn_forward.5} parent=23 // pred_fallthru
          _
      $region24: #{cnn_rnn_forward.5} parent=5 // pred_fallthru
        _
      %p145 = scmp.le.s32.totalorder 1, %s9
      %p146 = scmp.lt.s32.totalorder %s9, 3
      %p147 = pnand %p145, %p146
      %p148 = pneg %p147
      // Predicated region
      $region29: #{cnn_rnn_forward.5} parent=5 // pred_check
        _
      $region30: #{cnn_rnn_forward.5} parent=5 // pred_check_branch
        %150 = sbr.rel (%p147) target = $region32
      $region31: #{cnn_rnn_forward.5} parent=5 // pred_region
        %s151 = ssub.s32 %s9, 1
        %s152 = smul.u32 48, %s14
        %s153 = ssub.s32 81, %s152
        %p154 = scmp.lt.s32.totalorder %s153, 48
        %s155 = scalar_select %p154, %s153, 48
        %s156 = smul.u32 128, %s155
        %p157 = scmp.lt.s32.totalorder %s152, 80
        %s158 = scalar_select %p157, %s152, 80
        %s159 = smul.addr %s158, 8
        %s160 = scalar_lea.vmem %s0, %s159
        %p161 = pneg %p35
        %p162 = pneg %p32
        %p163 = pneg %p56
        %p164 = pneg %p53
        %p165 = pneg %p77
        %p166 = pneg %p74
        %p167 = pneg %p103
        %p168 = pneg %p100
        %s169 = sand.u32 %s90, 1
        %s170 = sand.u32 %s90, 1
        %s171 = smul.addr %s170, 384
        %s172 = scalar_lea.vmem [#allocation2], %s171
        %s173 = smul.u32 48, %s14
        %s174 = ssub.s32 81, %s173
        %p175 = scmp.lt.s32.totalorder %s174, 48
        %s176 = scalar_select %p175, %s174, 48
        %s177 = smul.u32 128, %s176
        %p178 = scmp.lt.s32.totalorder %s173, 80
        %s179 = scalar_select %p178, %s173, 80
        %s180 = smul.addr %s179, 8
        %s181 = scalar_lea.vmem %s0, %s180
        %s182 = smul.u32 48, %s14
        %s183 = ssub.s32 81, %s182
        %p184 = scmp.lt.s32.totalorder %s183, 48
        %s185 = scalar_select %p184, %s183, 48
        %s186 = smul.u32 128, %s185
        %s187 = smul.u32 48, %s14
        %s188 = ssub.s32 81, %s187
        %p189 = scmp.lt.s32.totalorder %s188, 48
        %s190 = scalar_select %p189, %s188, 48
        %s191 = smul.u32 128, %s190
        %v192 = vld [vmem:[%s181] sm:$0xff]
        %v193 = vld [vmem:[%s181 + $0x8] sm:$0xff]
        %v194 = vld [vmem:[%s181 + $0x10] sm:$0xff]
        %v195 = vld [vmem:[%s181 + $0x18] sm:$0xff]
        %v196 = vld [vmem:[%s181 + $0x20] sm:$0xff]
        %v197 = vld [vmem:[%s181 + $0x28] sm:$0xff]
        %v198 = vld [vmem:[%s181 + $0x30] sm:$0xff]
        %v199 = vld [vmem:[%s181 + $0x38] sm:$0xff]
        %v200 = vld [vmem:[%s181 + $0x40] sm:$0xff]
        %v201 = vld [vmem:[%s181 + $0x48] sm:$0xff]
        %v202 = vld [vmem:[%s181 + $0x50] sm:$0xff]
        %v203 = vld [vmem:[%s181 + $0x58] sm:$0xff]
        %v204 = vld [vmem:[%s181 + $0x60] sm:$0xff]
        %v205 = vld [vmem:[%s181 + $0x68] sm:$0xff]
        %v206 = vld [vmem:[%s181 + $0x70] sm:$0xff]
        %v207 = vld [vmem:[%s181 + $0x78] sm:$0xff]
        %v208 = vld [vmem:[%s181 + $0x80] sm:$0xff]
        %v209 = vld [vmem:[%s181 + $0x88] sm:$0xff]
        %v210 = vld [vmem:[%s181 + $0x90] sm:$0xff]
        %v211 = vld [vmem:[%s181 + $0x98] sm:$0xff]
        %v212 = vld [vmem:[%s181 + $0xa0] sm:$0xff]
        %v213 = vld [vmem:[%s181 + $0xa8] sm:$0xff]
        %v214 = vld [vmem:[%s181 + $0xb0] sm:$0xff]
        %v215 = vld [vmem:[%s181 + $0xb8] sm:$0xff]
        %v216 = vld [vmem:[%s181 + $0xc0] sm:$0xff]
        %v217 = vld [vmem:[%s181 + $0xc8] sm:$0xff]
        %v218 = vld [vmem:[%s181 + $0xd0] sm:$0xff]
        %v219 = vld [vmem:[%s181 + $0xd8] sm:$0xff]
        %v220 = vld [vmem:[%s181 + $0xe0] sm:$0xff]
        %v221 = vld [vmem:[%s181 + $0xe8] sm:$0xff]
        %v222 = vld [vmem:[%s181 + $0xf0] sm:$0xff]
        %v223 = vld [vmem:[%s181 + $0xf8] sm:$0xff]
        %v224 = vld [vmem:[%s181 + $0x100] sm:$0xff]
        %v225 = vld [vmem:[%s181 + $0x108] sm:$0xff]
        %v226 = vld [vmem:[%s181 + $0x110] sm:$0xff]
        %v227 = vld [vmem:[%s181 + $0x118] sm:$0xff]
        %v228 = vld [vmem:[%s181 + $0x120] sm:$0xff]
        %v229 = vld [vmem:[%s181 + $0x128] sm:$0xff]
        %v230 = vld [vmem:[%s181 + $0x130] sm:$0xff]
        %v231 = vld [vmem:[%s181 + $0x138] sm:$0xff]
        %v232 = vld [vmem:[%s181 + $0x140] sm:$0xff]
        %v233 = vld [vmem:[%s181 + $0x148] sm:$0xff]
        %v234 = vld [vmem:[%s181 + $0x150] sm:$0xff]
        %v235 = vld [vmem:[%s181 + $0x158] sm:$0xff]
        %v236 = vld [vmem:[%s181 + $0x160] sm:$0xff]
        %v237 = vld [vmem:[%s181 + $0x168] sm:$0xff]
        %v238 = vld [vmem:[%s181 + $0x170] sm:$0xff]
        %v239 = vld [vmem:[%s181 + $0x178] sm:$0xff]
        %v240 = vld [vmem:[%s1] sm:$0xff]
        %v241 = vld [vmem:[%s1 + $0x8] sm:$0xff]
        %v242 = vld [vmem:[%s1 + $0x10] sm:$0xff]
        %v243 = vld [vmem:[%s1 + $0x18] sm:$0xff]
        %v244 = vld [vmem:[%s1 + $0x20] sm:$0xf]
        %v245 = vld [vmem:[%s2] sm:$0x1]
        %v247 = vlaneseq
        %v248 = vshrl.u32 %v247, 7
        %v249 = vsub.s32 0, %v248
        %v250 = vrot.slane %v245, %v249
        %vm252 = vcmask 293888
        %v254 = vsel %vm252, %v192, 0
        %v257 = vsel %vm252, %v193, 0
        %v260 = vsel %vm252, %v194, 0
        %v263 = vsel %vm252, %v195, 0
        %v266 = vsel %vm252, %v196, 0
        %v269 = vsel %vm252, %v197, 0
        %v272 = vsel %vm252, %v198, 0
        %v275 = vsel %vm252, %v199, 0
        %v278 = vsel %vm252, %v200, 0
        %v281 = vsel %vm252, %v201, 0
        %v284 = vsel %vm252, %v202, 0
        %v287 = vsel %vm252, %v203, 0
        %v290 = vsel %vm252, %v204, 0
        %v293 = vsel %vm252, %v205, 0
        %v296 = vsel %vm252, %v206, 0
        %v299 = vsel %vm252, %v207, 0
        %v302 = vsel %vm252, %v208, 0
        %v305 = vsel %vm252, %v209, 0
        %v308 = vsel %vm252, %v210, 0
        %v311 = vsel %vm252, %v211, 0
        %v314 = vsel %vm252, %v212, 0
        %v317 = vsel %vm252, %v213, 0
        %v320 = vsel %vm252, %v214, 0
        %v323 = vsel %vm252, %v215, 0
        %v326 = vsel %vm252, %v216, 0
        %v329 = vsel %vm252, %v217, 0
        %v332 = vsel %vm252, %v218, 0
        %v335 = vsel %vm252, %v219, 0
        %v338 = vsel %vm252, %v220, 0
        %v341 = vsel %vm252, %v221, 0
        %v344 = vsel %vm252, %v222, 0
        %v347 = vsel %vm252, %v223, 0
        %v350 = vsel %vm252, %v224, 0
        %v353 = vsel %vm252, %v225, 0
        %v356 = vsel %vm252, %v226, 0
        %v359 = vsel %vm252, %v227, 0
        %v362 = vsel %vm252, %v228, 0
        %v365 = vsel %vm252, %v229, 0
        %v368 = vsel %vm252, %v230, 0
        %v371 = vsel %vm252, %v231, 0
        %v374 = vsel %vm252, %v232, 0
        %v377 = vsel %vm252, %v233, 0
        %v380 = vsel %vm252, %v234, 0
        %v383 = vsel %vm252, %v235, 0
        %v386 = vsel %vm252, %v236, 0
        %v389 = vsel %vm252, %v237, 0
        %v392 = vsel %vm252, %v238, 0
        %v395 = vsel %vm252, %v239, 0
        %vm397 = vcmask 1043456
        %v399 = vsel %vm397, %v244, 0
        %401 = vmatprep.subr.mxu0 0.0
        %402 = vmatpush1.msra.mxu0 %v240
        %403 = vmatprep.subr.mxu0 0.0
        %404 = vmatpush1.msra.mxu0 %v241
        %405 = vmatprep.subr.mxu0 0.0
        %406 = vmatpush1.msra.mxu0 %v242
        %407 = vmatprep.subr.mxu0 0.0
        %408 = vmatpush1.msra.mxu0 %v243
        %409 = vmatprep.subr.mxu0 0.0
        %410 = vmatpush1.msra.mxu0 %v399
        %411 = vmatprep.subr.mxu0 0.0
        %412 = vmatpush1.msra.mxu0 0.0
        %413 = vmatprep.subr.mxu0 0.0
        %414 = vmatpush1.msra.mxu0 0.0
        %415 = vmatprep.subr.mxu0 0.0
        %416 = vmatpush1.msra.mxu0 0.0
        %417 = vmatprep.subr.mxu0 0.0
        %418 = vmatpush1.msra.mxu0 0.0
        %419 = vmatprep.subr.mxu0 0.0
        %420 = vmatpush1.msra.mxu0 0.0
        %421 = vmatprep.subr.mxu0 0.0
        %422 = vmatpush1.msra.mxu0 0.0
        %423 = vmatprep.subr.mxu0 0.0
        %424 = vmatpush1.msra.mxu0 0.0
        %425 = vmatprep.subr.mxu0 0.0
        %426 = vmatpush1.msra.mxu0 0.0
        %427 = vmatprep.subr.mxu0 0.0
        %428 = vmatpush1.msra.mxu0 0.0
        %429 = vmatprep.subr.mxu0 0.0
        %430 = vmatpush1.msra.mxu0 0.0
        %431 = vmatprep.subr.mxu0 0.0
        %432 = vmatpush1.msra.mxu0 0.0
        %433 = vmatprep.subr.mxu0 0.0
        %434 = vmatpush1.msra.mxu0 0.0
        %435 = vmatprep.subr.mxu0 0.0
        %436 = vmatpush1.msra.mxu0 0.0
        %437 = vmatprep.subr.mxu0 0.0
        %438 = vmatpush1.msra.mxu0 0.0
        %439 = vmatprep.subr.mxu0 0.0
        %440 = vmatpush1.msra.mxu0 0.0
        %441 = vmatprep.subr.mxu0 0.0
        %442 = vmatpush1.msra.mxu0 0.0
        %443 = vmatprep.subr.mxu0 0.0
        %444 = vmatpush1.msra.mxu0 0.0
        %445 = vmatprep.subr.mxu0 0.0
        %446 = vmatpush1.msra.mxu0 0.0
        %447 = vmatprep.subr.mxu0 0.0
        %448 = vmatpush1.msra.mxu0 0.0
        %449 = vmatprep.subr.mxu0 0.0
        %450 = vmatpush1.msra.mxu0 0.0
        %451 = vmatprep.subr.mxu0 0.0
        %452 = vmatpush1.msra.mxu0 0.0
        %453 = vmatprep.subr.mxu0 0.0
        %454 = vmatpush1.msra.mxu0 0.0
        %455 = vmatprep.subr.mxu0 0.0
        %456 = vmatpush1.msra.mxu0 0.0
        %457 = vmatprep.subr.mxu0 0.0
        %458 = vmatpush1.msra.mxu0 0.0
        %459 = vmatprep.subr.mxu0 0.0
        %460 = vmatpush1.msra.mxu0 0.0
        %461 = vmatprep.subr.mxu0 0.0
        %462 = vmatpush1.msra.mxu0 0.0
        %463 = vmatprep.subr.mxu0 0.0
        %464 = vmatpush1.msra.mxu0 0.0
        %465 = vmatprep.mubr.f32.mxu0 0.0
        %466 = vmatmul.mubr.f32.gmra.mrb[0].mxu0 %v254
        %v467 = vpop.f32.mrb[0].mxu0
        %v468 = vadd.f32 %v250, %v467
        %v469 = vpop.f32.mrb[0].mxu0
        %470 = vmatprep.mubr.f32.mxu0 0.0
        %471 = vmatmul.mubr.f32.gmra.mrb[0].mxu0 %v257
        %v472 = vpop.f32.mrb[0].mxu0
        %v473 = vadd.f32 %v250, %v472
        %v474 = vpop.f32.mrb[0].mxu0
        %475 = vmatprep.mubr.f32.mxu0 0.0
        %476 = vmatmul.mubr.f32.gmra.mrb[0].mxu0 %v260
        %v477 = vpop.f32.mrb[0].mxu0
        %v478 = vadd.f32 %v250, %v477
        %v479 = vpop.f32.mrb[0].mxu0
        %480 = vmatprep.mubr.f32.mxu0 0.0
        %481 = vmatmul.mubr.f32.gmra.mrb[0].mxu0 %v263
        %v482 = vpop.f32.mrb[0].mxu0
        %v483 = vadd.f32 %v250, %v482
        %v484 = vpop.f32.mrb[0].mxu0
        %485 = vmatprep.mubr.f32.mxu0 0.0
        %486 = vmatmul.mubr.f32.gmra.mrb[0].mxu0 %v266
        %v487 = vpop.f32.mrb[0].mxu0
        %v488 = vadd.f32 %v250, %v487
        %v489 = vpop.f32.mrb[0].mxu0
        %490 = vmatprep.mubr.f32.mxu0 0.0
        %491 = vmatmul.mubr.f32.gmra.mrb[0].mxu0 %v269
        %v492 = vpop.f32.mrb[0].mxu0
        %v493 = vadd.f32 %v250, %v492
        %v494 = vpop.f32.mrb[0].mxu0
        %495 = vmatprep.mubr.f32.mxu0 0.0
        %496 = vmatmul.mubr.f32.gmra.mrb[0].mxu0 %v272
        %v497 = vpop.f32.mrb[0].mxu0
        %v498 = vadd.f32 %v250, %v497
        %v499 = vpop.f32.mrb[0].mxu0
        %500 = vmatprep.mubr.f32.mxu0 0.0
        %501 = vmatmul.mubr.f32.gmra.mrb[0].mxu0 %v275
        %v502 = vpop.f32.mrb[0].mxu0
        %v503 = vadd.f32 %v250, %v502
        %v504 = vpop.f32.mrb[0].mxu0
        %505 = vmatprep.mubr.f32.mxu0 0.0
        %506 = vmatmul.mubr.f32.gmra.mrb[0].mxu0 %v278
        %v507 = vpop.f32.mrb[0].mxu0
        %v508 = vadd.f32 %v250, %v507
        %v509 = vpop.f32.mrb[0].mxu0
        %510 = vmatprep.mubr.f32.mxu0 0.0
        %511 = vmatmul.mubr.f32.gmra.mrb[0].mxu0 %v281
        %v512 = vpop.f32.mrb[0].mxu0
        %v513 = vadd.f32 %v250, %v512
        %v514 = vpop.f32.mrb[0].mxu0
        %515 = vmatprep.mubr.f32.mxu0 0.0
        %516 = vmatmul.mubr.f32.gmra.mrb[0].mxu0 %v284
        %v517 = vpop.f32.mrb[0].mxu0
        %v518 = vadd.f32 %v250, %v517
        %v519 = vpop.f32.mrb[0].mxu0
        %520 = vmatprep.mubr.f32.mxu0 0.0
        %521 = vmatmul.mubr.f32.gmra.mrb[0].mxu0 %v287
        %v522 = vpop.f32.mrb[0].mxu0
        %v523 = vadd.f32 %v250, %v522
        %v524 = vpop.f32.mrb[0].mxu0
        %525 = vmatprep.mubr.f32.mxu0 0.0
        %526 = vmatmul.mubr.f32.gmra.mrb[0].mxu0 %v290
        %v527 = vpop.f32.mrb[0].mxu0
        %v528 = vadd.f32 %v250, %v527
        %v529 = vpop.f32.mrb[0].mxu0
        %530 = vmatprep.mubr.f32.mxu0 0.0
        %531 = vmatmul.mubr.f32.gmra.mrb[0].mxu0 %v293
        %v532 = vpop.f32.mrb[0].mxu0
        %v533 = vadd.f32 %v250, %v532
        %v534 = vpop.f32.mrb[0].mxu0
        %535 = vmatprep.mubr.f32.mxu0 0.0
        %536 = vmatmul.mubr.f32.gmra.mrb[0].mxu0 %v296
        %v537 = vpop.f32.mrb[0].mxu0
        %v538 = vadd.f32 %v250, %v537
        %v539 = vpop.f32.mrb[0].mxu0
        %540 = vmatprep.mubr.f32.mxu0 0.0
        %541 = vmatmul.mubr.f32.gmra.mrb[0].mxu0 %v299
        %v542 = vpop.f32.mrb[0].mxu0
        %v543 = vadd.f32 %v250, %v542
        %v544 = vpop.f32.mrb[0].mxu0
        %545 = vmatprep.mubr.f32.mxu0 0.0
        %546 = vmatmul.mubr.f32.gmra.mrb[0].mxu0 %v302
        %v547 = vpop.f32.mrb[0].mxu0
        %v548 = vadd.f32 %v250, %v547
        %v549 = vpop.f32.mrb[0].mxu0
        %550 = vmatprep.mubr.f32.mxu0 0.0
        %551 = vmatmul.mubr.f32.gmra.mrb[0].mxu0 %v305
        %v552 = vpop.f32.mrb[0].mxu0
        %v553 = vadd.f32 %v250, %v552
        %v554 = vpop.f32.mrb[0].mxu0
        %555 = vmatprep.mubr.f32.mxu0 0.0
        %556 = vmatmul.mubr.f32.gmra.mrb[0].mxu0 %v308
        %v557 = vpop.f32.mrb[0].mxu0
        %v558 = vadd.f32 %v250, %v557
        %v559 = vpop.f32.mrb[0].mxu0
        %560 = vmatprep.mubr.f32.mxu0 0.0
        %561 = vmatmul.mubr.f32.gmra.mrb[0].mxu0 %v311
        %v562 = vpop.f32.mrb[0].mxu0
        %v563 = vadd.f32 %v250, %v562
        %v564 = vpop.f32.mrb[0].mxu0
        %565 = vmatprep.mubr.f32.mxu0 0.0
        %566 = vmatmul.mubr.f32.gmra.mrb[0].mxu0 %v314
        %v567 = vpop.f32.mrb[0].mxu0
        %v568 = vadd.f32 %v250, %v567
        %v569 = vpop.f32.mrb[0].mxu0
        %570 = vmatprep.mubr.f32.mxu0 0.0
        %571 = vmatmul.mubr.f32.gmra.mrb[0].mxu0 %v317
        %v572 = vpop.f32.mrb[0].mxu0
        %v573 = vadd.f32 %v250, %v572
        %v574 = vpop.f32.mrb[0].mxu0
        %575 = vmatprep.mubr.f32.mxu0 0.0
        %576 = vmatmul.mubr.f32.gmra.mrb[0].mxu0 %v320
        %v577 = vpop.f32.mrb[0].mxu0
        %v578 = vadd.f32 %v250, %v577
        %v579 = vpop.f32.mrb[0].mxu0
        %580 = vmatprep.mubr.f32.mxu0 0.0
        %581 = vmatmul.mubr.f32.gmra.mrb[0].mxu0 %v323
        %v582 = vpop.f32.mrb[0].mxu0
        %v583 = vadd.f32 %v250, %v582
        %v584 = vpop.f32.mrb[0].mxu0
        %585 = vmatprep.mubr.f32.mxu0 0.0
        %586 = vmatmul.mubr.f32.gmra.mrb[0].mxu0 %v326
        %v587 = vpop.f32.mrb[0].mxu0
        %v588 = vadd.f32 %v250, %v587
        %v589 = vpop.f32.mrb[0].mxu0
        %590 = vmatprep.mubr.f32.mxu0 0.0
        %591 = vmatmul.mubr.f32.gmra.mrb[0].mxu0 %v329
        %v592 = vpop.f32.mrb[0].mxu0
        %v593 = vadd.f32 %v250, %v592
        %v594 = vpop.f32.mrb[0].mxu0
        %595 = vmatprep.mubr.f32.mxu0 0.0
        %596 = vmatmul.mubr.f32.gmra.mrb[0].mxu0 %v332
        %v597 = vpop.f32.mrb[0].mxu0
        %v598 = vadd.f32 %v250, %v597
        %v599 = vpop.f32.mrb[0].mxu0
        %600 = vmatprep.mubr.f32.mxu0 0.0
        %601 = vmatmul.mubr.f32.gmra.mrb[0].mxu0 %v335
        %v602 = vpop.f32.mrb[0].mxu0
        %v603 = vadd.f32 %v250, %v602
        %v604 = vpop.f32.mrb[0].mxu0
        %605 = vmatprep.mubr.f32.mxu0 0.0
        %606 = vmatmul.mubr.f32.gmra.mrb[0].mxu0 %v338
        %v607 = vpop.f32.mrb[0].mxu0
        %v608 = vadd.f32 %v250, %v607
        %v609 = vpop.f32.mrb[0].mxu0
        %610 = vmatprep.mubr.f32.mxu0 0.0
        %611 = vmatmul.mubr.f32.gmra.mrb[0].mxu0 %v341
        %v612 = vpop.f32.mrb[0].mxu0
        %v613 = vadd.f32 %v250, %v612
        %v614 = vpop.f32.mrb[0].mxu0
        %615 = vmatprep.mubr.f32.mxu0 0.0
        %616 = vmatmul.mubr.f32.gmra.mrb[0].mxu0 %v344
        %v617 = vpop.f32.mrb[0].mxu0
        %v618 = vadd.f32 %v250, %v617
        %v619 = vpop.f32.mrb[0].mxu0
        %620 = vmatprep.mubr.f32.mxu0 0.0
        %621 = vmatmul.mubr.f32.gmra.mrb[0].mxu0 %v347
        %v622 = vpop.f32.mrb[0].mxu0
        %v623 = vadd.f32 %v250, %v622
        %v624 = vpop.f32.mrb[0].mxu0
        %625 = vmatprep.mubr.f32.mxu0 0.0
        %626 = vmatmul.mubr.f32.gmra.mrb[0].mxu0 %v350
        %v627 = vpop.f32.mrb[0].mxu0
        %v628 = vadd.f32 %v250, %v627
        %v629 = vpop.f32.mrb[0].mxu0
        %630 = vmatprep.mubr.f32.mxu0 0.0
        %631 = vmatmul.mubr.f32.gmra.mrb[0].mxu0 %v353
        %v632 = vpop.f32.mrb[0].mxu0
        %v633 = vadd.f32 %v250, %v632
        %v634 = vpop.f32.mrb[0].mxu0
        %635 = vmatprep.mubr.f32.mxu0 0.0
        %636 = vmatmul.mubr.f32.gmra.mrb[0].mxu0 %v356
        %v637 = vpop.f32.mrb[0].mxu0
        %v638 = vadd.f32 %v250, %v637
        %v639 = vpop.f32.mrb[0].mxu0
        %640 = vmatprep.mubr.f32.mxu0 0.0
        %641 = vmatmul.mubr.f32.gmra.mrb[0].mxu0 %v359
        %v642 = vpop.f32.mrb[0].mxu0
        %v643 = vadd.f32 %v250, %v642
        %v644 = vpop.f32.mrb[0].mxu0
        %645 = vmatprep.mubr.f32.mxu0 0.0
        %646 = vmatmul.mubr.f32.gmra.mrb[0].mxu0 %v362
        %v647 = vpop.f32.mrb[0].mxu0
        %v648 = vadd.f32 %v250, %v647
        %v649 = vpop.f32.mrb[0].mxu0
        %650 = vmatprep.mubr.f32.mxu0 0.0
        %651 = vmatmul.mubr.f32.gmra.mrb[0].mxu0 %v365
        %v652 = vpop.f32.mrb[0].mxu0
        %v653 = vadd.f32 %v250, %v652
        %v654 = vpop.f32.mrb[0].mxu0
        %655 = vmatprep.mubr.f32.mxu0 0.0
        %656 = vmatmul.mubr.f32.gmra.mrb[0].mxu0 %v368
        %v657 = vpop.f32.mrb[0].mxu0
        %v658 = vadd.f32 %v250, %v657
        %v659 = vpop.f32.mrb[0].mxu0
        %660 = vmatprep.mubr.f32.mxu0 0.0
        %661 = vmatmul.mubr.f32.gmra.mrb[0].mxu0 %v371
        %v662 = vpop.f32.mrb[0].mxu0
        %v663 = vadd.f32 %v250, %v662
        %v664 = vpop.f32.mrb[0].mxu0
        %665 = vmatprep.mubr.f32.mxu0 0.0
        %666 = vmatmul.mubr.f32.gmra.mrb[0].mxu0 %v374
        %v667 = vpop.f32.mrb[0].mxu0
        %v668 = vadd.f32 %v250, %v667
        %v669 = vpop.f32.mrb[0].mxu0
        %670 = vmatprep.mubr.f32.mxu0 0.0
        %671 = vmatmul.mubr.f32.gmra.mrb[0].mxu0 %v377
        %v672 = vpop.f32.mrb[0].mxu0
        %v673 = vadd.f32 %v250, %v672
        %v674 = vpop.f32.mrb[0].mxu0
        %675 = vmatprep.mubr.f32.mxu0 0.0
        %676 = vmatmul.mubr.f32.gmra.mrb[0].mxu0 %v380
        %v677 = vpop.f32.mrb[0].mxu0
        %v678 = vadd.f32 %v250, %v677
        %v679 = vpop.f32.mrb[0].mxu0
        %680 = vmatprep.mubr.f32.mxu0 0.0
        %681 = vmatmul.mubr.f32.gmra.mrb[0].mxu0 %v383
        %v682 = vpop.f32.mrb[0].mxu0
        %v683 = vadd.f32 %v250, %v682
        %v684 = vpop.f32.mrb[0].mxu0
        %685 = vmatprep.mubr.f32.mxu0 0.0
        %686 = vmatmul.mubr.f32.gmra.mrb[0].mxu0 %v386
        %v687 = vpop.f32.mrb[0].mxu0
        %v688 = vadd.f32 %v250, %v687
        %v689 = vpop.f32.mrb[0].mxu0
        %690 = vmatprep.mubr.f32.mxu0 0.0
        %691 = vmatmul.mubr.f32.gmra.mrb[0].mxu0 %v389
        %v692 = vpop.f32.mrb[0].mxu0
        %v693 = vadd.f32 %v250, %v692
        %v694 = vpop.f32.mrb[0].mxu0
        %695 = vmatprep.mubr.f32.mxu0 0.0
        %696 = vmatmul.mubr.f32.gmra.mrb[0].mxu0 %v392
        %v697 = vpop.f32.mrb[0].mxu0
        %v698 = vadd.f32 %v250, %v697
        %v699 = vpop.f32.mrb[0].mxu0
        %700 = vmatprep.mubr.f32.mxu0 0.0
        %701 = vmatmul.mubr.f32.gmra.mrb[0].mxu0 %v395
        %v702 = vpop.f32.mrb[0].mxu0
        %v703 = vadd.f32 %v250, %v702
        %v704 = vpop.f32.mrb[0].mxu0
        %705 = vdwg.mxu0
        %v706 = vmax.f32 %v468, 0.0
        %v707 = vmax.f32 %v473, 0.0
        %v708 = vmax.f32 %v478, 0.0
        %v709 = vmax.f32 %v483, 0.0
        %v710 = vmax.f32 %v488, 0.0
        %v711 = vmax.f32 %v493, 0.0
        %v712 = vmax.f32 %v498, 0.0
        %v713 = vmax.f32 %v503, 0.0
        %v714 = vmax.f32 %v508, 0.0
        %v715 = vmax.f32 %v513, 0.0
        %v716 = vmax.f32 %v518, 0.0
        %v717 = vmax.f32 %v523, 0.0
        %v718 = vmax.f32 %v528, 0.0
        %v719 = vmax.f32 %v533, 0.0
        %v720 = vmax.f32 %v538, 0.0
        %v721 = vmax.f32 %v543, 0.0
        %v722 = vmax.f32 %v548, 0.0
        %v723 = vmax.f32 %v553, 0.0
        %v724 = vmax.f32 %v558, 0.0
        %v725 = vmax.f32 %v563, 0.0
        %v726 = vmax.f32 %v568, 0.0
        %v727 = vmax.f32 %v573, 0.0
        %v728 = vmax.f32 %v578, 0.0
        %v729 = vmax.f32 %v583, 0.0
        %v730 = vmax.f32 %v588, 0.0
        %v731 = vmax.f32 %v593, 0.0
        %v732 = vmax.f32 %v598, 0.0
        %v733 = vmax.f32 %v603, 0.0
        %v734 = vmax.f32 %v608, 0.0
        %v735 = vmax.f32 %v613, 0.0
        %v736 = vmax.f32 %v618, 0.0
        %v737 = vmax.f32 %v623, 0.0
        %v738 = vmax.f32 %v628, 0.0
        %v739 = vmax.f32 %v633, 0.0
        %v740 = vmax.f32 %v638, 0.0
        %v741 = vmax.f32 %v643, 0.0
        %v742 = vmax.f32 %v648, 0.0
        %v743 = vmax.f32 %v653, 0.0
        %v744 = vmax.f32 %v658, 0.0
        %v745 = vmax.f32 %v663, 0.0
        %v746 = vmax.f32 %v668, 0.0
        %v747 = vmax.f32 %v673, 0.0
        %v748 = vmax.f32 %v678, 0.0
        %v749 = vmax.f32 %v683, 0.0
        %v750 = vmax.f32 %v688, 0.0
        %v751 = vmax.f32 %v693, 0.0
        %v752 = vmax.f32 %v698, 0.0
        %v753 = vmax.f32 %v703, 0.0
        %vm754 = vcmask 130048
        %755 = vst.msk [vmem:[%s172] sm:$0xff] %vm754, %v706
        %756 = vst.msk [vmem:[%s172 + $0x8] sm:$0xff] %vm754, %v707
        %757 = vst.msk [vmem:[%s172 + $0x10] sm:$0xff] %vm754, %v708
        %758 = vst.msk [vmem:[%s172 + $0x18] sm:$0xff] %vm754, %v709
        %759 = vst.msk [vmem:[%s172 + $0x20] sm:$0xff] %vm754, %v710
        %760 = vst.msk [vmem:[%s172 + $0x28] sm:$0xff] %vm754, %v711
        %761 = vst.msk [vmem:[%s172 + $0x30] sm:$0xff] %vm754, %v712
        %762 = vst.msk [vmem:[%s172 + $0x38] sm:$0xff] %vm754, %v713
        %763 = vst.msk [vmem:[%s172 + $0x40] sm:$0xff] %vm754, %v714
        %764 = vst.msk [vmem:[%s172 + $0x48] sm:$0xff] %vm754, %v715
        %765 = vst.msk [vmem:[%s172 + $0x50] sm:$0xff] %vm754, %v716
        %766 = vst.msk [vmem:[%s172 + $0x58] sm:$0xff] %vm754, %v717
        %767 = vst.msk [vmem:[%s172 + $0x60] sm:$0xff] %vm754, %v718
        %768 = vst.msk [vmem:[%s172 + $0x68] sm:$0xff] %vm754, %v719
        %769 = vst.msk [vmem:[%s172 + $0x70] sm:$0xff] %vm754, %v720
        %770 = vst.msk [vmem:[%s172 + $0x78] sm:$0xff] %vm754, %v721
        %771 = vst.msk [vmem:[%s172 + $0x80] sm:$0xff] %vm754, %v722
        %772 = vst.msk [vmem:[%s172 + $0x88] sm:$0xff] %vm754, %v723
        %773 = vst.msk [vmem:[%s172 + $0x90] sm:$0xff] %vm754, %v724
        %774 = vst.msk [vmem:[%s172 + $0x98] sm:$0xff] %vm754, %v725
        %775 = vst.msk [vmem:[%s172 + $0xa0] sm:$0xff] %vm754, %v726
        %776 = vst.msk [vmem:[%s172 + $0xa8] sm:$0xff] %vm754, %v727
        %777 = vst.msk [vmem:[%s172 + $0xb0] sm:$0xff] %vm754, %v728
        %778 = vst.msk [vmem:[%s172 + $0xb8] sm:$0xff] %vm754, %v729
        %779 = vst.msk [vmem:[%s172 + $0xc0] sm:$0xff] %vm754, %v730
        %780 = vst.msk [vmem:[%s172 + $0xc8] sm:$0xff] %vm754, %v731
        %781 = vst.msk [vmem:[%s172 + $0xd0] sm:$0xff] %vm754, %v732
        %782 = vst.msk [vmem:[%s172 + $0xd8] sm:$0xff] %vm754, %v733
        %783 = vst.msk [vmem:[%s172 + $0xe0] sm:$0xff] %vm754, %v734
        %784 = vst.msk [vmem:[%s172 + $0xe8] sm:$0xff] %vm754, %v735
        %785 = vst.msk [vmem:[%s172 + $0xf0] sm:$0xff] %vm754, %v736
        %786 = vst.msk [vmem:[%s172 + $0xf8] sm:$0xff] %vm754, %v737
        %787 = vst.msk [vmem:[%s172 + $0x100] sm:$0xff] %vm754, %v738
        %788 = vst.msk [vmem:[%s172 + $0x108] sm:$0xff] %vm754, %v739
        %789 = vst.msk [vmem:[%s172 + $0x110] sm:$0xff] %vm754, %v740
        %790 = vst.msk [vmem:[%s172 + $0x118] sm:$0xff] %vm754, %v741
        %791 = vst.msk [vmem:[%s172 + $0x120] sm:$0xff] %vm754, %v742
        %792 = vst.msk [vmem:[%s172 + $0x128] sm:$0xff] %vm754, %v743
        %793 = vst.msk [vmem:[%s172 + $0x130] sm:$0xff] %vm754, %v744
        %794 = vst.msk [vmem:[%s172 + $0x138] sm:$0xff] %vm754, %v745
        %795 = vst.msk [vmem:[%s172 + $0x140] sm:$0xff] %vm754, %v746
        %796 = vst.msk [vmem:[%s172 + $0x148] sm:$0xff] %vm754, %v747
        %797 = vst.msk [vmem:[%s172 + $0x150] sm:$0xff] %vm754, %v748
        %798 = vst.msk [vmem:[%s172 + $0x158] sm:$0xff] %vm754, %v749
        %799 = vst.msk [vmem:[%s172 + $0x160] sm:$0xff] %vm754, %v750
        %800 = vst.msk [vmem:[%s172 + $0x168] sm:$0xff] %vm754, %v751
        %801 = vst.msk [vmem:[%s172 + $0x170] sm:$0xff] %vm754, %v752
        %802 = vst.msk [vmem:[%s172 + $0x178] sm:$0xff] %vm754, %v753
        %s803 = sand.u32 %s90, 1
        %s804 = sand.u32 %s90, 1
        %s805 = smul.addr %s804, 384
        %s806 = scalar_lea.vmem [#allocation2], %s805
        // Predicated region
        $region33: #{cnn_rnn_forward.5} parent=31 // pred_check
          %p807 = pneg %p100
        $region34: #{cnn_rnn_forward.5} parent=31 // pred_check_branch
          %809 = sbr.rel (%p807) target = $region36
        $region35: #{cnn_rnn_forward.5} parent=31 // pred_region
          %s810 = smul.u32 48, %s14
          %s811 = ssub.s32 81, %s810
          %p812 = scmp.lt.s32.totalorder %s811, 48
          %s813 = scalar_select %p812, %s811, 48
          %s814 = smul.u32 128, %s813
          %p815 = scmp.ne.s32.totalorder 0, %s814
          %s816 = smul.addr %s810, 8
          %s817 = scalar_lea.vmem %s3, %s816
          // Predicated region
          $region37: #{cnn_rnn_forward.5} parent=35 // pred_check
            %p818 = pneg %p815
          $region38: #{cnn_rnn_forward.5} parent=35 // pred_check_branch
            %820 = sbr.rel (%p818) target = $region40
          $region39: #{cnn_rnn_forward.5} parent=35 // pred_region
            // Predicated region
            $region41: #{cnn_rnn_forward.5} parent=39 // pred_check
              _
            $region42: #{cnn_rnn_forward.5} parent=39 // pred_check_branch
              %822 = sbr.rel (0) target = $region44
            $region43: #{cnn_rnn_forward.5} parent=39 // pred_region
              // Predicated region
              $region63: #{cnn_rnn_forward.5} parent=43 // pred_check
                _
              $region64: #{cnn_rnn_forward.5} parent=43 // pred_check_branch
                %966 = sbr.rel (0) target = $region66
              $region65: #{cnn_rnn_forward.5} parent=43 // pred_region
                %s967 = sdiv.u32.pop %s813, 48
                %s968 = srem.u32.pop %s813, 48
                // While loop
                $region67: #{cnn_rnn_forward.5} parent=65 // loop_pre_header
                  _
                $region68: #{cnn_rnn_forward.5} parent=65 // loop_header
                  %s970 = sphi 0, %s972
                  %p971 = scmp.ge.s32.totalorder %s970, %s967
                  %s975 = sphi 0, %s1076
                  %s976 = sphi %s806, %s1079
                  %s977 = sphi %s817, %s1080
                $region69: #{cnn_rnn_forward.5} parent=65 // loop_header_branch
                  %974 = sbr.rel (%p971) target = $region73
                $region70: #{cnn_rnn_forward.5} parent=65 // loop_body
                  %v978 = vld [vmem:[%s976] sm:$0xff]
                  %979 = vst [vmem:[%s977] sm:$0xff] %v978
                  %v980 = vld [vmem:[%s976 + $0x8] sm:$0xff]
                  %981 = vst [vmem:[%s977 + $0x8] sm:$0xff] %v980
                  %v982 = vld [vmem:[%s976 + $0x10] sm:$0xff]
                  %983 = vst [vmem:[%s977 + $0x10] sm:$0xff] %v982
                  %v984 = vld [vmem:[%s976 + $0x18] sm:$0xff]
                  %985 = vst [vmem:[%s977 + $0x18] sm:$0xff] %v984
                  %v986 = vld [vmem:[%s976 + $0x20] sm:$0xff]
                  %987 = vst [vmem:[%s977 + $0x20] sm:$0xff] %v986
                  %v988 = vld [vmem:[%s976 + $0x28] sm:$0xff]
                  %989 = vst [vmem:[%s977 + $0x28] sm:$0xff] %v988
                  %v990 = vld [vmem:[%s976 + $0x30] sm:$0xff]
                  %991 = vst [vmem:[%s977 + $0x30] sm:$0xff] %v990
                  %v992 = vld [vmem:[%s976 + $0x38] sm:$0xff]
                  %993 = vst [vmem:[%s977 + $0x38] sm:$0xff] %v992
                  %v994 = vld [vmem:[%s976 + $0x40] sm:$0xff]
                  %995 = vst [vmem:[%s977 + $0x40] sm:$0xff] %v994
                  %v996 = vld [vmem:[%s976 + $0x48] sm:$0xff]
                  %997 = vst [vmem:[%s977 + $0x48] sm:$0xff] %v996
                  %v998 = vld [vmem:[%s976 + $0x50] sm:$0xff]
                  %999 = vst [vmem:[%s977 + $0x50] sm:$0xff] %v998
                  %v1000 = vld [vmem:[%s976 + $0x58] sm:$0xff]
                  %1001 = vst [vmem:[%s977 + $0x58] sm:$0xff] %v1000
                  %v1002 = vld [vmem:[%s976 + $0x60] sm:$0xff]
                  %1003 = vst [vmem:[%s977 + $0x60] sm:$0xff] %v1002
                  %v1004 = vld [vmem:[%s976 + $0x68] sm:$0xff]
                  %1005 = vst [vmem:[%s977 + $0x68] sm:$0xff] %v1004
                  %v1006 = vld [vmem:[%s976 + $0x70] sm:$0xff]
                  %1007 = vst [vmem:[%s977 + $0x70] sm:$0xff] %v1006
                  %v1008 = vld [vmem:[%s976 + $0x78] sm:$0xff]
                  %1009 = vst [vmem:[%s977 + $0x78] sm:$0xff] %v1008
                  %v1010 = vld [vmem:[%s976 + $0x80] sm:$0xff]
                  %1011 = vst [vmem:[%s977 + $0x80] sm:$0xff] %v1010
                  %v1012 = vld [vmem:[%s976 + $0x88] sm:$0xff]
                  %1013 = vst [vmem:[%s977 + $0x88] sm:$0xff] %v1012
                  %v1014 = vld [vmem:[%s976 + $0x90] sm:$0xff]
                  %1015 = vst [vmem:[%s977 + $0x90] sm:$0xff] %v1014
                  %v1016 = vld [vmem:[%s976 + $0x98] sm:$0xff]
                  %1017 = vst [vmem:[%s977 + $0x98] sm:$0xff] %v1016
                  %v1018 = vld [vmem:[%s976 + $0xa0] sm:$0xff]
                  %1019 = vst [vmem:[%s977 + $0xa0] sm:$0xff] %v1018
                  %v1020 = vld [vmem:[%s976 + $0xa8] sm:$0xff]
                  %1021 = vst [vmem:[%s977 + $0xa8] sm:$0xff] %v1020
                  %v1022 = vld [vmem:[%s976 + $0xb0] sm:$0xff]
                  %1023 = vst [vmem:[%s977 + $0xb0] sm:$0xff] %v1022
                  %v1024 = vld [vmem:[%s976 + $0xb8] sm:$0xff]
                  %1025 = vst [vmem:[%s977 + $0xb8] sm:$0xff] %v1024
                  %v1026 = vld [vmem:[%s976 + $0xc0] sm:$0xff]
                  %1027 = vst [vmem:[%s977 + $0xc0] sm:$0xff] %v1026
                  %v1028 = vld [vmem:[%s976 + $0xc8] sm:$0xff]
                  %1029 = vst [vmem:[%s977 + $0xc8] sm:$0xff] %v1028
                  %v1030 = vld [vmem:[%s976 + $0xd0] sm:$0xff]
                  %1031 = vst [vmem:[%s977 + $0xd0] sm:$0xff] %v1030
                  %v1032 = vld [vmem:[%s976 + $0xd8] sm:$0xff]
                  %1033 = vst [vmem:[%s977 + $0xd8] sm:$0xff] %v1032
                  %v1034 = vld [vmem:[%s976 + $0xe0] sm:$0xff]
                  %1035 = vst [vmem:[%s977 + $0xe0] sm:$0xff] %v1034
                  %v1036 = vld [vmem:[%s976 + $0xe8] sm:$0xff]
                  %1037 = vst [vmem:[%s977 + $0xe8] sm:$0xff] %v1036
                  %v1038 = vld [vmem:[%s976 + $0xf0] sm:$0xff]
                  %1039 = vst [vmem:[%s977 + $0xf0] sm:$0xff] %v1038
                  %v1040 = vld [vmem:[%s976 + $0xf8] sm:$0xff]
                  %1041 = vst [vmem:[%s977 + $0xf8] sm:$0xff] %v1040
                  %v1042 = vld [vmem:[%s976 + $0x100] sm:$0xff]
                  %1043 = vst [vmem:[%s977 + $0x100] sm:$0xff] %v1042
                  %v1044 = vld [vmem:[%s976 + $0x108] sm:$0xff]
                  %1045 = vst [vmem:[%s977 + $0x108] sm:$0xff] %v1044
                  %v1046 = vld [vmem:[%s976 + $0x110] sm:$0xff]
                  %1047 = vst [vmem:[%s977 + $0x110] sm:$0xff] %v1046
                  %v1048 = vld [vmem:[%s976 + $0x118] sm:$0xff]
                  %1049 = vst [vmem:[%s977 + $0x118] sm:$0xff] %v1048
                  %v1050 = vld [vmem:[%s976 + $0x120] sm:$0xff]
                  %1051 = vst [vmem:[%s977 + $0x120] sm:$0xff] %v1050
                  %v1052 = vld [vmem:[%s976 + $0x128] sm:$0xff]
                  %1053 = vst [vmem:[%s977 + $0x128] sm:$0xff] %v1052
                  %v1054 = vld [vmem:[%s976 + $0x130] sm:$0xff]
                  %1055 = vst [vmem:[%s977 + $0x130] sm:$0xff] %v1054
                  %v1056 = vld [vmem:[%s976 + $0x138] sm:$0xff]
                  %1057 = vst [vmem:[%s977 + $0x138] sm:$0xff] %v1056
                  %v1058 = vld [vmem:[%s976 + $0x140] sm:$0xff]
                  %1059 = vst [vmem:[%s977 + $0x140] sm:$0xff] %v1058
                  %v1060 = vld [vmem:[%s976 + $0x148] sm:$0xff]
                  %1061 = vst [vmem:[%s977 + $0x148] sm:$0xff] %v1060
                  %v1062 = vld [vmem:[%s976 + $0x150] sm:$0xff]
                  %1063 = vst [vmem:[%s977 + $0x150] sm:$0xff] %v1062
                  %v1064 = vld [vmem:[%s976 + $0x158] sm:$0xff]
                  %1065 = vst [vmem:[%s977 + $0x158] sm:$0xff] %v1064
                  %v1066 = vld [vmem:[%s976 + $0x160] sm:$0xff]
                  %1067 = vst [vmem:[%s977 + $0x160] sm:$0xff] %v1066
                  %v1068 = vld [vmem:[%s976 + $0x168] sm:$0xff]
                  %1069 = vst [vmem:[%s977 + $0x168] sm:$0xff] %v1068
                  %v1070 = vld [vmem:[%s976 + $0x170] sm:$0xff]
                  %1071 = vst [vmem:[%s977 + $0x170] sm:$0xff] %v1070
                  %v1072 = vld [vmem:[%s976 + $0x178] sm:$0xff]
                  %1073 = vst [vmem:[%s977 + $0x178] sm:$0xff] %v1072
                  %s1074 = sadd.s32 1, %s975
                  %p1075 = scmp.ge.s32.totalorder %s1074, %s967
                  %s1076 = scalar_select %p1075, 0, %s1074
                  %s1077 = smul.u32 %s1076, 384
                  %s1078 = smul.u32 %s1076, 384
                  %s1079 = scalar_lea.vmem %s806, %s1077 [#allocation2]
                  %s1080 = scalar_lea.vmem %s817, %s1078
                $region71: #{cnn_rnn_forward.5} parent=65 // loop_footer
                  %s972 = sadd.s32 %s970, 1
                $region72: #{cnn_rnn_forward.5} parent=65 // loop_footer_branch
                  %969 = sbr.rel target = $region68
                $region73: #{cnn_rnn_forward.5} parent=65 // loop_exit
                  _
                %s1081 = sdiv.u32.pop %s813, 48
                %s1082 = srem.u32.pop %s813, 48
                %s1083 = smul.u32 %s1081, 48
                %s1084 = smul.u32 8, %s1083
                %s1085 = scalar_lea.vmem %s806, %s1084 [#allocation2]
                %s1086 = smul.u32 8, %s1083
                %s1087 = scalar_lea.vmem %s817, %s1086
                // While loop
                $region74: #{cnn_rnn_forward.5} parent=65 // loop_pre_header
                  _
                $region75: #{cnn_rnn_forward.5} parent=65 // loop_header
                  %s1089 = sphi 0, %s1091
                  %p1090 = scmp.ge.s32.totalorder %s1089, %s1082
                  %s1094 = sphi 0, %s1101
                  %s1095 = sphi %s1085, %s1104
                  %s1096 = sphi %s1087, %s1105
                $region76: #{cnn_rnn_forward.5} parent=65 // loop_header_branch
                  %1093 = sbr.rel (%p1090) target = $region80
                $region77: #{cnn_rnn_forward.5} parent=65 // loop_body
                  %v1097 = vld [vmem:[%s1095] sm:$0xff]
                  %1098 = vst [vmem:[%s1096] sm:$0xff] %v1097
                  %s1099 = sadd.s32 1, %s1094
                  %p1100 = scmp.ge.s32.totalorder %s1099, %s1082
                  %s1101 = scalar_select %p1100, 0, %s1099
                  %s1102 = smul.u32 %s1101, 8
                  %s1103 = smul.u32 %s1101, 8
                  %s1104 = scalar_lea.vmem %s1085, %s1102 [#allocation2]
                  %s1105 = scalar_lea.vmem %s1087, %s1103
                $region78: #{cnn_rnn_forward.5} parent=65 // loop_footer
                  %s1091 = sadd.s32 %s1089, 1
                $region79: #{cnn_rnn_forward.5} parent=65 // loop_footer_branch
                  %1088 = sbr.rel target = $region75
                $region80: #{cnn_rnn_forward.5} parent=65 // loop_exit
                  _
              $region66: #{cnn_rnn_forward.5} parent=43 // pred_fallthru
                _
              // Predicated region
              $region81: #{cnn_rnn_forward.5} parent=43 // pred_check
                _
              $region82: #{cnn_rnn_forward.5} parent=43 // pred_check_branch
                %1107 = sbr.rel target = $region84
              $region83: #{cnn_rnn_forward.5} parent=43 // pred_region
                _
              $region84: #{cnn_rnn_forward.5} parent=43 // pred_fallthru
                _
            $region44: #{cnn_rnn_forward.5} parent=39 // pred_fallthru
              _
            // Predicated region
            $region45: #{cnn_rnn_forward.5} parent=39 // pred_check
              _
            $region46: #{cnn_rnn_forward.5} parent=39 // pred_check_branch
              %824 = sbr.rel target = $region48
            $region47: #{cnn_rnn_forward.5} parent=39 // pred_region
              %s826 = sdiv.u32.pop %s813, 48
              %s827 = srem.u32.pop %s813, 48
              // While loop
              $region49: #{cnn_rnn_forward.5} parent=47 // loop_pre_header
                _
              $region50: #{cnn_rnn_forward.5} parent=47 // loop_header
                %s829 = sphi 0, %s831
                %p830 = scmp.ge.s32.totalorder %s829, %s826
                %s834 = sphi 0, %s935
                %s835 = sphi %s806, %s938
                %s836 = sphi %s817, %s939
              $region51: #{cnn_rnn_forward.5} parent=47 // loop_header_branch
                %833 = sbr.rel (%p830) target = $region55
              $region52: #{cnn_rnn_forward.5} parent=47 // loop_body
                %v837 = vld [vmem:[%s835] sm:$0xff]
                %838 = vst [vmem:[%s836] sm:$0xff] %v837
                %v839 = vld [vmem:[%s835 + $0x8] sm:$0xff]
                %840 = vst [vmem:[%s836 + $0x8] sm:$0xff] %v839
                %v841 = vld [vmem:[%s835 + $0x10] sm:$0xff]
                %842 = vst [vmem:[%s836 + $0x10] sm:$0xff] %v841
                %v843 = vld [vmem:[%s835 + $0x18] sm:$0xff]
                %844 = vst [vmem:[%s836 + $0x18] sm:$0xff] %v843
                %v845 = vld [vmem:[%s835 + $0x20] sm:$0xff]
                %846 = vst [vmem:[%s836 + $0x20] sm:$0xff] %v845
                %v847 = vld [vmem:[%s835 + $0x28] sm:$0xff]
                %848 = vst [vmem:[%s836 + $0x28] sm:$0xff] %v847
                %v849 = vld [vmem:[%s835 + $0x30] sm:$0xff]
                %850 = vst [vmem:[%s836 + $0x30] sm:$0xff] %v849
                %v851 = vld [vmem:[%s835 + $0x38] sm:$0xff]
                %852 = vst [vmem:[%s836 + $0x38] sm:$0xff] %v851
                %v853 = vld [vmem:[%s835 + $0x40] sm:$0xff]
                %854 = vst [vmem:[%s836 + $0x40] sm:$0xff] %v853
                %v855 = vld [vmem:[%s835 + $0x48] sm:$0xff]
                %856 = vst [vmem:[%s836 + $0x48] sm:$0xff] %v855
                %v857 = vld [vmem:[%s835 + $0x50] sm:$0xff]
                %858 = vst [vmem:[%s836 + $0x50] sm:$0xff] %v857
                %v859 = vld [vmem:[%s835 + $0x58] sm:$0xff]
                %860 = vst [vmem:[%s836 + $0x58] sm:$0xff] %v859
                %v861 = vld [vmem:[%s835 + $0x60] sm:$0xff]
                %862 = vst [vmem:[%s836 + $0x60] sm:$0xff] %v861
                %v863 = vld [vmem:[%s835 + $0x68] sm:$0xff]
                %864 = vst [vmem:[%s836 + $0x68] sm:$0xff] %v863
                %v865 = vld [vmem:[%s835 + $0x70] sm:$0xff]
                %866 = vst [vmem:[%s836 + $0x70] sm:$0xff] %v865
                %v867 = vld [vmem:[%s835 + $0x78] sm:$0xff]
                %868 = vst [vmem:[%s836 + $0x78] sm:$0xff] %v867
                %v869 = vld [vmem:[%s835 + $0x80] sm:$0xff]
                %870 = vst [vmem:[%s836 + $0x80] sm:$0xff] %v869
                %v871 = vld [vmem:[%s835 + $0x88] sm:$0xff]
                %872 = vst [vmem:[%s836 + $0x88] sm:$0xff] %v871
                %v873 = vld [vmem:[%s835 + $0x90] sm:$0xff]
                %874 = vst [vmem:[%s836 + $0x90] sm:$0xff] %v873
                %v875 = vld [vmem:[%s835 + $0x98] sm:$0xff]
                %876 = vst [vmem:[%s836 + $0x98] sm:$0xff] %v875
                %v877 = vld [vmem:[%s835 + $0xa0] sm:$0xff]
                %878 = vst [vmem:[%s836 + $0xa0] sm:$0xff] %v877
                %v879 = vld [vmem:[%s835 + $0xa8] sm:$0xff]
                %880 = vst [vmem:[%s836 + $0xa8] sm:$0xff] %v879
                %v881 = vld [vmem:[%s835 + $0xb0] sm:$0xff]
                %882 = vst [vmem:[%s836 + $0xb0] sm:$0xff] %v881
                %v883 = vld [vmem:[%s835 + $0xb8] sm:$0xff]
                %884 = vst [vmem:[%s836 + $0xb8] sm:$0xff] %v883
                %v885 = vld [vmem:[%s835 + $0xc0] sm:$0xff]
                %886 = vst [vmem:[%s836 + $0xc0] sm:$0xff] %v885
                %v887 = vld [vmem:[%s835 + $0xc8] sm:$0xff]
                %888 = vst [vmem:[%s836 + $0xc8] sm:$0xff] %v887
                %v889 = vld [vmem:[%s835 + $0xd0] sm:$0xff]
                %890 = vst [vmem:[%s836 + $0xd0] sm:$0xff] %v889
                %v891 = vld [vmem:[%s835 + $0xd8] sm:$0xff]
                %892 = vst [vmem:[%s836 + $0xd8] sm:$0xff] %v891
                %v893 = vld [vmem:[%s835 + $0xe0] sm:$0xff]
                %894 = vst [vmem:[%s836 + $0xe0] sm:$0xff] %v893
                %v895 = vld [vmem:[%s835 + $0xe8] sm:$0xff]
                %896 = vst [vmem:[%s836 + $0xe8] sm:$0xff] %v895
                %v897 = vld [vmem:[%s835 + $0xf0] sm:$0xff]
                %898 = vst [vmem:[%s836 + $0xf0] sm:$0xff] %v897
                %v899 = vld [vmem:[%s835 + $0xf8] sm:$0xff]
                %900 = vst [vmem:[%s836 + $0xf8] sm:$0xff] %v899
                %v901 = vld [vmem:[%s835 + $0x100] sm:$0xff]
                %902 = vst [vmem:[%s836 + $0x100] sm:$0xff] %v901
                %v903 = vld [vmem:[%s835 + $0x108] sm:$0xff]
                %904 = vst [vmem:[%s836 + $0x108] sm:$0xff] %v903
                %v905 = vld [vmem:[%s835 + $0x110] sm:$0xff]
                %906 = vst [vmem:[%s836 + $0x110] sm:$0xff] %v905
                %v907 = vld [vmem:[%s835 + $0x118] sm:$0xff]
                %908 = vst [vmem:[%s836 + $0x118] sm:$0xff] %v907
                %v909 = vld [vmem:[%s835 + $0x120] sm:$0xff]
                %910 = vst [vmem:[%s836 + $0x120] sm:$0xff] %v909
                %v911 = vld [vmem:[%s835 + $0x128] sm:$0xff]
                %912 = vst [vmem:[%s836 + $0x128] sm:$0xff] %v911
                %v913 = vld [vmem:[%s835 + $0x130] sm:$0xff]
                %914 = vst [vmem:[%s836 + $0x130] sm:$0xff] %v913
                %v915 = vld [vmem:[%s835 + $0x138] sm:$0xff]
                %916 = vst [vmem:[%s836 + $0x138] sm:$0xff] %v915
                %v917 = vld [vmem:[%s835 + $0x140] sm:$0xff]
                %918 = vst [vmem:[%s836 + $0x140] sm:$0xff] %v917
                %v919 = vld [vmem:[%s835 + $0x148] sm:$0xff]
                %920 = vst [vmem:[%s836 + $0x148] sm:$0xff] %v919
                %v921 = vld [vmem:[%s835 + $0x150] sm:$0xff]
                %922 = vst [vmem:[%s836 + $0x150] sm:$0xff] %v921
                %v923 = vld [vmem:[%s835 + $0x158] sm:$0xff]
                %924 = vst [vmem:[%s836 + $0x158] sm:$0xff] %v923
                %v925 = vld [vmem:[%s835 + $0x160] sm:$0xff]
                %926 = vst [vmem:[%s836 + $0x160] sm:$0xff] %v925
                %v927 = vld [vmem:[%s835 + $0x168] sm:$0xff]
                %928 = vst [vmem:[%s836 + $0x168] sm:$0xff] %v927
                %v929 = vld [vmem:[%s835 + $0x170] sm:$0xff]
                %930 = vst [vmem:[%s836 + $0x170] sm:$0xff] %v929
                %v931 = vld [vmem:[%s835 + $0x178] sm:$0xff]
                %932 = vst [vmem:[%s836 + $0x178] sm:$0xff] %v931
                %s933 = sadd.s32 1, %s834
                %p934 = scmp.ge.s32.totalorder %s933, %s826
                %s935 = scalar_select %p934, 0, %s933
                %s936 = smul.u32 %s935, 384
                %s937 = smul.u32 %s935, 384
                %s938 = scalar_lea.vmem %s806, %s936 [#allocation2]
                %s939 = scalar_lea.vmem %s817, %s937
              $region53: #{cnn_rnn_forward.5} parent=47 // loop_footer
                %s831 = sadd.s32 %s829, 1
              $region54: #{cnn_rnn_forward.5} parent=47 // loop_footer_branch
                %828 = sbr.rel target = $region50
              $region55: #{cnn_rnn_forward.5} parent=47 // loop_exit
                _
              %s940 = sdiv.u32.pop %s813, 48
              %s941 = srem.u32.pop %s813, 48
              %s942 = smul.u32 %s940, 48
              %s943 = smul.u32 8, %s942
              %s944 = scalar_lea.vmem %s806, %s943 [#allocation2]
              %s945 = smul.u32 8, %s942
              %s946 = scalar_lea.vmem %s817, %s945
              // While loop
              $region56: #{cnn_rnn_forward.5} parent=47 // loop_pre_header
                _
              $region57: #{cnn_rnn_forward.5} parent=47 // loop_header
                %s948 = sphi 0, %s950
                %p949 = scmp.ge.s32.totalorder %s948, %s941
                %s953 = sphi 0, %s960
                %s954 = sphi %s944, %s963
                %s955 = sphi %s946, %s964
              $region58: #{cnn_rnn_forward.5} parent=47 // loop_header_branch
                %952 = sbr.rel (%p949) target = $region62
              $region59: #{cnn_rnn_forward.5} parent=47 // loop_body
                %v956 = vld [vmem:[%s954] sm:$0xff]
                %957 = vst [vmem:[%s955] sm:$0xff] %v956
                %s958 = sadd.s32 1, %s953
                %p959 = scmp.ge.s32.totalorder %s958, %s941
                %s960 = scalar_select %p959, 0, %s958
                %s961 = smul.u32 %s960, 8
                %s962 = smul.u32 %s960, 8
                %s963 = scalar_lea.vmem %s944, %s961 [#allocation2]
                %s964 = scalar_lea.vmem %s946, %s962
              $region60: #{cnn_rnn_forward.5} parent=47 // loop_footer
                %s950 = sadd.s32 %s948, 1
              $region61: #{cnn_rnn_forward.5} parent=47 // loop_footer_branch
                %947 = sbr.rel target = $region57
              $region62: #{cnn_rnn_forward.5} parent=47 // loop_exit
                _
            $region48: #{cnn_rnn_forward.5} parent=39 // pred_fallthru
              _
          $region40: #{cnn_rnn_forward.5} parent=35 // pred_fallthru
            _
          %1108 = vnop
        $region36: #{cnn_rnn_forward.5} parent=31 // pred_fallthru
          _
      $region32: #{cnn_rnn_forward.5} parent=5 // pred_fallthru
        _
      %p1109 = scmp.le.s32.totalorder 2, %s9
      // Predicated region
      $region85: #{cnn_rnn_forward.5} parent=5 // pred_check
        %p1110 = pneg %p1109
      $region86: #{cnn_rnn_forward.5} parent=5 // pred_check_branch
        %1112 = sbr.rel (%p1110) target = $region88
      $region87: #{cnn_rnn_forward.5} parent=5 // pred_region
        %s1113 = ssub.s32 %s9, 2
        // Predicated region
        $region89: #{cnn_rnn_forward.5} parent=87 // pred_check
          %p1114 = pneg %p106
        $region90: #{cnn_rnn_forward.5} parent=87 // pred_check_branch
          %1116 = sbr.rel (%p1114) target = $region92
        $region91: #{cnn_rnn_forward.5} parent=87 // pred_region
          %s1117 = sand.u32 %s91, 1
          %s1118 = sand.u32 %s91, 1
          %s1119 = smul.addr %s1118, 384
          %s1120 = scalar_lea.vmem [#allocation2], %s1119
        $region92: #{cnn_rnn_forward.5} parent=87 // pred_fallthru
          _
      $region88: #{cnn_rnn_forward.5} parent=5 // pred_fallthru
        _
    $region6: #{cnn_rnn_forward.5} parent=1 // loop_footer
      %s13 = sadd.s32 1, %s9
    $region7: #{cnn_rnn_forward.5} parent=1 // loop_footer_branch
      %8 = sbr.rel target = $region3
    $region8: #{cnn_rnn_forward.5} parent=1 // loop_exit
      _

// kernel: cnn_rnn_forward.6
$region0: #{cnn_rnn_forward.6}
  #allocation0 [shape = 'u32[]', space=smem, size = 0x4, offset = 0x4, fixed_abs, tag = 'smem constant byte address 0x4 - core index']
  #allocation1 [shape = 'u32[144,128]{1,0:T(1,128)}', space=vmem, size = 0x12000, scoped, tag = 'internal scratch']
  %s0 = inlined_call_operand.vmem [shape: f32[648,144], index: 0, kind: input, shape index: {}]
  %s1 = inlined_call_operand.vmem [shape: f32[144,8], index: 1, kind: input, shape index: {}]
  %s2 = inlined_call_operand.vmem [shape: f32[1,8], index: 2, kind: input, shape index: {}]
  %s3 = inlined_call_operand.vmem [shape: f32[648,8], index: 3, kind: output, shape index: {}]
  %s4 = sld [smem:[#allocation0]]
  $region93: #{cnn_rnn_forward.6} parent=0
    _
  %s6 = ssub.s32 1, %s4
  %s7 = scalar_select 0, %s6, %s4
  $region1: #{cnn_rnn_forward.6} parent=0
    #allocation2 [shape = 'u8[393216]{0}', space=vmem, size = 0x60000, scoped, tag = 'output window, operand 0']
    loop: start=0, step=1, limit=4
    $region2: #{cnn_rnn_forward.6} parent=1 // loop_pre_header
      _
    $region3: #{cnn_rnn_forward.6} parent=1 // loop_header
      %s9 = sphi 0, %s13
      %p10 = scmp.ge.s32.totalorder %s9, 4
      %s19 = sphi 0, %s21
      %s22 = sphi 0, %s19
      %s23 = sphi 0, %s22
      %s39 = sphi 0, %s23
      %s43 = sphi 0, %s43
      %s45 = sphi 0, %s43
      %s46 = sphi 0, %s45
      %s60 = sphi 0, %s46
      %s64 = sphi 0, %s64
      %s66 = sphi 0, %s64
      %s67 = sphi 0, %s66
      %s81 = sphi 0, %s67
      %s87 = sphi 0, %s89
      %s90 = sphi 0, %s87
      %s91 = sphi 0, %s90
      %s107 = sphi 0, %s91
    $region4: #{cnn_rnn_forward.6} parent=1 // loop_header_branch
      %12 = sbr.rel (%p10) target = $region8
    $region5: #{cnn_rnn_forward.6} parent=1 // loop_body
      %s14 = ssub.s32 %s9, 1
      %s15 = ssub.s32 %s9, 2
      %s16 = sadd.s32 %s9, 1
      %s17 = ssub.s32 %s9, %s16
      %p18 = scmp.eq.s32.totalorder %s17, 0
      %s20 = sadd.s32 %s19, 1
      %s21 = scalar_select %p18, %s19, %s20
      %p24 = pneg %p18
      %p25 = scmp.eq.s32.totalorder %s9, 1
      %p26 = por %p24, %p25
      %p27 = scmp.ne.s32.totalorder %s19, %s22
      %p28 = scmp.eq.s32.totalorder %s9, 0
      %p29 = por %p27, %p28
      %p30 = scmp.ne.s32.totalorder %s19, %s22
      %p31 = scmp.eq.s32.totalorder %s14, 1
      %p32 = por %p30, %p31
      %p33 = scmp.ne.s32.totalorder %s22, %s23
      %p34 = scmp.eq.s32.totalorder %s14, 0
      %p35 = por %p33, %p34
      %p36 = scmp.ne.s32.totalorder %s22, %s23
      %p37 = scmp.eq.s32.totalorder %s15, 1
      %p38 = por %p36, %p37
      %p40 = scmp.ne.s32.totalorder %s23, %s39
      %p41 = scmp.eq.s32.totalorder %s15, 0
      %p42 = por %p40, %p41
      %s44 = sadd.s32 %s43, 1
      %p47 = scmp.eq.s32.totalorder %s9, 1
      %p48 = scmp.ne.s32.totalorder %s43, %s45
      %p49 = scmp.eq.s32.totalorder %s9, 0
      %p50 = por %p48, %p49
      %p51 = scmp.ne.s32.totalorder %s43, %s45
      %p52 = scmp.eq.s32.totalorder %s14, 1
      %p53 = por %p51, %p52
      %p54 = scmp.ne.s32.totalorder %s45, %s46
      %p55 = scmp.eq.s32.totalorder %s14, 0
      %p56 = por %p54, %p55
      %p57 = scmp.ne.s32.totalorder %s45, %s46
      %p58 = scmp.eq.s32.totalorder %s15, 1
      %p59 = por %p57, %p58
      %p61 = scmp.ne.s32.totalorder %s46, %s60
      %p62 = scmp.eq.s32.totalorder %s15, 0
      %p63 = por %p61, %p62
      %s65 = sadd.s32 %s64, 1
      %p68 = scmp.eq.s32.totalorder %s9, 1
      %p69 = scmp.ne.s32.totalorder %s64, %s66
      %p70 = scmp.eq.s32.totalorder %s9, 0
      %p71 = por %p69, %p70
      %p72 = scmp.ne.s32.totalorder %s64, %s66
      %p73 = scmp.eq.s32.totalorder %s14, 1
      %p74 = por %p72, %p73
      %p75 = scmp.ne.s32.totalorder %s66, %s67
      %p76 = scmp.eq.s32.totalorder %s14, 0
      %p77 = por %p75, %p76
      %p78 = scmp.ne.s32.totalorder %s66, %s67
      %p79 = scmp.eq.s32.totalorder %s15, 1
      %p80 = por %p78, %p79
      %p82 = scmp.ne.s32.totalorder %s67, %s81
      %p83 = scmp.eq.s32.totalorder %s15, 0
      %p84 = por %p82, %p83
      %s85 = ssub.s32 %s9, %s16
      %p86 = scmp.eq.s32.totalorder %s85, 0
      %s88 = sadd.s32 %s87, 1
      %s89 = scalar_select %p86, %s87, %s88
      %p92 = pneg %p86
      %p93 = scmp.eq.s32.totalorder %s9, 1
      %p94 = por %p92, %p93
      %p95 = scmp.ne.s32.totalorder %s87, %s90
      %p96 = scmp.eq.s32.totalorder %s9, 0
      %p97 = por %p95, %p96
      %p98 = scmp.ne.s32.totalorder %s87, %s90
      %p99 = scmp.eq.s32.totalorder %s14, 1
      %p100 = por %p98, %p99
      %p101 = scmp.ne.s32.totalorder %s90, %s91
      %p102 = scmp.eq.s32.totalorder %s14, 0
      %p103 = por %p101, %p102
      %p104 = scmp.ne.s32.totalorder %s90, %s91
      %p105 = scmp.eq.s32.totalorder %s15, 1
      %p106 = por %p104, %p105
      %p108 = scmp.ne.s32.totalorder %s91, %s107
      %p109 = scmp.eq.s32.totalorder %s15, 0
      %p110 = por %p108, %p109
      %p111 = scmp.le.s32.totalorder 1, %s9
      %p112 = scmp.lt.s32.totalorder %s9, 3
      %p113 = pnand %p111, %p112
      %p114 = pneg %p113
      // Predicated region
      $region9: #{cnn_rnn_forward.6} parent=5 // pred_check
        _
      $region10: #{cnn_rnn_forward.6} parent=5 // pred_check_branch
        %116 = sbr.rel (%p113) target = $region12
      $region11: #{cnn_rnn_forward.6} parent=5 // pred_region
        %s117 = ssub.s32 %s9, 1
        // Predicated region
        $region13: #{cnn_rnn_forward.6} parent=11 // pred_check
          %p118 = pneg %p56
        $region14: #{cnn_rnn_forward.6} parent=11 // pred_check_branch
          %120 = sbr.rel (%p118) target = $region16
        $region15: #{cnn_rnn_forward.6} parent=11 // pred_region
          _
        $region16: #{cnn_rnn_forward.6} parent=11 // pred_fallthru
          _
        // Predicated region
        $region17: #{cnn_rnn_forward.6} parent=11 // pred_check
          %p121 = pneg %p77
        $region18: #{cnn_rnn_forward.6} parent=11 // pred_check_branch
          %123 = sbr.rel (%p121) target = $region20
        $region19: #{cnn_rnn_forward.6} parent=11 // pred_region
          _
        $region20: #{cnn_rnn_forward.6} parent=11 // pred_fallthru
          _
      $region12: #{cnn_rnn_forward.6} parent=5 // pred_fallthru
        _
      %p124 = scmp.lt.s32.totalorder %s9, 2
      // Predicated region
      $region21: #{cnn_rnn_forward.6} parent=5 // pred_check
        %p125 = pneg %p124
      $region22: #{cnn_rnn_forward.6} parent=5 // pred_check_branch
        %127 = sbr.rel (%p125) target = $region24
      $region23: #{cnn_rnn_forward.6} parent=5 // pred_region
        // Predicated region
        $region25: #{cnn_rnn_forward.6} parent=23 // pred_check
          %p128 = pneg %p29
        $region26: #{cnn_rnn_forward.6} parent=23 // pred_check_branch
          %130 = sbr.rel (%p128) target = $region28
        $region27: #{cnn_rnn_forward.6} parent=23 // pred_region
          %s131 = smul.u32 48, %s9
          %s132 = ssub.s32 81, %s131
          %p133 = scmp.lt.s32.totalorder %s132, 48
          %s134 = scalar_select %p133, %s132, 48
          %s135 = smul.u32 128, %s134
          %s136 = smul.u32 %s135, 2
          %p137 = scmp.lt.s32.totalorder %s131, 80
          %s138 = scalar_select %p137, %s131, 80
          %s139 = smul.addr %s138, 2
          %s140 = smul.addr %s139, 8
          %s141 = scalar_lea.vmem %s0, %s140
          %s142 = smul.u32 48, %s9
          %s143 = ssub.s32 81, %s142
          %p144 = scmp.lt.s32.totalorder %s143, 48
          %s145 = scalar_select %p144, %s143, 48
          %s146 = smul.u32 128, %s145
          %s147 = smul.u32 %s146, 2
        $region28: #{cnn_rnn_forward.6} parent=23 // pred_fallthru
          _
      $region24: #{cnn_rnn_forward.6} parent=5 // pred_fallthru
        _
      %p148 = scmp.le.s32.totalorder 1, %s9
      %p149 = scmp.lt.s32.totalorder %s9, 3
      %p150 = pnand %p148, %p149
      %p151 = pneg %p150
      // Predicated region
      $region29: #{cnn_rnn_forward.6} parent=5 // pred_check
        _
      $region30: #{cnn_rnn_forward.6} parent=5 // pred_check_branch
        %153 = sbr.rel (%p150) target = $region32
      $region31: #{cnn_rnn_forward.6} parent=5 // pred_region
        %s154 = ssub.s32 %s9, 1
        %s155 = smul.u32 48, %s14
        %s156 = ssub.s32 81, %s155
        %p157 = scmp.lt.s32.totalorder %s156, 48
        %s158 = scalar_select %p157, %s156, 48
        %s159 = smul.u32 128, %s158
        %s160 = smul.u32 %s159, 2
        %p161 = scmp.lt.s32.totalorder %s155, 80
        %s162 = scalar_select %p161, %s155, 80
        %s163 = smul.addr %s162, 2
        %s164 = smul.addr %s163, 8
        %s165 = scalar_lea.vmem %s0, %s164
        %p166 = pneg %p35
        %p167 = pneg %p32
        %p168 = pneg %p56
        %p169 = pneg %p53
        %p170 = pneg %p77
        %p171 = pneg %p74
        %p172 = pneg %p103
        %p173 = pneg %p100
        %s174 = sand.u32 %s90, 1
        %s175 = sand.u32 %s90, 1
        %s176 = smul.addr %s175, 384
        %s177 = scalar_lea.vmem [#allocation2], %s176
        %s178 = smul.u32 48, %s14
        %s179 = ssub.s32 81, %s178
        %p180 = scmp.lt.s32.totalorder %s179, 48
        %s181 = scalar_select %p180, %s179, 48
        %s182 = smul.u32 128, %s181
        %s183 = smul.u32 %s182, 2
        %p184 = scmp.lt.s32.totalorder %s178, 80
        %s185 = scalar_select %p184, %s178, 80
        %s186 = smul.addr %s185, 2
        %s187 = smul.addr %s186, 8
        %s188 = scalar_lea.vmem %s0, %s187
        %s189 = smul.u32 48, %s14
        %s190 = ssub.s32 81, %s189
        %p191 = scmp.lt.s32.totalorder %s190, 48
        %s192 = scalar_select %p191, %s190, 48
        %s193 = smul.u32 128, %s192
        %s194 = smul.u32 %s193, 2
        %s195 = smul.u32 48, %s14
        %s196 = ssub.s32 81, %s195
        %p197 = scmp.lt.s32.totalorder %s196, 48
        %s198 = scalar_select %p197, %s196, 48
        %s199 = smul.u32 128, %s198
        %v200 = vld [vmem:[%s188] sm:$0xff]
        %v201 = vld [vmem:[%s188 + $0x8] sm:$0xff]
        %v202 = vld [vmem:[%s188 + $0x10] sm:$0xff]
        %v203 = vld [vmem:[%s188 + $0x18] sm:$0xff]
        %v204 = vld [vmem:[%s188 + $0x20] sm:$0xff]
        %v205 = vld [vmem:[%s188 + $0x28] sm:$0xff]
        %v206 = vld [vmem:[%s188 + $0x30] sm:$0xff]
        %v207 = vld [vmem:[%s188 + $0x38] sm:$0xff]
        %v208 = vld [vmem:[%s188 + $0x40] sm:$0xff]
        %v209 = vld [vmem:[%s188 + $0x48] sm:$0xff]
        %v210 = vld [vmem:[%s188 + $0x50] sm:$0xff]
        %v211 = vld [vmem:[%s188 + $0x58] sm:$0xff]
        %v212 = vld [vmem:[%s188 + $0x60] sm:$0xff]
        %v213 = vld [vmem:[%s188 + $0x68] sm:$0xff]
        %v214 = vld [vmem:[%s188 + $0x70] sm:$0xff]
        %v215 = vld [vmem:[%s188 + $0x78] sm:$0xff]
        %v216 = vld [vmem:[%s188 + $0x80] sm:$0xff]
        %v217 = vld [vmem:[%s188 + $0x88] sm:$0xff]
        %v218 = vld [vmem:[%s188 + $0x90] sm:$0xff]
        %v219 = vld [vmem:[%s188 + $0x98] sm:$0xff]
        %v220 = vld [vmem:[%s188 + $0xa0] sm:$0xff]
        %v221 = vld [vmem:[%s188 + $0xa8] sm:$0xff]
        %v222 = vld [vmem:[%s188 + $0xb0] sm:$0xff]
        %v223 = vld [vmem:[%s188 + $0xb8] sm:$0xff]
        %v224 = vld [vmem:[%s188 + $0xc0] sm:$0xff]
        %v225 = vld [vmem:[%s188 + $0xc8] sm:$0xff]
        %v226 = vld [vmem:[%s188 + $0xd0] sm:$0xff]
        %v227 = vld [vmem:[%s188 + $0xd8] sm:$0xff]
        %v228 = vld [vmem:[%s188 + $0xe0] sm:$0xff]
        %v229 = vld [vmem:[%s188 + $0xe8] sm:$0xff]
        %v230 = vld [vmem:[%s188 + $0xf0] sm:$0xff]
        %v231 = vld [vmem:[%s188 + $0xf8] sm:$0xff]
        %v232 = vld [vmem:[%s188 + $0x100] sm:$0xff]
        %v233 = vld [vmem:[%s188 + $0x108] sm:$0xff]
        %v234 = vld [vmem:[%s188 + $0x110] sm:$0xff]
        %v235 = vld [vmem:[%s188 + $0x118] sm:$0xff]
        %v236 = vld [vmem:[%s188 + $0x120] sm:$0xff]
        %v237 = vld [vmem:[%s188 + $0x128] sm:$0xff]
        %v238 = vld [vmem:[%s188 + $0x130] sm:$0xff]
        %v239 = vld [vmem:[%s188 + $0x138] sm:$0xff]
        %v240 = vld [vmem:[%s188 + $0x140] sm:$0xff]
        %v241 = vld [vmem:[%s188 + $0x148] sm:$0xff]
        %v242 = vld [vmem:[%s188 + $0x150] sm:$0xff]
        %v243 = vld [vmem:[%s188 + $0x158] sm:$0xff]
        %v244 = vld [vmem:[%s188 + $0x160] sm:$0xff]
        %v245 = vld [vmem:[%s188 + $0x168] sm:$0xff]
        %v246 = vld [vmem:[%s188 + $0x170] sm:$0xff]
        %v247 = vld [vmem:[%s188 + $0x178] sm:$0xff]
        %v248 = vld [vmem:[%s188 + $0x180] sm:$0xff]
        %v249 = vld [vmem:[%s188 + $0x188] sm:$0xff]
        %v250 = vld [vmem:[%s188 + $0x190] sm:$0xff]
        %v251 = vld [vmem:[%s188 + $0x198] sm:$0xff]
        %v252 = vld [vmem:[%s188 + $0x1a0] sm:$0xff]
        %v253 = vld [vmem:[%s188 + $0x1a8] sm:$0xff]
        %v254 = vld [vmem:[%s188 + $0x1b0] sm:$0xff]
        %v255 = vld [vmem:[%s188 + $0x1b8] sm:$0xff]
        %v256 = vld [vmem:[%s188 + $0x1c0] sm:$0xff]
        %v257 = vld [vmem:[%s188 + $0x1c8] sm:$0xff]
        %v258 = vld [vmem:[%s188 + $0x1d0] sm:$0xff]
        %v259 = vld [vmem:[%s188 + $0x1d8] sm:$0xff]
        %v260 = vld [vmem:[%s188 + $0x1e0] sm:$0xff]
        %v261 = vld [vmem:[%s188 + $0x1e8] sm:$0xff]
        %v262 = vld [vmem:[%s188 + $0x1f0] sm:$0xff]
        %v263 = vld [vmem:[%s188 + $0x1f8] sm:$0xff]
        %v264 = vld [vmem:[%s188 + $0x200] sm:$0xff]
        %v265 = vld [vmem:[%s188 + $0x208] sm:$0xff]
        %v266 = vld [vmem:[%s188 + $0x210] sm:$0xff]
        %v267 = vld [vmem:[%s188 + $0x218] sm:$0xff]
        %v268 = vld [vmem:[%s188 + $0x220] sm:$0xff]
        %v269 = vld [vmem:[%s188 + $0x228] sm:$0xff]
        %v270 = vld [vmem:[%s188 + $0x230] sm:$0xff]
        %v271 = vld [vmem:[%s188 + $0x238] sm:$0xff]
        %v272 = vld [vmem:[%s188 + $0x240] sm:$0xff]
        %v273 = vld [vmem:[%s188 + $0x248] sm:$0xff]
        %v274 = vld [vmem:[%s188 + $0x250] sm:$0xff]
        %v275 = vld [vmem:[%s188 + $0x258] sm:$0xff]
        %v276 = vld [vmem:[%s188 + $0x260] sm:$0xff]
        %v277 = vld [vmem:[%s188 + $0x268] sm:$0xff]
        %v278 = vld [vmem:[%s188 + $0x270] sm:$0xff]
        %v279 = vld [vmem:[%s188 + $0x278] sm:$0xff]
        %v280 = vld [vmem:[%s188 + $0x280] sm:$0xff]
        %v281 = vld [vmem:[%s188 + $0x288] sm:$0xff]
        %v282 = vld [vmem:[%s188 + $0x290] sm:$0xff]
        %v283 = vld [vmem:[%s188 + $0x298] sm:$0xff]
        %v284 = vld [vmem:[%s188 + $0x2a0] sm:$0xff]
        %v285 = vld [vmem:[%s188 + $0x2a8] sm:$0xff]
        %v286 = vld [vmem:[%s188 + $0x2b0] sm:$0xff]
        %v287 = vld [vmem:[%s188 + $0x2b8] sm:$0xff]
        %v288 = vld [vmem:[%s188 + $0x2c0] sm:$0xff]
        %v289 = vld [vmem:[%s188 + $0x2c8] sm:$0xff]
        %v290 = vld [vmem:[%s188 + $0x2d0] sm:$0xff]
        %v291 = vld [vmem:[%s188 + $0x2d8] sm:$0xff]
        %v292 = vld [vmem:[%s188 + $0x2e0] sm:$0xff]
        %v293 = vld [vmem:[%s188 + $0x2e8] sm:$0xff]
        %v294 = vld [vmem:[%s188 + $0x2f0] sm:$0xff]
        %v295 = vld [vmem:[%s188 + $0x2f8] sm:$0xff]
        %v296 = vld [vmem:[%s1] sm:$0xff]
        %v297 = vld [vmem:[%s1 + $0x8] sm:$0xff]
        %v298 = vld [vmem:[%s1 + $0x10] sm:$0xff]
        %v299 = vld [vmem:[%s1 + $0x18] sm:$0xff]
        %v300 = vld [vmem:[%s1 + $0x20] sm:$0xff]
        %v301 = vld [vmem:[%s1 + $0x28] sm:$0xff]
        %v302 = vld [vmem:[%s1 + $0x30] sm:$0xff]
        %v303 = vld [vmem:[%s1 + $0x38] sm:$0xff]
        %v304 = vld [vmem:[%s1 + $0x40] sm:$0xff]
        %v305 = vld [vmem:[%s1 + $0x48] sm:$0xff]
        %v306 = vld [vmem:[%s1 + $0x50] sm:$0xff]
        %v307 = vld [vmem:[%s1 + $0x58] sm:$0xff]
        %v308 = vld [vmem:[%s1 + $0x60] sm:$0xff]
        %v309 = vld [vmem:[%s1 + $0x68] sm:$0xff]
        %v310 = vld [vmem:[%s1 + $0x70] sm:$0xff]
        %v311 = vld [vmem:[%s1 + $0x78] sm:$0xff]
        %v312 = vld [vmem:[%s1 + $0x80] sm:$0xff]
        %v313 = vld [vmem:[%s1 + $0x88] sm:$0xff]
        %v314 = vld [vmem:[%s2] sm:$0x1]
        %v316 = vlaneseq
        %v317 = vshrl.u32 %v316, 7
        %v318 = vsub.s32 0, %v317
        %v319 = vrot.slane %v314, %v318
        %vm321 = vcmask 130048
        %v323 = vsel %vm321, %v201, 0
        %v326 = vsel %vm321, %v203, 0
        %v329 = vsel %vm321, %v205, 0
        %v332 = vsel %vm321, %v207, 0
        %v335 = vsel %vm321, %v209, 0
        %v338 = vsel %vm321, %v211, 0
        %v341 = vsel %vm321, %v213, 0
        %v344 = vsel %vm321, %v215, 0
        %v347 = vsel %vm321, %v217, 0
        %v350 = vsel %vm321, %v219, 0
        %v353 = vsel %vm321, %v221, 0
        %v356 = vsel %vm321, %v223, 0
        %v359 = vsel %vm321, %v225, 0
        %v362 = vsel %vm321, %v227, 0
        %v365 = vsel %vm321, %v229, 0
        %v368 = vsel %vm321, %v231, 0
        %v371 = vsel %vm321, %v233, 0
        %v374 = vsel %vm321, %v235, 0
        %v377 = vsel %vm321, %v237, 0
        %v380 = vsel %vm321, %v239, 0
        %v383 = vsel %vm321, %v241, 0
        %v386 = vsel %vm321, %v243, 0
        %v389 = vsel %vm321, %v245, 0
        %v392 = vsel %vm321, %v247, 0
        %v395 = vsel %vm321, %v249, 0
        %v398 = vsel %vm321, %v251, 0
        %v401 = vsel %vm321, %v253, 0
        %v404 = vsel %vm321, %v255, 0
        %v407 = vsel %vm321, %v257, 0
        %v410 = vsel %vm321, %v259, 0
        %v413 = vsel %vm321, %v261, 0
        %v416 = vsel %vm321, %v263, 0
        %v419 = vsel %vm321, %v265, 0
        %v422 = vsel %vm321, %v267, 0
        %v425 = vsel %vm321, %v269, 0
        %v428 = vsel %vm321, %v271, 0
        %v431 = vsel %vm321, %v273, 0
        %v434 = vsel %vm321, %v275, 0
        %v437 = vsel %vm321, %v277, 0
        %v440 = vsel %vm321, %v279, 0
        %v443 = vsel %vm321, %v281, 0
        %v446 = vsel %vm321, %v283, 0
        %v449 = vsel %vm321, %v285, 0
        %v452 = vsel %vm321, %v287, 0
        %v455 = vsel %vm321, %v289, 0
        %v458 = vsel %vm321, %v291, 0
        %v461 = vsel %vm321, %v293, 0
        %v464 = vsel %vm321, %v295, 0
        %466 = vmatprep.subr.mxu0 0.0
        %467 = vmatpush1.msra.mxu0 %v296
        %468 = vmatprep.subr.mxu0 0.0
        %469 = vmatpush1.msra.mxu0 %v297
        %470 = vmatprep.subr.mxu0 0.0
        %471 = vmatpush1.msra.mxu0 %v298
        %472 = vmatprep.subr.mxu0 0.0
        %473 = vmatpush1.msra.mxu0 %v299
        %474 = vmatprep.subr.mxu0 0.0
        %475 = vmatpush1.msra.mxu0 %v300
        %476 = vmatprep.subr.mxu0 0.0
        %477 = vmatpush1.msra.mxu0 %v301
        %478 = vmatprep.subr.mxu0 0.0
        %479 = vmatpush1.msra.mxu0 %v302
        %480 = vmatprep.subr.mxu0 0.0
        %481 = vmatpush1.msra.mxu0 %v303
        %482 = vmatprep.subr.mxu0 0.0
        %483 = vmatpush1.msra.mxu0 %v304
        %484 = vmatprep.subr.mxu0 0.0
        %485 = vmatpush1.msra.mxu0 %v305
        %486 = vmatprep.subr.mxu0 0.0
        %487 = vmatpush1.msra.mxu0 %v306
        %488 = vmatprep.subr.mxu0 0.0
        %489 = vmatpush1.msra.mxu0 %v307
        %490 = vmatprep.subr.mxu0 0.0
        %491 = vmatpush1.msra.mxu0 %v308
        %492 = vmatprep.subr.mxu0 0.0
        %493 = vmatpush1.msra.mxu0 %v309
        %494 = vmatprep.subr.mxu0 0.0
        %495 = vmatpush1.msra.mxu0 %v310
        %496 = vmatprep.subr.mxu0 0.0
        %497 = vmatpush1.msra.mxu0 %v311
        %498 = vmatprep.subr.mxu0 0.0
        %499 = vmatpush1.msra.mxu0 %v312
        %500 = vmatprep.subr.mxu0 0.0
        %501 = vmatpush1.msra.mxu0 %v313
        %502 = vmatprep.subr.mxu0 0.0
        %503 = vmatpush1.msra.mxu0 0.0
        %504 = vmatprep.subr.mxu0 0.0
        %505 = vmatpush1.msra.mxu0 0.0
        %506 = vmatprep.subr.mxu0 0.0
        %507 = vmatpush1.msra.mxu0 0.0
        %508 = vmatprep.subr.mxu0 0.0
        %509 = vmatpush1.msra.mxu0 0.0
        %510 = vmatprep.subr.mxu0 0.0
        %511 = vmatpush1.msra.mxu0 0.0
        %512 = vmatprep.subr.mxu0 0.0
        %513 = vmatpush1.msra.mxu0 0.0
        %514 = vmatprep.subr.mxu0 0.0
        %515 = vmatpush1.msra.mxu0 0.0
        %516 = vmatprep.subr.mxu0 0.0
        %517 = vmatpush1.msra.mxu0 0.0
        %518 = vmatprep.subr.mxu0 0.0
        %519 = vmatpush1.msra.mxu0 0.0
        %520 = vmatprep.subr.mxu0 0.0
        %521 = vmatpush1.msra.mxu0 0.0
        %522 = vmatprep.subr.mxu0 0.0
        %523 = vmatpush1.msra.mxu0 0.0
        %524 = vmatprep.subr.mxu0 0.0
        %525 = vmatpush1.msra.mxu0 0.0
        %526 = vmatprep.subr.mxu0 0.0
        %527 = vmatpush1.msra.mxu0 0.0
        %528 = vmatprep.subr.mxu0 0.0
        %529 = vmatpush1.msra.mxu0 0.0
        %530 = vmatprep.mubr.f32.mxu0 %v323
        %531 = vmatmul.mubr.f32.gmra.mrb[0].mxu0 %v200
        %v532 = vpop.f32.mrb[0].mxu0
        %v533 = vadd.f32 %v319, %v532
        %v534 = vpop.f32.mrb[0].mxu0
        %535 = vmatprep.mubr.f32.mxu0 %v326
        %536 = vmatmul.mubr.f32.gmra.mrb[0].mxu0 %v202
        %v537 = vpop.f32.mrb[0].mxu0
        %v538 = vadd.f32 %v319, %v537
        %v539 = vpop.f32.mrb[0].mxu0
        %540 = vmatprep.mubr.f32.mxu0 %v329
        %541 = vmatmul.mubr.f32.gmra.mrb[0].mxu0 %v204
        %v542 = vpop.f32.mrb[0].mxu0
        %v543 = vadd.f32 %v319, %v542
        %v544 = vpop.f32.mrb[0].mxu0
        %545 = vmatprep.mubr.f32.mxu0 %v332
        %546 = vmatmul.mubr.f32.gmra.mrb[0].mxu0 %v206
        %v547 = vpop.f32.mrb[0].mxu0
        %v548 = vadd.f32 %v319, %v547
        %v549 = vpop.f32.mrb[0].mxu0
        %550 = vmatprep.mubr.f32.mxu0 %v335
        %551 = vmatmul.mubr.f32.gmra.mrb[0].mxu0 %v208
        %v552 = vpop.f32.mrb[0].mxu0
        %v553 = vadd.f32 %v319, %v552
        %v554 = vpop.f32.mrb[0].mxu0
        %555 = vmatprep.mubr.f32.mxu0 %v338
        %556 = vmatmul.mubr.f32.gmra.mrb[0].mxu0 %v210
        %v557 = vpop.f32.mrb[0].mxu0
        %v558 = vadd.f32 %v319, %v557
        %v559 = vpop.f32.mrb[0].mxu0
        %560 = vmatprep.mubr.f32.mxu0 %v341
        %561 = vmatmul.mubr.f32.gmra.mrb[0].mxu0 %v212
        %v562 = vpop.f32.mrb[0].mxu0
        %v563 = vadd.f32 %v319, %v562
        %v564 = vpop.f32.mrb[0].mxu0
        %565 = vmatprep.mubr.f32.mxu0 %v344
        %566 = vmatmul.mubr.f32.gmra.mrb[0].mxu0 %v214
        %v567 = vpop.f32.mrb[0].mxu0
        %v568 = vadd.f32 %v319, %v567
        %v569 = vpop.f32.mrb[0].mxu0
        %570 = vmatprep.mubr.f32.mxu0 %v347
        %571 = vmatmul.mubr.f32.gmra.mrb[0].mxu0 %v216
        %v572 = vpop.f32.mrb[0].mxu0
        %v573 = vadd.f32 %v319, %v572
        %v574 = vpop.f32.mrb[0].mxu0
        %575 = vmatprep.mubr.f32.mxu0 %v350
        %576 = vmatmul.mubr.f32.gmra.mrb[0].mxu0 %v218
        %v577 = vpop.f32.mrb[0].mxu0
        %v578 = vadd.f32 %v319, %v577
        %v579 = vpop.f32.mrb[0].mxu0
        %580 = vmatprep.mubr.f32.mxu0 %v353
        %581 = vmatmul.mubr.f32.gmra.mrb[0].mxu0 %v220
        %v582 = vpop.f32.mrb[0].mxu0
        %v583 = vadd.f32 %v319, %v582
        %v584 = vpop.f32.mrb[0].mxu0
        %585 = vmatprep.mubr.f32.mxu0 %v356
        %586 = vmatmul.mubr.f32.gmra.mrb[0].mxu0 %v222
        %v587 = vpop.f32.mrb[0].mxu0
        %v588 = vadd.f32 %v319, %v587
        %v589 = vpop.f32.mrb[0].mxu0
        %590 = vmatprep.mubr.f32.mxu0 %v359
        %591 = vmatmul.mubr.f32.gmra.mrb[0].mxu0 %v224
        %v592 = vpop.f32.mrb[0].mxu0
        %v593 = vadd.f32 %v319, %v592
        %v594 = vpop.f32.mrb[0].mxu0
        %595 = vmatprep.mubr.f32.mxu0 %v362
        %596 = vmatmul.mubr.f32.gmra.mrb[0].mxu0 %v226
        %v597 = vpop.f32.mrb[0].mxu0
        %v598 = vadd.f32 %v319, %v597
        %v599 = vpop.f32.mrb[0].mxu0
        %600 = vmatprep.mubr.f32.mxu0 %v365
        %601 = vmatmul.mubr.f32.gmra.mrb[0].mxu0 %v228
        %v602 = vpop.f32.mrb[0].mxu0
        %v603 = vadd.f32 %v319, %v602
        %v604 = vpop.f32.mrb[0].mxu0
        %605 = vmatprep.mubr.f32.mxu0 %v368
        %606 = vmatmul.mubr.f32.gmra.mrb[0].mxu0 %v230
        %v607 = vpop.f32.mrb[0].mxu0
        %v608 = vadd.f32 %v319, %v607
        %v609 = vpop.f32.mrb[0].mxu0
        %610 = vmatprep.mubr.f32.mxu0 %v371
        %611 = vmatmul.mubr.f32.gmra.mrb[0].mxu0 %v232
        %v612 = vpop.f32.mrb[0].mxu0
        %v613 = vadd.f32 %v319, %v612
        %v614 = vpop.f32.mrb[0].mxu0
        %615 = vmatprep.mubr.f32.mxu0 %v374
        %616 = vmatmul.mubr.f32.gmra.mrb[0].mxu0 %v234
        %v617 = vpop.f32.mrb[0].mxu0
        %v618 = vadd.f32 %v319, %v617
        %v619 = vpop.f32.mrb[0].mxu0
        %620 = vmatprep.mubr.f32.mxu0 %v377
        %621 = vmatmul.mubr.f32.gmra.mrb[0].mxu0 %v236
        %v622 = vpop.f32.mrb[0].mxu0
        %v623 = vadd.f32 %v319, %v622
        %v624 = vpop.f32.mrb[0].mxu0
        %625 = vmatprep.mubr.f32.mxu0 %v380
        %626 = vmatmul.mubr.f32.gmra.mrb[0].mxu0 %v238
        %v627 = vpop.f32.mrb[0].mxu0
        %v628 = vadd.f32 %v319, %v627
        %v629 = vpop.f32.mrb[0].mxu0
        %630 = vmatprep.mubr.f32.mxu0 %v383
        %631 = vmatmul.mubr.f32.gmra.mrb[0].mxu0 %v240
        %v632 = vpop.f32.mrb[0].mxu0
        %v633 = vadd.f32 %v319, %v632
        %v634 = vpop.f32.mrb[0].mxu0
        %635 = vmatprep.mubr.f32.mxu0 %v386
        %636 = vmatmul.mubr.f32.gmra.mrb[0].mxu0 %v242
        %v637 = vpop.f32.mrb[0].mxu0
        %v638 = vadd.f32 %v319, %v637
        %v639 = vpop.f32.mrb[0].mxu0
        %640 = vmatprep.mubr.f32.mxu0 %v389
        %641 = vmatmul.mubr.f32.gmra.mrb[0].mxu0 %v244
        %v642 = vpop.f32.mrb[0].mxu0
        %v643 = vadd.f32 %v319, %v642
        %v644 = vpop.f32.mrb[0].mxu0
        %645 = vmatprep.mubr.f32.mxu0 %v392
        %646 = vmatmul.mubr.f32.gmra.mrb[0].mxu0 %v246
        %v647 = vpop.f32.mrb[0].mxu0
        %v648 = vadd.f32 %v319, %v647
        %v649 = vpop.f32.mrb[0].mxu0
        %650 = vmatprep.mubr.f32.mxu0 %v395
        %651 = vmatmul.mubr.f32.gmra.mrb[0].mxu0 %v248
        %v652 = vpop.f32.mrb[0].mxu0
        %v653 = vadd.f32 %v319, %v652
        %v654 = vpop.f32.mrb[0].mxu0
        %655 = vmatprep.mubr.f32.mxu0 %v398
        %656 = vmatmul.mubr.f32.gmra.mrb[0].mxu0 %v250
        %v657 = vpop.f32.mrb[0].mxu0
        %v658 = vadd.f32 %v319, %v657
        %v659 = vpop.f32.mrb[0].mxu0
        %660 = vmatprep.mubr.f32.mxu0 %v401
        %661 = vmatmul.mubr.f32.gmra.mrb[0].mxu0 %v252
        %v662 = vpop.f32.mrb[0].mxu0
        %v663 = vadd.f32 %v319, %v662
        %v664 = vpop.f32.mrb[0].mxu0
        %665 = vmatprep.mubr.f32.mxu0 %v404
        %666 = vmatmul.mubr.f32.gmra.mrb[0].mxu0 %v254
        %v667 = vpop.f32.mrb[0].mxu0
        %v668 = vadd.f32 %v319, %v667
        %v669 = vpop.f32.mrb[0].mxu0
        %670 = vmatprep.mubr.f32.mxu0 %v407
        %671 = vmatmul.mubr.f32.gmra.mrb[0].mxu0 %v256
        %v672 = vpop.f32.mrb[0].mxu0
        %v673 = vadd.f32 %v319, %v672
        %v674 = vpop.f32.mrb[0].mxu0
        %675 = vmatprep.mubr.f32.mxu0 %v410
        %676 = vmatmul.mubr.f32.gmra.mrb[0].mxu0 %v258
        %v677 = vpop.f32.mrb[0].mxu0
        %v678 = vadd.f32 %v319, %v677
        %v679 = vpop.f32.mrb[0].mxu0
        %680 = vmatprep.mubr.f32.mxu0 %v413
        %681 = vmatmul.mubr.f32.gmra.mrb[0].mxu0 %v260
        %v682 = vpop.f32.mrb[0].mxu0
        %v683 = vadd.f32 %v319, %v682
        %v684 = vpop.f32.mrb[0].mxu0
        %685 = vmatprep.mubr.f32.mxu0 %v416
        %686 = vmatmul.mubr.f32.gmra.mrb[0].mxu0 %v262
        %v687 = vpop.f32.mrb[0].mxu0
        %v688 = vadd.f32 %v319, %v687
        %v689 = vpop.f32.mrb[0].mxu0
        %690 = vmatprep.mubr.f32.mxu0 %v419
        %691 = vmatmul.mubr.f32.gmra.mrb[0].mxu0 %v264
        %v692 = vpop.f32.mrb[0].mxu0
        %v693 = vadd.f32 %v319, %v692
        %v694 = vpop.f32.mrb[0].mxu0
        %695 = vmatprep.mubr.f32.mxu0 %v422
        %696 = vmatmul.mubr.f32.gmra.mrb[0].mxu0 %v266
        %v697 = vpop.f32.mrb[0].mxu0
        %v698 = vadd.f32 %v319, %v697
        %v699 = vpop.f32.mrb[0].mxu0
        %700 = vmatprep.mubr.f32.mxu0 %v425
        %701 = vmatmul.mubr.f32.gmra.mrb[0].mxu0 %v268
        %v702 = vpop.f32.mrb[0].mxu0
        %v703 = vadd.f32 %v319, %v702
        %v704 = vpop.f32.mrb[0].mxu0
        %705 = vmatprep.mubr.f32.mxu0 %v428
        %706 = vmatmul.mubr.f32.gmra.mrb[0].mxu0 %v270
        %v707 = vpop.f32.mrb[0].mxu0
        %v708 = vadd.f32 %v319, %v707
        %v709 = vpop.f32.mrb[0].mxu0
        %710 = vmatprep.mubr.f32.mxu0 %v431
        %711 = vmatmul.mubr.f32.gmra.mrb[0].mxu0 %v272
        %v712 = vpop.f32.mrb[0].mxu0
        %v713 = vadd.f32 %v319, %v712
        %v714 = vpop.f32.mrb[0].mxu0
        %715 = vmatprep.mubr.f32.mxu0 %v434
        %716 = vmatmul.mubr.f32.gmra.mrb[0].mxu0 %v274
        %v717 = vpop.f32.mrb[0].mxu0
        %v718 = vadd.f32 %v319, %v717
        %v719 = vpop.f32.mrb[0].mxu0
        %720 = vmatprep.mubr.f32.mxu0 %v437
        %721 = vmatmul.mubr.f32.gmra.mrb[0].mxu0 %v276
        %v722 = vpop.f32.mrb[0].mxu0
        %v723 = vadd.f32 %v319, %v722
        %v724 = vpop.f32.mrb[0].mxu0
        %725 = vmatprep.mubr.f32.mxu0 %v440
        %726 = vmatmul.mubr.f32.gmra.mrb[0].mxu0 %v278
        %v727 = vpop.f32.mrb[0].mxu0
        %v728 = vadd.f32 %v319, %v727
        %v729 = vpop.f32.mrb[0].mxu0
        %730 = vmatprep.mubr.f32.mxu0 %v443
        %731 = vmatmul.mubr.f32.gmra.mrb[0].mxu0 %v280
        %v732 = vpop.f32.mrb[0].mxu0
        %v733 = vadd.f32 %v319, %v732
        %v734 = vpop.f32.mrb[0].mxu0
        %735 = vmatprep.mubr.f32.mxu0 %v446
        %736 = vmatmul.mubr.f32.gmra.mrb[0].mxu0 %v282
        %v737 = vpop.f32.mrb[0].mxu0
        %v738 = vadd.f32 %v319, %v737
        %v739 = vpop.f32.mrb[0].mxu0
        %740 = vmatprep.mubr.f32.mxu0 %v449
        %741 = vmatmul.mubr.f32.gmra.mrb[0].mxu0 %v284
        %v742 = vpop.f32.mrb[0].mxu0
        %v743 = vadd.f32 %v319, %v742
        %v744 = vpop.f32.mrb[0].mxu0
        %745 = vmatprep.mubr.f32.mxu0 %v452
        %746 = vmatmul.mubr.f32.gmra.mrb[0].mxu0 %v286
        %v747 = vpop.f32.mrb[0].mxu0
        %v748 = vadd.f32 %v319, %v747
        %v749 = vpop.f32.mrb[0].mxu0
        %750 = vmatprep.mubr.f32.mxu0 %v455
        %751 = vmatmul.mubr.f32.gmra.mrb[0].mxu0 %v288
        %v752 = vpop.f32.mrb[0].mxu0
        %v753 = vadd.f32 %v319, %v752
        %v754 = vpop.f32.mrb[0].mxu0
        %755 = vmatprep.mubr.f32.mxu0 %v458
        %756 = vmatmul.mubr.f32.gmra.mrb[0].mxu0 %v290
        %v757 = vpop.f32.mrb[0].mxu0
        %v758 = vadd.f32 %v319, %v757
        %v759 = vpop.f32.mrb[0].mxu0
        %760 = vmatprep.mubr.f32.mxu0 %v461
        %761 = vmatmul.mubr.f32.gmra.mrb[0].mxu0 %v292
        %v762 = vpop.f32.mrb[0].mxu0
        %v763 = vadd.f32 %v319, %v762
        %v764 = vpop.f32.mrb[0].mxu0
        %765 = vmatprep.mubr.f32.mxu0 %v464
        %766 = vmatmul.mubr.f32.gmra.mrb[0].mxu0 %v294
        %v767 = vpop.f32.mrb[0].mxu0
        %v768 = vadd.f32 %v319, %v767
        %v769 = vpop.f32.mrb[0].mxu0
        %770 = vdwg.mxu0
        %v771 = vmax.f32 %v533, 0.0
        %v772 = vmax.f32 %v538, 0.0
        %v773 = vmax.f32 %v543, 0.0
        %v774 = vmax.f32 %v548, 0.0
        %v775 = vmax.f32 %v553, 0.0
        %v776 = vmax.f32 %v558, 0.0
        %v777 = vmax.f32 %v563, 0.0
        %v778 = vmax.f32 %v568, 0.0
        %v779 = vmax.f32 %v573, 0.0
        %v780 = vmax.f32 %v578, 0.0
        %v781 = vmax.f32 %v583, 0.0
        %v782 = vmax.f32 %v588, 0.0
        %v783 = vmax.f32 %v593, 0.0
        %v784 = vmax.f32 %v598, 0.0
        %v785 = vmax.f32 %v603, 0.0
        %v786 = vmax.f32 %v608, 0.0
        %v787 = vmax.f32 %v613, 0.0
        %v788 = vmax.f32 %v618, 0.0
        %v789 = vmax.f32 %v623, 0.0
        %v790 = vmax.f32 %v628, 0.0
        %v791 = vmax.f32 %v633, 0.0
        %v792 = vmax.f32 %v638, 0.0
        %v793 = vmax.f32 %v643, 0.0
        %v794 = vmax.f32 %v648, 0.0
        %v795 = vmax.f32 %v653, 0.0
        %v796 = vmax.f32 %v658, 0.0
        %v797 = vmax.f32 %v663, 0.0
        %v798 = vmax.f32 %v668, 0.0
        %v799 = vmax.f32 %v673, 0.0
        %v800 = vmax.f32 %v678, 0.0
        %v801 = vmax.f32 %v683, 0.0
        %v802 = vmax.f32 %v688, 0.0
        %v803 = vmax.f32 %v693, 0.0
        %v804 = vmax.f32 %v698, 0.0
        %v805 = vmax.f32 %v703, 0.0
        %v806 = vmax.f32 %v708, 0.0
        %v807 = vmax.f32 %v713, 0.0
        %v808 = vmax.f32 %v718, 0.0
        %v809 = vmax.f32 %v723, 0.0
        %v810 = vmax.f32 %v728, 0.0
        %v811 = vmax.f32 %v733, 0.0
        %v812 = vmax.f32 %v738, 0.0
        %v813 = vmax.f32 %v743, 0.0
        %v814 = vmax.f32 %v748, 0.0
        %v815 = vmax.f32 %v753, 0.0
        %v816 = vmax.f32 %v758, 0.0
        %v817 = vmax.f32 %v763, 0.0
        %v818 = vmax.f32 %v768, 0.0
        %vm819 = vcmask 64512
        %820 = vst.msk [vmem:[%s177] sm:$0xff] %vm819, %v771
        %821 = vst.msk [vmem:[%s177 + $0x8] sm:$0xff] %vm819, %v772
        %822 = vst.msk [vmem:[%s177 + $0x10] sm:$0xff] %vm819, %v773
        %823 = vst.msk [vmem:[%s177 + $0x18] sm:$0xff] %vm819, %v774
        %824 = vst.msk [vmem:[%s177 + $0x20] sm:$0xff] %vm819, %v775
        %825 = vst.msk [vmem:[%s177 + $0x28] sm:$0xff] %vm819, %v776
        %826 = vst.msk [vmem:[%s177 + $0x30] sm:$0xff] %vm819, %v777
        %827 = vst.msk [vmem:[%s177 + $0x38] sm:$0xff] %vm819, %v778
        %828 = vst.msk [vmem:[%s177 + $0x40] sm:$0xff] %vm819, %v779
        %829 = vst.msk [vmem:[%s177 + $0x48] sm:$0xff] %vm819, %v780
        %830 = vst.msk [vmem:[%s177 + $0x50] sm:$0xff] %vm819, %v781
        %831 = vst.msk [vmem:[%s177 + $0x58] sm:$0xff] %vm819, %v782
        %832 = vst.msk [vmem:[%s177 + $0x60] sm:$0xff] %vm819, %v783
        %833 = vst.msk [vmem:[%s177 + $0x68] sm:$0xff] %vm819, %v784
        %834 = vst.msk [vmem:[%s177 + $0x70] sm:$0xff] %vm819, %v785
        %835 = vst.msk [vmem:[%s177 + $0x78] sm:$0xff] %vm819, %v786
        %836 = vst.msk [vmem:[%s177 + $0x80] sm:$0xff] %vm819, %v787
        %837 = vst.msk [vmem:[%s177 + $0x88] sm:$0xff] %vm819, %v788
        %838 = vst.msk [vmem:[%s177 + $0x90] sm:$0xff] %vm819, %v789
        %839 = vst.msk [vmem:[%s177 + $0x98] sm:$0xff] %vm819, %v790
        %840 = vst.msk [vmem:[%s177 + $0xa0] sm:$0xff] %vm819, %v791
        %841 = vst.msk [vmem:[%s177 + $0xa8] sm:$0xff] %vm819, %v792
        %842 = vst.msk [vmem:[%s177 + $0xb0] sm:$0xff] %vm819, %v793
        %843 = vst.msk [vmem:[%s177 + $0xb8] sm:$0xff] %vm819, %v794
        %844 = vst.msk [vmem:[%s177 + $0xc0] sm:$0xff] %vm819, %v795
        %845 = vst.msk [vmem:[%s177 + $0xc8] sm:$0xff] %vm819, %v796
        %846 = vst.msk [vmem:[%s177 + $0xd0] sm:$0xff] %vm819, %v797
        %847 = vst.msk [vmem:[%s177 + $0xd8] sm:$0xff] %vm819, %v798
        %848 = vst.msk [vmem:[%s177 + $0xe0] sm:$0xff] %vm819, %v799
        %849 = vst.msk [vmem:[%s177 + $0xe8] sm:$0xff] %vm819, %v800
        %850 = vst.msk [vmem:[%s177 + $0xf0] sm:$0xff] %vm819, %v801
        %851 = vst.msk [vmem:[%s177 + $0xf8] sm:$0xff] %vm819, %v802
        %852 = vst.msk [vmem:[%s177 + $0x100] sm:$0xff] %vm819, %v803
        %853 = vst.msk [vmem:[%s177 + $0x108] sm:$0xff] %vm819, %v804
        %854 = vst.msk [vmem:[%s177 + $0x110] sm:$0xff] %vm819, %v805
        %855 = vst.msk [vmem:[%s177 + $0x118] sm:$0xff] %vm819, %v806
        %856 = vst.msk [vmem:[%s177 + $0x120] sm:$0xff] %vm819, %v807
        %857 = vst.msk [vmem:[%s177 + $0x128] sm:$0xff] %vm819, %v808
        %858 = vst.msk [vmem:[%s177 + $0x130] sm:$0xff] %vm819, %v809
        %859 = vst.msk [vmem:[%s177 + $0x138] sm:$0xff] %vm819, %v810
        %860 = vst.msk [vmem:[%s177 + $0x140] sm:$0xff] %vm819, %v811
        %861 = vst.msk [vmem:[%s177 + $0x148] sm:$0xff] %vm819, %v812
        %862 = vst.msk [vmem:[%s177 + $0x150] sm:$0xff] %vm819, %v813
        %863 = vst.msk [vmem:[%s177 + $0x158] sm:$0xff] %vm819, %v814
        %864 = vst.msk [vmem:[%s177 + $0x160] sm:$0xff] %vm819, %v815
        %865 = vst.msk [vmem:[%s177 + $0x168] sm:$0xff] %vm819, %v816
        %866 = vst.msk [vmem:[%s177 + $0x170] sm:$0xff] %vm819, %v817
        %867 = vst.msk [vmem:[%s177 + $0x178] sm:$0xff] %vm819, %v818
        %s868 = sand.u32 %s90, 1
        %s869 = sand.u32 %s90, 1
        %s870 = smul.addr %s869, 384
        %s871 = scalar_lea.vmem [#allocation2], %s870
        // Predicated region
        $region33: #{cnn_rnn_forward.6} parent=31 // pred_check
          %p872 = pneg %p100
        $region34: #{cnn_rnn_forward.6} parent=31 // pred_check_branch
          %874 = sbr.rel (%p872) target = $region36
        $region35: #{cnn_rnn_forward.6} parent=31 // pred_region
          %s875 = smul.u32 48, %s14
          %s876 = ssub.s32 81, %s875
          %p877 = scmp.lt.s32.totalorder %s876, 48
          %s878 = scalar_select %p877, %s876, 48
          %s879 = smul.u32 128, %s878
          %p880 = scmp.ne.s32.totalorder 0, %s879
          %s881 = smul.addr %s875, 8
          %s882 = scalar_lea.vmem %s3, %s881
          // Predicated region
          $region37: #{cnn_rnn_forward.6} parent=35 // pred_check
            %p883 = pneg %p880
          $region38: #{cnn_rnn_forward.6} parent=35 // pred_check_branch
            %885 = sbr.rel (%p883) target = $region40
          $region39: #{cnn_rnn_forward.6} parent=35 // pred_region
            // Predicated region
            $region41: #{cnn_rnn_forward.6} parent=39 // pred_check
              _
            $region42: #{cnn_rnn_forward.6} parent=39 // pred_check_branch
              %887 = sbr.rel (0) target = $region44
            $region43: #{cnn_rnn_forward.6} parent=39 // pred_region
              // Predicated region
              $region63: #{cnn_rnn_forward.6} parent=43 // pred_check
                _
              $region64: #{cnn_rnn_forward.6} parent=43 // pred_check_branch
                %1031 = sbr.rel (0) target = $region66
              $region65: #{cnn_rnn_forward.6} parent=43 // pred_region
                %s1032 = sdiv.u32.pop %s878, 48
                %s1033 = srem.u32.pop %s878, 48
                // While loop
                $region67: #{cnn_rnn_forward.6} parent=65 // loop_pre_header
                  _
                $region68: #{cnn_rnn_forward.6} parent=65 // loop_header
                  %s1035 = sphi 0, %s1037
                  %p1036 = scmp.ge.s32.totalorder %s1035, %s1032
                  %s1040 = sphi 0, %s1141
                  %s1041 = sphi %s871, %s1144
                  %s1042 = sphi %s882, %s1145
                $region69: #{cnn_rnn_forward.6} parent=65 // loop_header_branch
                  %1039 = sbr.rel (%p1036) target = $region73
                $region70: #{cnn_rnn_forward.6} parent=65 // loop_body
                  %v1043 = vld [vmem:[%s1041] sm:$0xff]
                  %1044 = vst [vmem:[%s1042] sm:$0xff] %v1043
                  %v1045 = vld [vmem:[%s1041 + $0x8] sm:$0xff]
                  %1046 = vst [vmem:[%s1042 + $0x8] sm:$0xff] %v1045
                  %v1047 = vld [vmem:[%s1041 + $0x10] sm:$0xff]
                  %1048 = vst [vmem:[%s1042 + $0x10] sm:$0xff] %v1047
                  %v1049 = vld [vmem:[%s1041 + $0x18] sm:$0xff]
                  %1050 = vst [vmem:[%s1042 + $0x18] sm:$0xff] %v1049
                  %v1051 = vld [vmem:[%s1041 + $0x20] sm:$0xff]
                  %1052 = vst [vmem:[%s1042 + $0x20] sm:$0xff] %v1051
                  %v1053 = vld [vmem:[%s1041 + $0x28] sm:$0xff]
                  %1054 = vst [vmem:[%s1042 + $0x28] sm:$0xff] %v1053
                  %v1055 = vld [vmem:[%s1041 + $0x30] sm:$0xff]
                  %1056 = vst [vmem:[%s1042 + $0x30] sm:$0xff] %v1055
                  %v1057 = vld [vmem:[%s1041 + $0x38] sm:$0xff]
                  %1058 = vst [vmem:[%s1042 + $0x38] sm:$0xff] %v1057
                  %v1059 = vld [vmem:[%s1041 + $0x40] sm:$0xff]
                  %1060 = vst [vmem:[%s1042 + $0x40] sm:$0xff] %v1059
                  %v1061 = vld [vmem:[%s1041 + $0x48] sm:$0xff]
                  %1062 = vst [vmem:[%s1042 + $0x48] sm:$0xff] %v1061
                  %v1063 = vld [vmem:[%s1041 + $0x50] sm:$0xff]
                  %1064 = vst [vmem:[%s1042 + $0x50] sm:$0xff] %v1063
                  %v1065 = vld [vmem:[%s1041 + $0x58] sm:$0xff]
                  %1066 = vst [vmem:[%s1042 + $0x58] sm:$0xff] %v1065
                  %v1067 = vld [vmem:[%s1041 + $0x60] sm:$0xff]
                  %1068 = vst [vmem:[%s1042 + $0x60] sm:$0xff] %v1067
                  %v1069 = vld [vmem:[%s1041 + $0x68] sm:$0xff]
                  %1070 = vst [vmem:[%s1042 + $0x68] sm:$0xff] %v1069
                  %v1071 = vld [vmem:[%s1041 + $0x70] sm:$0xff]
                  %1072 = vst [vmem:[%s1042 + $0x70] sm:$0xff] %v1071
                  %v1073 = vld [vmem:[%s1041 + $0x78] sm:$0xff]
                  %1074 = vst [vmem:[%s1042 + $0x78] sm:$0xff] %v1073
                  %v1075 = vld [vmem:[%s1041 + $0x80] sm:$0xff]
                  %1076 = vst [vmem:[%s1042 + $0x80] sm:$0xff] %v1075
                  %v1077 = vld [vmem:[%s1041 + $0x88] sm:$0xff]
                  %1078 = vst [vmem:[%s1042 + $0x88] sm:$0xff] %v1077
                  %v1079 = vld [vmem:[%s1041 + $0x90] sm:$0xff]
                  %1080 = vst [vmem:[%s1042 + $0x90] sm:$0xff] %v1079
                  %v1081 = vld [vmem:[%s1041 + $0x98] sm:$0xff]
                  %1082 = vst [vmem:[%s1042 + $0x98] sm:$0xff] %v1081
                  %v1083 = vld [vmem:[%s1041 + $0xa0] sm:$0xff]
                  %1084 = vst [vmem:[%s1042 + $0xa0] sm:$0xff] %v1083
                  %v1085 = vld [vmem:[%s1041 + $0xa8] sm:$0xff]
                  %1086 = vst [vmem:[%s1042 + $0xa8] sm:$0xff] %v1085
                  %v1087 = vld [vmem:[%s1041 + $0xb0] sm:$0xff]
                  %1088 = vst [vmem:[%s1042 + $0xb0] sm:$0xff] %v1087
                  %v1089 = vld [vmem:[%s1041 + $0xb8] sm:$0xff]
                  %1090 = vst [vmem:[%s1042 + $0xb8] sm:$0xff] %v1089
                  %v1091 = vld [vmem:[%s1041 + $0xc0] sm:$0xff]
                  %1092 = vst [vmem:[%s1042 + $0xc0] sm:$0xff] %v1091
                  %v1093 = vld [vmem:[%s1041 + $0xc8] sm:$0xff]
                  %1094 = vst [vmem:[%s1042 + $0xc8] sm:$0xff] %v1093
                  %v1095 = vld [vmem:[%s1041 + $0xd0] sm:$0xff]
                  %1096 = vst [vmem:[%s1042 + $0xd0] sm:$0xff] %v1095
                  %v1097 = vld [vmem:[%s1041 + $0xd8] sm:$0xff]
                  %1098 = vst [vmem:[%s1042 + $0xd8] sm:$0xff] %v1097
                  %v1099 = vld [vmem:[%s1041 + $0xe0] sm:$0xff]
                  %1100 = vst [vmem:[%s1042 + $0xe0] sm:$0xff] %v1099
                  %v1101 = vld [vmem:[%s1041 + $0xe8] sm:$0xff]
                  %1102 = vst [vmem:[%s1042 + $0xe8] sm:$0xff] %v1101
                  %v1103 = vld [vmem:[%s1041 + $0xf0] sm:$0xff]
                  %1104 = vst [vmem:[%s1042 + $0xf0] sm:$0xff] %v1103
                  %v1105 = vld [vmem:[%s1041 + $0xf8] sm:$0xff]
                  %1106 = vst [vmem:[%s1042 + $0xf8] sm:$0xff] %v1105
                  %v1107 = vld [vmem:[%s1041 + $0x100] sm:$0xff]
                  %1108 = vst [vmem:[%s1042 + $0x100] sm:$0xff] %v1107
                  %v1109 = vld [vmem:[%s1041 + $0x108] sm:$0xff]
                  %1110 = vst [vmem:[%s1042 + $0x108] sm:$0xff] %v1109
                  %v1111 = vld [vmem:[%s1041 + $0x110] sm:$0xff]
                  %1112 = vst [vmem:[%s1042 + $0x110] sm:$0xff] %v1111
                  %v1113 = vld [vmem:[%s1041 + $0x118] sm:$0xff]
                  %1114 = vst [vmem:[%s1042 + $0x118] sm:$0xff] %v1113
                  %v1115 = vld [vmem:[%s1041 + $0x120] sm:$0xff]
                  %1116 = vst [vmem:[%s1042 + $0x120] sm:$0xff] %v1115
                  %v1117 = vld [vmem:[%s1041 + $0x128] sm:$0xff]
                  %1118 = vst [vmem:[%s1042 + $0x128] sm:$0xff] %v1117
                  %v1119 = vld [vmem:[%s1041 + $0x130] sm:$0xff]
                  %1120 = vst [vmem:[%s1042 + $0x130] sm:$0xff] %v1119
                  %v1121 = vld [vmem:[%s1041 + $0x138] sm:$0xff]
                  %1122 = vst [vmem:[%s1042 + $0x138] sm:$0xff] %v1121
                  %v1123 = vld [vmem:[%s1041 + $0x140] sm:$0xff]
                  %1124 = vst [vmem:[%s1042 + $0x140] sm:$0xff] %v1123
                  %v1125 = vld [vmem:[%s1041 + $0x148] sm:$0xff]
                  %1126 = vst [vmem:[%s1042 + $0x148] sm:$0xff] %v1125
                  %v1127 = vld [vmem:[%s1041 + $0x150] sm:$0xff]
                  %1128 = vst [vmem:[%s1042 + $0x150] sm:$0xff] %v1127
                  %v1129 = vld [vmem:[%s1041 + $0x158] sm:$0xff]
                  %1130 = vst [vmem:[%s1042 + $0x158] sm:$0xff] %v1129
                  %v1131 = vld [vmem:[%s1041 + $0x160] sm:$0xff]
                  %1132 = vst [vmem:[%s1042 + $0x160] sm:$0xff] %v1131
                  %v1133 = vld [vmem:[%s1041 + $0x168] sm:$0xff]
                  %1134 = vst [vmem:[%s1042 + $0x168] sm:$0xff] %v1133
                  %v1135 = vld [vmem:[%s1041 + $0x170] sm:$0xff]
                  %1136 = vst [vmem:[%s1042 + $0x170] sm:$0xff] %v1135
                  %v1137 = vld [vmem:[%s1041 + $0x178] sm:$0xff]
                  %1138 = vst [vmem:[%s1042 + $0x178] sm:$0xff] %v1137
                  %s1139 = sadd.s32 1, %s1040
                  %p1140 = scmp.ge.s32.totalorder %s1139, %s1032
                  %s1141 = scalar_select %p1140, 0, %s1139
                  %s1142 = smul.u32 %s1141, 384
                  %s1143 = smul.u32 %s1141, 384
                  %s1144 = scalar_lea.vmem %s871, %s1142 [#allocation2]
                  %s1145 = scalar_lea.vmem %s882, %s1143
                $region71: #{cnn_rnn_forward.6} parent=65 // loop_footer
                  %s1037 = sadd.s32 %s1035, 1
                $region72: #{cnn_rnn_forward.6} parent=65 // loop_footer_branch
                  %1034 = sbr.rel target = $region68
                $region73: #{cnn_rnn_forward.6} parent=65 // loop_exit
                  _
                %s1146 = sdiv.u32.pop %s878, 48
                %s1147 = srem.u32.pop %s878, 48
                %s1148 = smul.u32 %s1146, 48
                %s1149 = smul.u32 8, %s1148
                %s1150 = scalar_lea.vmem %s871, %s1149 [#allocation2]
                %s1151 = smul.u32 8, %s1148
                %s1152 = scalar_lea.vmem %s882, %s1151
                // While loop
                $region74: #{cnn_rnn_forward.6} parent=65 // loop_pre_header
                  _
                $region75: #{cnn_rnn_forward.6} parent=65 // loop_header
                  %s1154 = sphi 0, %s1156
                  %p1155 = scmp.ge.s32.totalorder %s1154, %s1147
                  %s1159 = sphi 0, %s1166
                  %s1160 = sphi %s1150, %s1169
                  %s1161 = sphi %s1152, %s1170
                $region76: #{cnn_rnn_forward.6} parent=65 // loop_header_branch
                  %1158 = sbr.rel (%p1155) target = $region80
                $region77: #{cnn_rnn_forward.6} parent=65 // loop_body
                  %v1162 = vld [vmem:[%s1160] sm:$0xff]
                  %1163 = vst [vmem:[%s1161] sm:$0xff] %v1162
                  %s1164 = sadd.s32 1, %s1159
                  %p1165 = scmp.ge.s32.totalorder %s1164, %s1147
                  %s1166 = scalar_select %p1165, 0, %s1164
                  %s1167 = smul.u32 %s1166, 8
                  %s1168 = smul.u32 %s1166, 8
                  %s1169 = scalar_lea.vmem %s1150, %s1167 [#allocation2]
                  %s1170 = scalar_lea.vmem %s1152, %s1168
                $region78: #{cnn_rnn_forward.6} parent=65 // loop_footer
                  %s1156 = sadd.s32 %s1154, 1
                $region79: #{cnn_rnn_forward.6} parent=65 // loop_footer_branch
                  %1153 = sbr.rel target = $region75
                $region80: #{cnn_rnn_forward.6} parent=65 // loop_exit
                  _
              $region66: #{cnn_rnn_forward.6} parent=43 // pred_fallthru
                _
              // Predicated region
              $region81: #{cnn_rnn_forward.6} parent=43 // pred_check
                _
              $region82: #{cnn_rnn_forward.6} parent=43 // pred_check_branch
                %1172 = sbr.rel target = $region84
              $region83: #{cnn_rnn_forward.6} parent=43 // pred_region
                _
              $region84: #{cnn_rnn_forward.6} parent=43 // pred_fallthru
                _
            $region44: #{cnn_rnn_forward.6} parent=39 // pred_fallthru
              _
            // Predicated region
            $region45: #{cnn_rnn_forward.6} parent=39 // pred_check
              _
            $region46: #{cnn_rnn_forward.6} parent=39 // pred_check_branch
              %889 = sbr.rel target = $region48
            $region47: #{cnn_rnn_forward.6} parent=39 // pred_region
              %s891 = sdiv.u32.pop %s878, 48
              %s892 = srem.u32.pop %s878, 48
              // While loop
              $region49: #{cnn_rnn_forward.6} parent=47 // loop_pre_header
                _
              $region50: #{cnn_rnn_forward.6} parent=47 // loop_header
                %s894 = sphi 0, %s896
                %p895 = scmp.ge.s32.totalorder %s894, %s891
                %s899 = sphi 0, %s1000
                %s900 = sphi %s871, %s1003
                %s901 = sphi %s882, %s1004
              $region51: #{cnn_rnn_forward.6} parent=47 // loop_header_branch
                %898 = sbr.rel (%p895) target = $region55
              $region52: #{cnn_rnn_forward.6} parent=47 // loop_body
                %v902 = vld [vmem:[%s900] sm:$0xff]
                %903 = vst [vmem:[%s901] sm:$0xff] %v902
                %v904 = vld [vmem:[%s900 + $0x8] sm:$0xff]
                %905 = vst [vmem:[%s901 + $0x8] sm:$0xff] %v904
                %v906 = vld [vmem:[%s900 + $0x10] sm:$0xff]
                %907 = vst [vmem:[%s901 + $0x10] sm:$0xff] %v906
                %v908 = vld [vmem:[%s900 + $0x18] sm:$0xff]
                %909 = vst [vmem:[%s901 + $0x18] sm:$0xff] %v908
                %v910 = vld [vmem:[%s900 + $0x20] sm:$0xff]
                %911 = vst [vmem:[%s901 + $0x20] sm:$0xff] %v910
                %v912 = vld [vmem:[%s900 + $0x28] sm:$0xff]
                %913 = vst [vmem:[%s901 + $0x28] sm:$0xff] %v912
                %v914 = vld [vmem:[%s900 + $0x30] sm:$0xff]
                %915 = vst [vmem:[%s901 + $0x30] sm:$0xff] %v914
                %v916 = vld [vmem:[%s900 + $0x38] sm:$0xff]
                %917 = vst [vmem:[%s901 + $0x38] sm:$0xff] %v916
                %v918 = vld [vmem:[%s900 + $0x40] sm:$0xff]
                %919 = vst [vmem:[%s901 + $0x40] sm:$0xff] %v918
                %v920 = vld [vmem:[%s900 + $0x48] sm:$0xff]
                %921 = vst [vmem:[%s901 + $0x48] sm:$0xff] %v920
                %v922 = vld [vmem:[%s900 + $0x50] sm:$0xff]
                %923 = vst [vmem:[%s901 + $0x50] sm:$0xff] %v922
                %v924 = vld [vmem:[%s900 + $0x58] sm:$0xff]
                %925 = vst [vmem:[%s901 + $0x58] sm:$0xff] %v924
                %v926 = vld [vmem:[%s900 + $0x60] sm:$0xff]
                %927 = vst [vmem:[%s901 + $0x60] sm:$0xff] %v926
                %v928 = vld [vmem:[%s900 + $0x68] sm:$0xff]
                %929 = vst [vmem:[%s901 + $0x68] sm:$0xff] %v928
                %v930 = vld [vmem:[%s900 + $0x70] sm:$0xff]
                %931 = vst [vmem:[%s901 + $0x70] sm:$0xff] %v930
                %v932 = vld [vmem:[%s900 + $0x78] sm:$0xff]
                %933 = vst [vmem:[%s901 + $0x78] sm:$0xff] %v932
                %v934 = vld [vmem:[%s900 + $0x80] sm:$0xff]
                %935 = vst [vmem:[%s901 + $0x80] sm:$0xff] %v934
                %v936 = vld [vmem:[%s900 + $0x88] sm:$0xff]
                %937 = vst [vmem:[%s901 + $0x88] sm:$0xff] %v936
                %v938 = vld [vmem:[%s900 + $0x90] sm:$0xff]
                %939 = vst [vmem:[%s901 + $0x90] sm:$0xff] %v938
                %v940 = vld [vmem:[%s900 + $0x98] sm:$0xff]
                %941 = vst [vmem:[%s901 + $0x98] sm:$0xff] %v940
                %v942 = vld [vmem:[%s900 + $0xa0] sm:$0xff]
                %943 = vst [vmem:[%s901 + $0xa0] sm:$0xff] %v942
                %v944 = vld [vmem:[%s900 + $0xa8] sm:$0xff]
                %945 = vst [vmem:[%s901 + $0xa8] sm:$0xff] %v944
                %v946 = vld [vmem:[%s900 + $0xb0] sm:$0xff]
                %947 = vst [vmem:[%s901 + $0xb0] sm:$0xff] %v946
                %v948 = vld [vmem:[%s900 + $0xb8] sm:$0xff]
                %949 = vst [vmem:[%s901 + $0xb8] sm:$0xff] %v948
                %v950 = vld [vmem:[%s900 + $0xc0] sm:$0xff]
                %951 = vst [vmem:[%s901 + $0xc0] sm:$0xff] %v950
                %v952 = vld [vmem:[%s900 + $0xc8] sm:$0xff]
                %953 = vst [vmem:[%s901 + $0xc8] sm:$0xff] %v952
                %v954 = vld [vmem:[%s900 + $0xd0] sm:$0xff]
                %955 = vst [vmem:[%s901 + $0xd0] sm:$0xff] %v954
                %v956 = vld [vmem:[%s900 + $0xd8] sm:$0xff]
                %957 = vst [vmem:[%s901 + $0xd8] sm:$0xff] %v956
                %v958 = vld [vmem:[%s900 + $0xe0] sm:$0xff]
                %959 = vst [vmem:[%s901 + $0xe0] sm:$0xff] %v958
                %v960 = vld [vmem:[%s900 + $0xe8] sm:$0xff]
                %961 = vst [vmem:[%s901 + $0xe8] sm:$0xff] %v960
                %v962 = vld [vmem:[%s900 + $0xf0] sm:$0xff]
                %963 = vst [vmem:[%s901 + $0xf0] sm:$0xff] %v962
                %v964 = vld [vmem:[%s900 + $0xf8] sm:$0xff]
                %965 = vst [vmem:[%s901 + $0xf8] sm:$0xff] %v964
                %v966 = vld [vmem:[%s900 + $0x100] sm:$0xff]
                %967 = vst [vmem:[%s901 + $0x100] sm:$0xff] %v966
                %v968 = vld [vmem:[%s900 + $0x108] sm:$0xff]
                %969 = vst [vmem:[%s901 + $0x108] sm:$0xff] %v968
                %v970 = vld [vmem:[%s900 + $0x110] sm:$0xff]
                %971 = vst [vmem:[%s901 + $0x110] sm:$0xff] %v970
                %v972 = vld [vmem:[%s900 + $0x118] sm:$0xff]
                %973 = vst [vmem:[%s901 + $0x118] sm:$0xff] %v972
                %v974 = vld [vmem:[%s900 + $0x120] sm:$0xff]
                %975 = vst [vmem:[%s901 + $0x120] sm:$0xff] %v974
                %v976 = vld [vmem:[%s900 + $0x128] sm:$0xff]
                %977 = vst [vmem:[%s901 + $0x128] sm:$0xff] %v976
                %v978 = vld [vmem:[%s900 + $0x130] sm:$0xff]
                %979 = vst [vmem:[%s901 + $0x130] sm:$0xff] %v978
                %v980 = vld [vmem:[%s900 + $0x138] sm:$0xff]
                %981 = vst [vmem:[%s901 + $0x138] sm:$0xff] %v980
                %v982 = vld [vmem:[%s900 + $0x140] sm:$0xff]
                %983 = vst [vmem:[%s901 + $0x140] sm:$0xff] %v982
                %v984 = vld [vmem:[%s900 + $0x148] sm:$0xff]
                %985 = vst [vmem:[%s901 + $0x148] sm:$0xff] %v984
                %v986 = vld [vmem:[%s900 + $0x150] sm:$0xff]
                %987 = vst [vmem:[%s901 + $0x150] sm:$0xff] %v986
                %v988 = vld [vmem:[%s900 + $0x158] sm:$0xff]
                %989 = vst [vmem:[%s901 + $0x158] sm:$0xff] %v988
                %v990 = vld [vmem:[%s900 + $0x160] sm:$0xff]
                %991 = vst [vmem:[%s901 + $0x160] sm:$0xff] %v990
                %v992 = vld [vmem:[%s900 + $0x168] sm:$0xff]
                %993 = vst [vmem:[%s901 + $0x168] sm:$0xff] %v992
                %v994 = vld [vmem:[%s900 + $0x170] sm:$0xff]
                %995 = vst [vmem:[%s901 + $0x170] sm:$0xff] %v994
                %v996 = vld [vmem:[%s900 + $0x178] sm:$0xff]
                %997 = vst [vmem:[%s901 + $0x178] sm:$0xff] %v996
                %s998 = sadd.s32 1, %s899
                %p999 = scmp.ge.s32.totalorder %s998, %s891
                %s1000 = scalar_select %p999, 0, %s998
                %s1001 = smul.u32 %s1000, 384
                %s1002 = smul.u32 %s1000, 384
                %s1003 = scalar_lea.vmem %s871, %s1001 [#allocation2]
                %s1004 = scalar_lea.vmem %s882, %s1002
              $region53: #{cnn_rnn_forward.6} parent=47 // loop_footer
                %s896 = sadd.s32 %s894, 1
              $region54: #{cnn_rnn_forward.6} parent=47 // loop_footer_branch
                %893 = sbr.rel target = $region50
              $region55: #{cnn_rnn_forward.6} parent=47 // loop_exit
                _
              %s1005 = sdiv.u32.pop %s878, 48
              %s1006 = srem.u32.pop %s878, 48
              %s1007 = smul.u32 %s1005, 48
              %s1008 = smul.u32 8, %s1007
              %s1009 = scalar_lea.vmem %s871, %s1008 [#allocation2]
              %s1010 = smul.u32 8, %s1007
              %s1011 = scalar_lea.vmem %s882, %s1010
              // While loop
              $region56: #{cnn_rnn_forward.6} parent=47 // loop_pre_header
                _
              $region57: #{cnn_rnn_forward.6} parent=47 // loop_header
                %s1013 = sphi 0, %s1015
                %p1014 = scmp.ge.s32.totalorder %s1013, %s1006
                %s1018 = sphi 0, %s1025
                %s1019 = sphi %s1009, %s1028
                %s1020 = sphi %s1011, %s1029
              $region58: #{cnn_rnn_forward.6} parent=47 // loop_header_branch
                %1017 = sbr.rel (%p1014) target = $region62
              $region59: #{cnn_rnn_forward.6} parent=47 // loop_body
                %v1021 = vld [vmem:[%s1019] sm:$0xff]
                %1022 = vst [vmem:[%s1020] sm:$0xff] %v1021
                %s1023 = sadd.s32 1, %s1018
                %p1024 = scmp.ge.s32.totalorder %s1023, %s1006
                %s1025 = scalar_select %p1024, 0, %s1023
                %s1026 = smul.u32 %s1025, 8
                %s1027 = smul.u32 %s1025, 8
                %s1028 = scalar_lea.vmem %s1009, %s1026 [#allocation2]
                %s1029 = scalar_lea.vmem %s1011, %s1027
              $region60: #{cnn_rnn_forward.6} parent=47 // loop_footer
                %s1015 = sadd.s32 %s1013, 1
              $region61: #{cnn_rnn_forward.6} parent=47 // loop_footer_branch
                %1012 = sbr.rel target = $region57
              $region62: #{cnn_rnn_forward.6} parent=47 // loop_exit
                _
            $region48: #{cnn_rnn_forward.6} parent=39 // pred_fallthru
              _
          $region40: #{cnn_rnn_forward.6} parent=35 // pred_fallthru
            _
          %1173 = vnop
        $region36: #{cnn_rnn_forward.6} parent=31 // pred_fallthru
          _
      $region32: #{cnn_rnn_forward.6} parent=5 // pred_fallthru
        _
      %p1174 = scmp.le.s32.totalorder 2, %s9
      // Predicated region
      $region85: #{cnn_rnn_forward.6} parent=5 // pred_check
        %p1175 = pneg %p1174
      $region86: #{cnn_rnn_forward.6} parent=5 // pred_check_branch
        %1177 = sbr.rel (%p1175) target = $region88
      $region87: #{cnn_rnn_forward.6} parent=5 // pred_region
        %s1178 = ssub.s32 %s9, 2
        // Predicated region
        $region89: #{cnn_rnn_forward.6} parent=87 // pred_check
          %p1179 = pneg %p106
        $region90: #{cnn_rnn_forward.6} parent=87 // pred_check_branch
          %1181 = sbr.rel (%p1179) target = $region92
        $region91: #{cnn_rnn_forward.6} parent=87 // pred_region
          %s1182 = sand.u32 %s91, 1
          %s1183 = sand.u32 %s91, 1
          %s1184 = smul.addr %s1183, 384
          %s1185 = scalar_lea.vmem [#allocation2], %s1184
        $region92: #{cnn_rnn_forward.6} parent=87 // pred_fallthru
          _
      $region88: #{cnn_rnn_forward.6} parent=5 // pred_fallthru
        _
    $region6: #{cnn_rnn_forward.6} parent=1 // loop_footer
      %s13 = sadd.s32 1, %s9
    $region7: #{cnn_rnn_forward.6} parent=1 // loop_footer_branch
      %8 = sbr.rel target = $region3
    $region8: #{cnn_rnn_forward.6} parent=1 // loop_exit
      _

// kernel: cnn_rnn_forward.7
$region0: #{cnn_rnn_forward.7}
  #allocation0 [shape = 'u32[]', space=smem, size = 0x4, offset = 0x4, fixed_abs, tag = 'smem constant byte address 0x4 - core index']
  #allocation1 [shape = 'u32[144,128]{1,0:T(1,128)}', space=vmem, size = 0x12000, scoped, tag = 'internal scratch']
  %s0 = inlined_call_operand.vmem [shape: f32[648,72], index: 0, kind: input, shape index: {}]
  %s1 = inlined_call_operand.vmem [shape: f32[72,8], index: 1, kind: input, shape index: {}]
  %s2 = inlined_call_operand.vmem [shape: f32[1,8], index: 2, kind: input, shape index: {}]
  %s3 = inlined_call_operand.vmem [shape: f32[648,8], index: 3, kind: output, shape index: {}]
  %s4 = sld [smem:[#allocation0]]
  $region93: #{cnn_rnn_forward.7} parent=0
    _
  %s6 = ssub.s32 1, %s4
  %s7 = scalar_select 0, %s6, %s4
  $region1: #{cnn_rnn_forward.7} parent=0
    #allocation2 [shape = 'u8[393216]{0}', space=vmem, size = 0x60000, scoped, tag = 'output window, operand 0']
    loop: start=0, step=1, limit=4
    $region2: #{cnn_rnn_forward.7} parent=1 // loop_pre_header
      _
    $region3: #{cnn_rnn_forward.7} parent=1 // loop_header
      %s9 = sphi 0, %s13
      %p10 = scmp.ge.s32.totalorder %s9, 4
      %s19 = sphi 0, %s21
      %s22 = sphi 0, %s19
      %s23 = sphi 0, %s22
      %s39 = sphi 0, %s23
      %s43 = sphi 0, %s43
      %s45 = sphi 0, %s43
      %s46 = sphi 0, %s45
      %s60 = sphi 0, %s46
      %s64 = sphi 0, %s64
      %s66 = sphi 0, %s64
      %s67 = sphi 0, %s66
      %s81 = sphi 0, %s67
      %s87 = sphi 0, %s89
      %s90 = sphi 0, %s87
      %s91 = sphi 0, %s90
      %s107 = sphi 0, %s91
    $region4: #{cnn_rnn_forward.7} parent=1 // loop_header_branch
      %12 = sbr.rel (%p10) target = $region8
    $region5: #{cnn_rnn_forward.7} parent=1 // loop_body
      %s14 = ssub.s32 %s9, 1
      %s15 = ssub.s32 %s9, 2
      %s16 = sadd.s32 %s9, 1
      %s17 = ssub.s32 %s9, %s16
      %p18 = scmp.eq.s32.totalorder %s17, 0
      %s20 = sadd.s32 %s19, 1
      %s21 = scalar_select %p18, %s19, %s20
      %p24 = pneg %p18
      %p25 = scmp.eq.s32.totalorder %s9, 1
      %p26 = por %p24, %p25
      %p27 = scmp.ne.s32.totalorder %s19, %s22
      %p28 = scmp.eq.s32.totalorder %s9, 0
      %p29 = por %p27, %p28
      %p30 = scmp.ne.s32.totalorder %s19, %s22
      %p31 = scmp.eq.s32.totalorder %s14, 1
      %p32 = por %p30, %p31
      %p33 = scmp.ne.s32.totalorder %s22, %s23
      %p34 = scmp.eq.s32.totalorder %s14, 0
      %p35 = por %p33, %p34
      %p36 = scmp.ne.s32.totalorder %s22, %s23
      %p37 = scmp.eq.s32.totalorder %s15, 1
      %p38 = por %p36, %p37
      %p40 = scmp.ne.s32.totalorder %s23, %s39
      %p41 = scmp.eq.s32.totalorder %s15, 0
      %p42 = por %p40, %p41
      %s44 = sadd.s32 %s43, 1
      %p47 = scmp.eq.s32.totalorder %s9, 1
      %p48 = scmp.ne.s32.totalorder %s43, %s45
      %p49 = scmp.eq.s32.totalorder %s9, 0
      %p50 = por %p48, %p49
      %p51 = scmp.ne.s32.totalorder %s43, %s45
      %p52 = scmp.eq.s32.totalorder %s14, 1
      %p53 = por %p51, %p52
      %p54 = scmp.ne.s32.totalorder %s45, %s46
      %p55 = scmp.eq.s32.totalorder %s14, 0
      %p56 = por %p54, %p55
      %p57 = scmp.ne.s32.totalorder %s45, %s46
      %p58 = scmp.eq.s32.totalorder %s15, 1
      %p59 = por %p57, %p58
      %p61 = scmp.ne.s32.totalorder %s46, %s60
      %p62 = scmp.eq.s32.totalorder %s15, 0
      %p63 = por %p61, %p62
      %s65 = sadd.s32 %s64, 1
      %p68 = scmp.eq.s32.totalorder %s9, 1
      %p69 = scmp.ne.s32.totalorder %s64, %s66
      %p70 = scmp.eq.s32.totalorder %s9, 0
      %p71 = por %p69, %p70
      %p72 = scmp.ne.s32.totalorder %s64, %s66
      %p73 = scmp.eq.s32.totalorder %s14, 1
      %p74 = por %p72, %p73
      %p75 = scmp.ne.s32.totalorder %s66, %s67
      %p76 = scmp.eq.s32.totalorder %s14, 0
      %p77 = por %p75, %p76
      %p78 = scmp.ne.s32.totalorder %s66, %s67
      %p79 = scmp.eq.s32.totalorder %s15, 1
      %p80 = por %p78, %p79
      %p82 = scmp.ne.s32.totalorder %s67, %s81
      %p83 = scmp.eq.s32.totalorder %s15, 0
      %p84 = por %p82, %p83
      %s85 = ssub.s32 %s9, %s16
      %p86 = scmp.eq.s32.totalorder %s85, 0
      %s88 = sadd.s32 %s87, 1
      %s89 = scalar_select %p86, %s87, %s88
      %p92 = pneg %p86
      %p93 = scmp.eq.s32.totalorder %s9, 1
      %p94 = por %p92, %p93
      %p95 = scmp.ne.s32.totalorder %s87, %s90
      %p96 = scmp.eq.s32.totalorder %s9, 0
      %p97 = por %p95, %p96
      %p98 = scmp.ne.s32.totalorder %s87, %s90
      %p99 = scmp.eq.s32.totalorder %s14, 1
      %p100 = por %p98, %p99
      %p101 = scmp.ne.s32.totalorder %s90, %s91
      %p102 = scmp.eq.s32.totalorder %s14, 0
      %p103 = por %p101, %p102
      %p104 = scmp.ne.s32.totalorder %s90, %s91
      %p105 = scmp.eq.s32.totalorder %s15, 1
      %p106 = por %p104, %p105
      %p108 = scmp.ne.s32.totalorder %s91, %s107
      %p109 = scmp.eq.s32.totalorder %s15, 0
      %p110 = por %p108, %p109
      %p111 = scmp.le.s32.totalorder 1, %s9
      %p112 = scmp.lt.s32.totalorder %s9, 3
      %p113 = pnand %p111, %p112
      %p114 = pneg %p113
      // Predicated region
      $region9: #{cnn_rnn_forward.7} parent=5 // pred_check
        _
      $region10: #{cnn_rnn_forward.7} parent=5 // pred_check_branch
        %116 = sbr.rel (%p113) target = $region12
      $region11: #{cnn_rnn_forward.7} parent=5 // pred_region
        %s117 = ssub.s32 %s9, 1
        // Predicated region
        $region13: #{cnn_rnn_forward.7} parent=11 // pred_check
          %p118 = pneg %p56
        $region14: #{cnn_rnn_forward.7} parent=11 // pred_check_branch
          %120 = sbr.rel (%p118) target = $region16
        $region15: #{cnn_rnn_forward.7} parent=11 // pred_region
          _
        $region16: #{cnn_rnn_forward.7} parent=11 // pred_fallthru
          _
        // Predicated region
        $region17: #{cnn_rnn_forward.7} parent=11 // pred_check
          %p121 = pneg %p77
        $region18: #{cnn_rnn_forward.7} parent=11 // pred_check_branch
          %123 = sbr.rel (%p121) target = $region20
        $region19: #{cnn_rnn_forward.7} parent=11 // pred_region
          _
        $region20: #{cnn_rnn_forward.7} parent=11 // pred_fallthru
          _
      $region12: #{cnn_rnn_forward.7} parent=5 // pred_fallthru
        _
      %p124 = scmp.lt.s32.totalorder %s9, 2
      // Predicated region
      $region21: #{cnn_rnn_forward.7} parent=5 // pred_check
        %p125 = pneg %p124
      $region22: #{cnn_rnn_forward.7} parent=5 // pred_check_branch
        %127 = sbr.rel (%p125) target = $region24
      $region23: #{cnn_rnn_forward.7} parent=5 // pred_region
        // Predicated region
        $region25: #{cnn_rnn_forward.7} parent=23 // pred_check
          %p128 = pneg %p29
        $region26: #{cnn_rnn_forward.7} parent=23 // pred_check_branch
          %130 = sbr.rel (%p128) target = $region28
        $region27: #{cnn_rnn_forward.7} parent=23 // pred_region
          %s131 = smul.u32 48, %s9
          %s132 = ssub.s32 81, %s131
          %p133 = scmp.lt.s32.totalorder %s132, 48
          %s134 = scalar_select %p133, %s132, 48
          %s135 = smul.u32 128, %s134
          %p136 = scmp.lt.s32.totalorder %s131, 80
          %s137 = scalar_select %p136, %s131, 80
          %s138 = smul.addr %s137, 8
          %s139 = scalar_lea.vmem %s0, %s138
          %s140 = smul.u32 48, %s9
          %s141 = ssub.s32 81, %s140
          %p142 = scmp.lt.s32.totalorder %s141, 48
          %s143 = scalar_select %p142, %s141, 48
          %s144 = smul.u32 128, %s143
        $region28: #{cnn_rnn_forward.7} parent=23 // pred_fallthru
          _
      $region24: #{cnn_rnn_forward.7} parent=5 // pred_fallthru
        _
      %p145 = scmp.le.s32.totalorder 1, %s9
      %p146 = scmp.lt.s32.totalorder %s9, 3
      %p147 = pnand %p145, %p146
      %p148 = pneg %p147
      // Predicated region
      $region29: #{cnn_rnn_forward.7} parent=5 // pred_check
        _
      $region30: #{cnn_rnn_forward.7} parent=5 // pred_check_branch
        %150 = sbr.rel (%p147) target = $region32
      $region31: #{cnn_rnn_forward.7} parent=5 // pred_region
        %s151 = ssub.s32 %s9, 1
        %s152 = smul.u32 48, %s14
        %s153 = ssub.s32 81, %s152
        %p154 = scmp.lt.s32.totalorder %s153, 48
        %s155 = scalar_select %p154, %s153, 48
        %s156 = smul.u32 128, %s155
        %p157 = scmp.lt.s32.totalorder %s152, 80
        %s158 = scalar_select %p157, %s152, 80
        %s159 = smul.addr %s158, 8
        %s160 = scalar_lea.vmem %s0, %s159
        %p161 = pneg %p35
        %p162 = pneg %p32
        %p163 = pneg %p56
        %p164 = pneg %p53
        %p165 = pneg %p77
        %p166 = pneg %p74
        %p167 = pneg %p103
        %p168 = pneg %p100
        %s169 = sand.u32 %s90, 1
        %s170 = sand.u32 %s90, 1
        %s171 = smul.addr %s170, 384
        %s172 = scalar_lea.vmem [#allocation2], %s171
        %s173 = smul.u32 48, %s14
        %s174 = ssub.s32 81, %s173
        %p175 = scmp.lt.s32.totalorder %s174, 48
        %s176 = scalar_select %p175, %s174, 48
        %s177 = smul.u32 128, %s176
        %p178 = scmp.lt.s32.totalorder %s173, 80
        %s179 = scalar_select %p178, %s173, 80
        %s180 = smul.addr %s179, 8
        %s181 = scalar_lea.vmem %s0, %s180
        %s182 = smul.u32 48, %s14
        %s183 = ssub.s32 81, %s182
        %p184 = scmp.lt.s32.totalorder %s183, 48
        %s185 = scalar_select %p184, %s183, 48
        %s186 = smul.u32 128, %s185
        %s187 = smul.u32 48, %s14
        %s188 = ssub.s32 81, %s187
        %p189 = scmp.lt.s32.totalorder %s188, 48
        %s190 = scalar_select %p189, %s188, 48
        %s191 = smul.u32 128, %s190
        %v192 = vld [vmem:[%s181] sm:$0xff]
        %v193 = vld [vmem:[%s181 + $0x8] sm:$0xff]
        %v194 = vld [vmem:[%s181 + $0x10] sm:$0xff]
        %v195 = vld [vmem:[%s181 + $0x18] sm:$0xff]
        %v196 = vld [vmem:[%s181 + $0x20] sm:$0xff]
        %v197 = vld [vmem:[%s181 + $0x28] sm:$0xff]
        %v198 = vld [vmem:[%s181 + $0x30] sm:$0xff]
        %v199 = vld [vmem:[%s181 + $0x38] sm:$0xff]
        %v200 = vld [vmem:[%s181 + $0x40] sm:$0xff]
        %v201 = vld [vmem:[%s181 + $0x48] sm:$0xff]
        %v202 = vld [vmem:[%s181 + $0x50] sm:$0xff]
        %v203 = vld [vmem:[%s181 + $0x58] sm:$0xff]
        %v204 = vld [vmem:[%s181 + $0x60] sm:$0xff]
        %v205 = vld [vmem:[%s181 + $0x68] sm:$0xff]
        %v206 = vld [vmem:[%s181 + $0x70] sm:$0xff]
        %v207 = vld [vmem:[%s181 + $0x78] sm:$0xff]
        %v208 = vld [vmem:[%s181 + $0x80] sm:$0xff]
        %v209 = vld [vmem:[%s181 + $0x88] sm:$0xff]
        %v210 = vld [vmem:[%s181 + $0x90] sm:$0xff]
        %v211 = vld [vmem:[%s181 + $0x98] sm:$0xff]
        %v212 = vld [vmem:[%s181 + $0xa0] sm:$0xff]
        %v213 = vld [vmem:[%s181 + $0xa8] sm:$0xff]
        %v214 = vld [vmem:[%s181 + $0xb0] sm:$0xff]
        %v215 = vld [vmem:[%s181 + $0xb8] sm:$0xff]
        %v216 = vld [vmem:[%s181 + $0xc0] sm:$0xff]
        %v217 = vld [vmem:[%s181 + $0xc8] sm:$0xff]
        %v218 = vld [vmem:[%s181 + $0xd0] sm:$0xff]
        %v219 = vld [vmem:[%s181 + $0xd8] sm:$0xff]
        %v220 = vld [vmem:[%s181 + $0xe0] sm:$0xff]
        %v221 = vld [vmem:[%s181 + $0xe8] sm:$0xff]
        %v222 = vld [vmem:[%s181 + $0xf0] sm:$0xff]
        %v223 = vld [vmem:[%s181 + $0xf8] sm:$0xff]
        %v224 = vld [vmem:[%s181 + $0x100] sm:$0xff]
        %v225 = vld [vmem:[%s181 + $0x108] sm:$0xff]
        %v226 = vld [vmem:[%s181 + $0x110] sm:$0xff]
        %v227 = vld [vmem:[%s181 + $0x118] sm:$0xff]
        %v228 = vld [vmem:[%s181 + $0x120] sm:$0xff]
        %v229 = vld [vmem:[%s181 + $0x128] sm:$0xff]
        %v230 = vld [vmem:[%s181 + $0x130] sm:$0xff]
        %v231 = vld [vmem:[%s181 + $0x138] sm:$0xff]
        %v232 = vld [vmem:[%s181 + $0x140] sm:$0xff]
        %v233 = vld [vmem:[%s181 + $0x148] sm:$0xff]
        %v234 = vld [vmem:[%s181 + $0x150] sm:$0xff]
        %v235 = vld [vmem:[%s181 + $0x158] sm:$0xff]
        %v236 = vld [vmem:[%s181 + $0x160] sm:$0xff]
        %v237 = vld [vmem:[%s181 + $0x168] sm:$0xff]
        %v238 = vld [vmem:[%s181 + $0x170] sm:$0xff]
        %v239 = vld [vmem:[%s181 + $0x178] sm:$0xff]
        %v240 = vld [vmem:[%s1] sm:$0xff]
        %v241 = vld [vmem:[%s1 + $0x8] sm:$0xff]
        %v242 = vld [vmem:[%s1 + $0x10] sm:$0xff]
        %v243 = vld [vmem:[%s1 + $0x18] sm:$0xff]
        %v244 = vld [vmem:[%s1 + $0x20] sm:$0xff]
        %v245 = vld [vmem:[%s1 + $0x28] sm:$0xff]
        %v246 = vld [vmem:[%s1 + $0x30] sm:$0xff]
        %v247 = vld [vmem:[%s1 + $0x38] sm:$0xff]
        %v248 = vld [vmem:[%s1 + $0x40] sm:$0xff]
        %v249 = vld [vmem:[%s2] sm:$0x1]
        %v251 = vlaneseq
        %v252 = vshrl.u32 %v251, 7
        %v253 = vsub.s32 0, %v252
        %v254 = vrot.slane %v249, %v253
        %vm256 = vcmask 588800
        %v258 = vsel %vm256, %v192, 0
        %v261 = vsel %vm256, %v193, 0
        %v264 = vsel %vm256, %v194, 0
        %v267 = vsel %vm256, %v195, 0
        %v270 = vsel %vm256, %v196, 0
        %v273 = vsel %vm256, %v197, 0
        %v276 = vsel %vm256, %v198, 0
        %v279 = vsel %vm256, %v199, 0
        %v282 = vsel %vm256, %v200, 0
        %v285 = vsel %vm256, %v201, 0
        %v288 = vsel %vm256, %v202, 0
        %v291 = vsel %vm256, %v203, 0
        %v294 = vsel %vm256, %v204, 0
        %v297 = vsel %vm256, %v205, 0
        %v300 = vsel %vm256, %v206, 0
        %v303 = vsel %vm256, %v207, 0
        %v306 = vsel %vm256, %v208, 0
        %v309 = vsel %vm256, %v209, 0
        %v312 = vsel %vm256, %v210, 0
        %v315 = vsel %vm256, %v211, 0
        %v318 = vsel %vm256, %v212, 0
        %v321 = vsel %vm256, %v213, 0
        %v324 = vsel %vm256, %v214, 0
        %v327 = vsel %vm256, %v215, 0
        %v330 = vsel %vm256, %v216, 0
        %v333 = vsel %vm256, %v217, 0
        %v336 = vsel %vm256, %v218, 0
        %v339 = vsel %vm256, %v219, 0
        %v342 = vsel %vm256, %v220, 0
        %v345 = vsel %vm256, %v221, 0
        %v348 = vsel %vm256, %v222, 0
        %v351 = vsel %vm256, %v223, 0
        %v354 = vsel %vm256, %v224, 0
        %v357 = vsel %vm256, %v225, 0
        %v360 = vsel %vm256, %v226, 0
        %v363 = vsel %vm256, %v227, 0
        %v366 = vsel %vm256, %v228, 0
        %v369 = vsel %vm256, %v229, 0
        %v372 = vsel %vm256, %v230, 0
        %v375 = vsel %vm256, %v231, 0
        %v378 = vsel %vm256, %v232, 0
        %v381 = vsel %vm256, %v233, 0
        %v384 = vsel %vm256, %v234, 0
        %v387 = vsel %vm256, %v235, 0
        %v390 = vsel %vm256, %v236, 0
        %v393 = vsel %vm256, %v237, 0
        %v396 = vsel %vm256, %v238, 0
        %v399 = vsel %vm256, %v239, 0
        %401 = vmatprep.subr.mxu0 0.0
        %402 = vmatpush1.msra.mxu0 %v240
        %403 = vmatprep.subr.mxu0 0.0
        %404 = vmatpush1.msra.mxu0 %v241
        %405 = vmatprep.subr.mxu0 0.0
        %406 = vmatpush1.msra.mxu0 %v242
        %407 = vmatprep.subr.mxu0 0.0
        %408 = vmatpush1.msra.mxu0 %v243
        %409 = vmatprep.subr.mxu0 0.0
        %410 = vmatpush1.msra.mxu0 %v244
        %411 = vmatprep.subr.mxu0 0.0
        %412 = vmatpush1.msra.mxu0 %v245
        %413 = vmatprep.subr.mxu0 0.0
        %414 = vmatpush1.msra.mxu0 %v246
        %415 = vmatprep.subr.mxu0 0.0
        %416 = vmatpush1.msra.mxu0 %v247
        %417 = vmatprep.subr.mxu0 0.0
        %418 = vmatpush1.msra.mxu0 %v248
        %419 = vmatprep.subr.mxu0 0.0
        %420 = vmatpush1.msra.mxu0 0.0
        %421 = vmatprep.subr.mxu0 0.0
        %422 = vmatpush1.msra.mxu0 0.0
        %423 = vmatprep.subr.mxu0 0.0
        %424 = vmatpush1.msra.mxu0 0.0
        %425 = vmatprep.subr.mxu0 0.0
        %426 = vmatpush1.msra.mxu0 0.0
        %427 = vmatprep.subr.mxu0 0.0
        %428 = vmatpush1.msra.mxu0 0.0
        %429 = vmatprep.subr.mxu0 0.0
        %430 = vmatpush1.msra.mxu0 0.0
        %431 = vmatprep.subr.mxu0 0.0
        %432 = vmatpush1.msra.mxu0 0.0
        %433 = vmatprep.subr.mxu0 0.0
        %434 = vmatpush1.msra.mxu0 0.0
        %435 = vmatprep.subr.mxu0 0.0
        %436 = vmatpush1.msra.mxu0 0.0
        %437 = vmatprep.subr.mxu0 0.0
        %438 = vmatpush1.msra.mxu0 0.0
        %439 = vmatprep.subr.mxu0 0.0
        %440 = vmatpush1.msra.mxu0 0.0
        %441 = vmatprep.subr.mxu0 0.0
        %442 = vmatpush1.msra.mxu0 0.0
        %443 = vmatprep.subr.mxu0 0.0
        %444 = vmatpush1.msra.mxu0 0.0
        %445 = vmatprep.subr.mxu0 0.0
        %446 = vmatpush1.msra.mxu0 0.0
        %447 = vmatprep.subr.mxu0 0.0
        %448 = vmatpush1.msra.mxu0 0.0
        %449 = vmatprep.subr.mxu0 0.0
        %450 = vmatpush1.msra.mxu0 0.0
        %451 = vmatprep.subr.mxu0 0.0
        %452 = vmatpush1.msra.mxu0 0.0
        %453 = vmatprep.subr.mxu0 0.0
        %454 = vmatpush1.msra.mxu0 0.0
        %455 = vmatprep.subr.mxu0 0.0
        %456 = vmatpush1.msra.mxu0 0.0
        %457 = vmatprep.subr.mxu0 0.0
        %458 = vmatpush1.msra.mxu0 0.0
        %459 = vmatprep.subr.mxu0 0.0
        %460 = vmatpush1.msra.mxu0 0.0
        %461 = vmatprep.subr.mxu0 0.0
        %462 = vmatpush1.msra.mxu0 0.0
        %463 = vmatprep.subr.mxu0 0.0
        %464 = vmatpush1.msra.mxu0 0.0
        %465 = vmatprep.mubr.f32.mxu0 0.0
        %466 = vmatmul.mubr.f32.gmra.mrb[0].mxu0 %v258
        %v467 = vpop.f32.mrb[0].mxu0
        %v468 = vadd.f32 %v254, %v467
        %v469 = vpop.f32.mrb[0].mxu0
        %470 = vmatprep.mubr.f32.mxu0 0.0
        %471 = vmatmul.mubr.f32.gmra.mrb[0].mxu0 %v261
        %v472 = vpop.f32.mrb[0].mxu0
        %v473 = vadd.f32 %v254, %v472
        %v474 = vpop.f32.mrb[0].mxu0
        %475 = vmatprep.mubr.f32.mxu0 0.0
        %476 = vmatmul.mubr.f32.gmra.mrb[0].mxu0 %v264
        %v477 = vpop.f32.mrb[0].mxu0
        %v478 = vadd.f32 %v254, %v477
        %v479 = vpop.f32.mrb[0].mxu0
        %480 = vmatprep.mubr.f32.mxu0 0.0
        %481 = vmatmul.mubr.f32.gmra.mrb[0].mxu0 %v267
        %v482 = vpop.f32.mrb[0].mxu0
        %v483 = vadd.f32 %v254, %v482
        %v484 = vpop.f32.mrb[0].mxu0
        %485 = vmatprep.mubr.f32.mxu0 0.0
        %486 = vmatmul.mubr.f32.gmra.mrb[0].mxu0 %v270
        %v487 = vpop.f32.mrb[0].mxu0
        %v488 = vadd.f32 %v254, %v487
        %v489 = vpop.f32.mrb[0].mxu0
        %490 = vmatprep.mubr.f32.mxu0 0.0
        %491 = vmatmul.mubr.f32.gmra.mrb[0].mxu0 %v273
        %v492 = vpop.f32.mrb[0].mxu0
        %v493 = vadd.f32 %v254, %v492
        %v494 = vpop.f32.mrb[0].mxu0
        %495 = vmatprep.mubr.f32.mxu0 0.0
        %496 = vmatmul.mubr.f32.gmra.mrb[0].mxu0 %v276
        %v497 = vpop.f32.mrb[0].mxu0
        %v498 = vadd.f32 %v254, %v497
        %v499 = vpop.f32.mrb[0].mxu0
        %500 = vmatprep.mubr.f32.mxu0 0.0
        %501 = vmatmul.mubr.f32.gmra.mrb[0].mxu0 %v279
        %v502 = vpop.f32.mrb[0].mxu0
        %v503 = vadd.f32 %v254, %v502
        %v504 = vpop.f32.mrb[0].mxu0
        %505 = vmatprep.mubr.f32.mxu0 0.0
        %506 = vmatmul.mubr.f32.gmra.mrb[0].mxu0 %v282
        %v507 = vpop.f32.mrb[0].mxu0
        %v508 = vadd.f32 %v254, %v507
        %v509 = vpop.f32.mrb[0].mxu0
        %510 = vmatprep.mubr.f32.mxu0 0.0
        %511 = vmatmul.mubr.f32.gmra.mrb[0].mxu0 %v285
        %v512 = vpop.f32.mrb[0].mxu0
        %v513 = vadd.f32 %v254, %v512
        %v514 = vpop.f32.mrb[0].mxu0
        %515 = vmatprep.mubr.f32.mxu0 0.0
        %516 = vmatmul.mubr.f32.gmra.mrb[0].mxu0 %v288
        %v517 = vpop.f32.mrb[0].mxu0
        %v518 = vadd.f32 %v254, %v517
        %v519 = vpop.f32.mrb[0].mxu0
        %520 = vmatprep.mubr.f32.mxu0 0.0
        %521 = vmatmul.mubr.f32.gmra.mrb[0].mxu0 %v291
        %v522 = vpop.f32.mrb[0].mxu0
        %v523 = vadd.f32 %v254, %v522
        %v524 = vpop.f32.mrb[0].mxu0
        %525 = vmatprep.mubr.f32.mxu0 0.0
        %526 = vmatmul.mubr.f32.gmra.mrb[0].mxu0 %v294
        %v527 = vpop.f32.mrb[0].mxu0
        %v528 = vadd.f32 %v254, %v527
        %v529 = vpop.f32.mrb[0].mxu0
        %530 = vmatprep.mubr.f32.mxu0 0.0
        %531 = vmatmul.mubr.f32.gmra.mrb[0].mxu0 %v297
        %v532 = vpop.f32.mrb[0].mxu0
        %v533 = vadd.f32 %v254, %v532
        %v534 = vpop.f32.mrb[0].mxu0
        %535 = vmatprep.mubr.f32.mxu0 0.0
        %536 = vmatmul.mubr.f32.gmra.mrb[0].mxu0 %v300
        %v537 = vpop.f32.mrb[0].mxu0
        %v538 = vadd.f32 %v254, %v537
        %v539 = vpop.f32.mrb[0].mxu0
        %540 = vmatprep.mubr.f32.mxu0 0.0
        %541 = vmatmul.mubr.f32.gmra.mrb[0].mxu0 %v303
        %v542 = vpop.f32.mrb[0].mxu0
        %v543 = vadd.f32 %v254, %v542
        %v544 = vpop.f32.mrb[0].mxu0
        %545 = vmatprep.mubr.f32.mxu0 0.0
        %546 = vmatmul.mubr.f32.gmra.mrb[0].mxu0 %v306
        %v547 = vpop.f32.mrb[0].mxu0
        %v548 = vadd.f32 %v254, %v547
        %v549 = vpop.f32.mrb[0].mxu0
        %550 = vmatprep.mubr.f32.mxu0 0.0
        %551 = vmatmul.mubr.f32.gmra.mrb[0].mxu0 %v309
        %v552 = vpop.f32.mrb[0].mxu0
        %v553 = vadd.f32 %v254, %v552
        %v554 = vpop.f32.mrb[0].mxu0
        %555 = vmatprep.mubr.f32.mxu0 0.0
        %556 = vmatmul.mubr.f32.gmra.mrb[0].mxu0 %v312
        %v557 = vpop.f32.mrb[0].mxu0
        %v558 = vadd.f32 %v254, %v557
        %v559 = vpop.f32.mrb[0].mxu0
        %560 = vmatprep.mubr.f32.mxu0 0.0
        %561 = vmatmul.mubr.f32.gmra.mrb[0].mxu0 %v315
        %v562 = vpop.f32.mrb[0].mxu0
        %v563 = vadd.f32 %v254, %v562
        %v564 = vpop.f32.mrb[0].mxu0
        %565 = vmatprep.mubr.f32.mxu0 0.0
        %566 = vmatmul.mubr.f32.gmra.mrb[0].mxu0 %v318
        %v567 = vpop.f32.mrb[0].mxu0
        %v568 = vadd.f32 %v254, %v567
        %v569 = vpop.f32.mrb[0].mxu0
        %570 = vmatprep.mubr.f32.mxu0 0.0
        %571 = vmatmul.mubr.f32.gmra.mrb[0].mxu0 %v321
        %v572 = vpop.f32.mrb[0].mxu0
        %v573 = vadd.f32 %v254, %v572
        %v574 = vpop.f32.mrb[0].mxu0
        %575 = vmatprep.mubr.f32.mxu0 0.0
        %576 = vmatmul.mubr.f32.gmra.mrb[0].mxu0 %v324
        %v577 = vpop.f32.mrb[0].mxu0
        %v578 = vadd.f32 %v254, %v577
        %v579 = vpop.f32.mrb[0].mxu0
        %580 = vmatprep.mubr.f32.mxu0 0.0
        %581 = vmatmul.mubr.f32.gmra.mrb[0].mxu0 %v327
        %v582 = vpop.f32.mrb[0].mxu0
        %v583 = vadd.f32 %v254, %v582
        %v584 = vpop.f32.mrb[0].mxu0
        %585 = vmatprep.mubr.f32.mxu0 0.0
        %586 = vmatmul.mubr.f32.gmra.mrb[0].mxu0 %v330
        %v587 = vpop.f32.mrb[0].mxu0
        %v588 = vadd.f32 %v254, %v587
        %v589 = vpop.f32.mrb[0].mxu0
        %590 = vmatprep.mubr.f32.mxu0 0.0
        %591 = vmatmul.mubr.f32.gmra.mrb[0].mxu0 %v333
        %v592 = vpop.f32.mrb[0].mxu0
        %v593 = vadd.f32 %v254, %v592
        %v594 = vpop.f32.mrb[0].mxu0
        %595 = vmatprep.mubr.f32.mxu0 0.0
        %596 = vmatmul.mubr.f32.gmra.mrb[0].mxu0 %v336
        %v597 = vpop.f32.mrb[0].mxu0
        %v598 = vadd.f32 %v254, %v597
        %v599 = vpop.f32.mrb[0].mxu0
        %600 = vmatprep.mubr.f32.mxu0 0.0
        %601 = vmatmul.mubr.f32.gmra.mrb[0].mxu0 %v339
        %v602 = vpop.f32.mrb[0].mxu0
        %v603 = vadd.f32 %v254, %v602
        %v604 = vpop.f32.mrb[0].mxu0
        %605 = vmatprep.mubr.f32.mxu0 0.0
        %606 = vmatmul.mubr.f32.gmra.mrb[0].mxu0 %v342
        %v607 = vpop.f32.mrb[0].mxu0
        %v608 = vadd.f32 %v254, %v607
        %v609 = vpop.f32.mrb[0].mxu0
        %610 = vmatprep.mubr.f32.mxu0 0.0
        %611 = vmatmul.mubr.f32.gmra.mrb[0].mxu0 %v345
        %v612 = vpop.f32.mrb[0].mxu0
        %v613 = vadd.f32 %v254, %v612
        %v614 = vpop.f32.mrb[0].mxu0
        %615 = vmatprep.mubr.f32.mxu0 0.0
        %616 = vmatmul.mubr.f32.gmra.mrb[0].mxu0 %v348
        %v617 = vpop.f32.mrb[0].mxu0
        %v618 = vadd.f32 %v254, %v617
        %v619 = vpop.f32.mrb[0].mxu0
        %620 = vmatprep.mubr.f32.mxu0 0.0
        %621 = vmatmul.mubr.f32.gmra.mrb[0].mxu0 %v351
        %v622 = vpop.f32.mrb[0].mxu0
        %v623 = vadd.f32 %v254, %v622
        %v624 = vpop.f32.mrb[0].mxu0
        %625 = vmatprep.mubr.f32.mxu0 0.0
        %626 = vmatmul.mubr.f32.gmra.mrb[0].mxu0 %v354
        %v627 = vpop.f32.mrb[0].mxu0
        %v628 = vadd.f32 %v254, %v627
        %v629 = vpop.f32.mrb[0].mxu0
        %630 = vmatprep.mubr.f32.mxu0 0.0
        %631 = vmatmul.mubr.f32.gmra.mrb[0].mxu0 %v357
        %v632 = vpop.f32.mrb[0].mxu0
        %v633 = vadd.f32 %v254, %v632
        %v634 = vpop.f32.mrb[0].mxu0
        %635 = vmatprep.mubr.f32.mxu0 0.0
        %636 = vmatmul.mubr.f32.gmra.mrb[0].mxu0 %v360
        %v637 = vpop.f32.mrb[0].mxu0
        %v638 = vadd.f32 %v254, %v637
        %v639 = vpop.f32.mrb[0].mxu0
        %640 = vmatprep.mubr.f32.mxu0 0.0
        %641 = vmatmul.mubr.f32.gmra.mrb[0].mxu0 %v363
        %v642 = vpop.f32.mrb[0].mxu0
        %v643 = vadd.f32 %v254, %v642
        %v644 = vpop.f32.mrb[0].mxu0
        %645 = vmatprep.mubr.f32.mxu0 0.0
        %646 = vmatmul.mubr.f32.gmra.mrb[0].mxu0 %v366
        %v647 = vpop.f32.mrb[0].mxu0
        %v648 = vadd.f32 %v254, %v647
        %v649 = vpop.f32.mrb[0].mxu0
        %650 = vmatprep.mubr.f32.mxu0 0.0
        %651 = vmatmul.mubr.f32.gmra.mrb[0].mxu0 %v369
        %v652 = vpop.f32.mrb[0].mxu0
        %v653 = vadd.f32 %v254, %v652
        %v654 = vpop.f32.mrb[0].mxu0
        %655 = vmatprep.mubr.f32.mxu0 0.0
        %656 = vmatmul.mubr.f32.gmra.mrb[0].mxu0 %v372
        %v657 = vpop.f32.mrb[0].mxu0
        %v658 = vadd.f32 %v254, %v657
        %v659 = vpop.f32.mrb[0].mxu0
        %660 = vmatprep.mubr.f32.mxu0 0.0
        %661 = vmatmul.mubr.f32.gmra.mrb[0].mxu0 %v375
        %v662 = vpop.f32.mrb[0].mxu0
        %v663 = vadd.f32 %v254, %v662
        %v664 = vpop.f32.mrb[0].mxu0
        %665 = vmatprep.mubr.f32.mxu0 0.0
        %666 = vmatmul.mubr.f32.gmra.mrb[0].mxu0 %v378
        %v667 = vpop.f32.mrb[0].mxu0
        %v668 = vadd.f32 %v254, %v667
        %v669 = vpop.f32.mrb[0].mxu0
        %670 = vmatprep.mubr.f32.mxu0 0.0
        %671 = vmatmul.mubr.f32.gmra.mrb[0].mxu0 %v381
        %v672 = vpop.f32.mrb[0].mxu0
        %v673 = vadd.f32 %v254, %v672
        %v674 = vpop.f32.mrb[0].mxu0
        %675 = vmatprep.mubr.f32.mxu0 0.0
        %676 = vmatmul.mubr.f32.gmra.mrb[0].mxu0 %v384
        %v677 = vpop.f32.mrb[0].mxu0
        %v678 = vadd.f32 %v254, %v677
        %v679 = vpop.f32.mrb[0].mxu0
        %680 = vmatprep.mubr.f32.mxu0 0.0
        %681 = vmatmul.mubr.f32.gmra.mrb[0].mxu0 %v387
        %v682 = vpop.f32.mrb[0].mxu0
        %v683 = vadd.f32 %v254, %v682
        %v684 = vpop.f32.mrb[0].mxu0
        %685 = vmatprep.mubr.f32.mxu0 0.0
        %686 = vmatmul.mubr.f32.gmra.mrb[0].mxu0 %v390
        %v687 = vpop.f32.mrb[0].mxu0
        %v688 = vadd.f32 %v254, %v687
        %v689 = vpop.f32.mrb[0].mxu0
        %690 = vmatprep.mubr.f32.mxu0 0.0
        %691 = vmatmul.mubr.f32.gmra.mrb[0].mxu0 %v393
        %v692 = vpop.f32.mrb[0].mxu0
        %v693 = vadd.f32 %v254, %v692
        %v694 = vpop.f32.mrb[0].mxu0
        %695 = vmatprep.mubr.f32.mxu0 0.0
        %696 = vmatmul.mubr.f32.gmra.mrb[0].mxu0 %v396
        %v697 = vpop.f32.mrb[0].mxu0
        %v698 = vadd.f32 %v254, %v697
        %v699 = vpop.f32.mrb[0].mxu0
        %700 = vmatprep.mubr.f32.mxu0 0.0
        %701 = vmatmul.mubr.f32.gmra.mrb[0].mxu0 %v399
        %v702 = vpop.f32.mrb[0].mxu0
        %v703 = vadd.f32 %v254, %v702
        %v704 = vpop.f32.mrb[0].mxu0
        %705 = vdwg.mxu0
        %v706 = vmax.f32 %v468, 0.0
        %v707 = vmax.f32 %v473, 0.0
        %v708 = vmax.f32 %v478, 0.0
        %v709 = vmax.f32 %v483, 0.0
        %v710 = vmax.f32 %v488, 0.0
        %v711 = vmax.f32 %v493, 0.0
        %v712 = vmax.f32 %v498, 0.0
        %v713 = vmax.f32 %v503, 0.0
        %v714 = vmax.f32 %v508, 0.0
        %v715 = vmax.f32 %v513, 0.0
        %v716 = vmax.f32 %v518, 0.0
        %v717 = vmax.f32 %v523, 0.0
        %v718 = vmax.f32 %v528, 0.0
        %v719 = vmax.f32 %v533, 0.0
        %v720 = vmax.f32 %v538, 0.0
        %v721 = vmax.f32 %v543, 0.0
        %v722 = vmax.f32 %v548, 0.0
        %v723 = vmax.f32 %v553, 0.0
        %v724 = vmax.f32 %v558, 0.0
        %v725 = vmax.f32 %v563, 0.0
        %v726 = vmax.f32 %v568, 0.0
        %v727 = vmax.f32 %v573, 0.0
        %v728 = vmax.f32 %v578, 0.0
        %v729 = vmax.f32 %v583, 0.0
        %v730 = vmax.f32 %v588, 0.0
        %v731 = vmax.f32 %v593, 0.0
        %v732 = vmax.f32 %v598, 0.0
        %v733 = vmax.f32 %v603, 0.0
        %v734 = vmax.f32 %v608, 0.0
        %v735 = vmax.f32 %v613, 0.0
        %v736 = vmax.f32 %v618, 0.0
        %v737 = vmax.f32 %v623, 0.0
        %v738 = vmax.f32 %v628, 0.0
        %v739 = vmax.f32 %v633, 0.0
        %v740 = vmax.f32 %v638, 0.0
        %v741 = vmax.f32 %v643, 0.0
        %v742 = vmax.f32 %v648, 0.0
        %v743 = vmax.f32 %v653, 0.0
        %v744 = vmax.f32 %v658, 0.0
        %v745 = vmax.f32 %v663, 0.0
        %v746 = vmax.f32 %v668, 0.0
        %v747 = vmax.f32 %v673, 0.0
        %v748 = vmax.f32 %v678, 0.0
        %v749 = vmax.f32 %v683, 0.0
        %v750 = vmax.f32 %v688, 0.0
        %v751 = vmax.f32 %v693, 0.0
        %v752 = vmax.f32 %v698, 0.0
        %v753 = vmax.f32 %v703, 0.0
        %vm754 = vcmask 64512
        %755 = vst.msk [vmem:[%s172] sm:$0xff] %vm754, %v706
        %756 = vst.msk [vmem:[%s172 + $0x8] sm:$0xff] %vm754, %v707
        %757 = vst.msk [vmem:[%s172 + $0x10] sm:$0xff] %vm754, %v708
        %758 = vst.msk [vmem:[%s172 + $0x18] sm:$0xff] %vm754, %v709
        %759 = vst.msk [vmem:[%s172 + $0x20] sm:$0xff] %vm754, %v710
        %760 = vst.msk [vmem:[%s172 + $0x28] sm:$0xff] %vm754, %v711
        %761 = vst.msk [vmem:[%s172 + $0x30] sm:$0xff] %vm754, %v712
        %762 = vst.msk [vmem:[%s172 + $0x38] sm:$0xff] %vm754, %v713
        %763 = vst.msk [vmem:[%s172 + $0x40] sm:$0xff] %vm754, %v714
        %764 = vst.msk [vmem:[%s172 + $0x48] sm:$0xff] %vm754, %v715
        %765 = vst.msk [vmem:[%s172 + $0x50] sm:$0xff] %vm754, %v716
        %766 = vst.msk [vmem:[%s172 + $0x58] sm:$0xff] %vm754, %v717
        %767 = vst.msk [vmem:[%s172 + $0x60] sm:$0xff] %vm754, %v718
        %768 = vst.msk [vmem:[%s172 + $0x68] sm:$0xff] %vm754, %v719
        %769 = vst.msk [vmem:[%s172 + $0x70] sm:$0xff] %vm754, %v720
        %770 = vst.msk [vmem:[%s172 + $0x78] sm:$0xff] %vm754, %v721
        %771 = vst.msk [vmem:[%s172 + $0x80] sm:$0xff] %vm754, %v722
        %772 = vst.msk [vmem:[%s172 + $0x88] sm:$0xff] %vm754, %v723
        %773 = vst.msk [vmem:[%s172 + $0x90] sm:$0xff] %vm754, %v724
        %774 = vst.msk [vmem:[%s172 + $0x98] sm:$0xff] %vm754, %v725
        %775 = vst.msk [vmem:[%s172 + $0xa0] sm:$0xff] %vm754, %v726
        %776 = vst.msk [vmem:[%s172 + $0xa8] sm:$0xff] %vm754, %v727
        %777 = vst.msk [vmem:[%s172 + $0xb0] sm:$0xff] %vm754, %v728
        %778 = vst.msk [vmem:[%s172 + $0xb8] sm:$0xff] %vm754, %v729
        %779 = vst.msk [vmem:[%s172 + $0xc0] sm:$0xff] %vm754, %v730
        %780 = vst.msk [vmem:[%s172 + $0xc8] sm:$0xff] %vm754, %v731
        %781 = vst.msk [vmem:[%s172 + $0xd0] sm:$0xff] %vm754, %v732
        %782 = vst.msk [vmem:[%s172 + $0xd8] sm:$0xff] %vm754, %v733
        %783 = vst.msk [vmem:[%s172 + $0xe0] sm:$0xff] %vm754, %v734
        %784 = vst.msk [vmem:[%s172 + $0xe8] sm:$0xff] %vm754, %v735
        %785 = vst.msk [vmem:[%s172 + $0xf0] sm:$0xff] %vm754, %v736
        %786 = vst.msk [vmem:[%s172 + $0xf8] sm:$0xff] %vm754, %v737
        %787 = vst.msk [vmem:[%s172 + $0x100] sm:$0xff] %vm754, %v738
        %788 = vst.msk [vmem:[%s172 + $0x108] sm:$0xff] %vm754, %v739
        %789 = vst.msk [vmem:[%s172 + $0x110] sm:$0xff] %vm754, %v740
        %790 = vst.msk [vmem:[%s172 + $0x118] sm:$0xff] %vm754, %v741
        %791 = vst.msk [vmem:[%s172 + $0x120] sm:$0xff] %vm754, %v742
        %792 = vst.msk [vmem:[%s172 + $0x128] sm:$0xff] %vm754, %v743
        %793 = vst.msk [vmem:[%s172 + $0x130] sm:$0xff] %vm754, %v744
        %794 = vst.msk [vmem:[%s172 + $0x138] sm:$0xff] %vm754, %v745
        %795 = vst.msk [vmem:[%s172 + $0x140] sm:$0xff] %vm754, %v746
        %796 = vst.msk [vmem:[%s172 + $0x148] sm:$0xff] %vm754, %v747
        %797 = vst.msk [vmem:[%s172 + $0x150] sm:$0xff] %vm754, %v748
        %798 = vst.msk [vmem:[%s172 + $0x158] sm:$0xff] %vm754, %v749
        %799 = vst.msk [vmem:[%s172 + $0x160] sm:$0xff] %vm754, %v750
        %800 = vst.msk [vmem:[%s172 + $0x168] sm:$0xff] %vm754, %v751
        %801 = vst.msk [vmem:[%s172 + $0x170] sm:$0xff] %vm754, %v752
        %802 = vst.msk [vmem:[%s172 + $0x178] sm:$0xff] %vm754, %v753
        %s803 = sand.u32 %s90, 1
        %s804 = sand.u32 %s90, 1
        %s805 = smul.addr %s804, 384
        %s806 = scalar_lea.vmem [#allocation2], %s805
        // Predicated region
        $region33: #{cnn_rnn_forward.7} parent=31 // pred_check
          %p807 = pneg %p100
        $region34: #{cnn_rnn_forward.7} parent=31 // pred_check_branch
          %809 = sbr.rel (%p807) target = $region36
        $region35: #{cnn_rnn_forward.7} parent=31 // pred_region
          %s810 = smul.u32 48, %s14
          %s811 = ssub.s32 81, %s810
          %p812 = scmp.lt.s32.totalorder %s811, 48
          %s813 = scalar_select %p812, %s811, 48
          %s814 = smul.u32 128, %s813
          %p815 = scmp.ne.s32.totalorder 0, %s814
          %s816 = smul.addr %s810, 8
          %s817 = scalar_lea.vmem %s3, %s816
          // Predicated region
          $region37: #{cnn_rnn_forward.7} parent=35 // pred_check
            %p818 = pneg %p815
          $region38: #{cnn_rnn_forward.7} parent=35 // pred_check_branch
            %820 = sbr.rel (%p818) target = $region40
          $region39: #{cnn_rnn_forward.7} parent=35 // pred_region
            // Predicated region
            $region41: #{cnn_rnn_forward.7} parent=39 // pred_check
              _
            $region42: #{cnn_rnn_forward.7} parent=39 // pred_check_branch
              %822 = sbr.rel (0) target = $region44
            $region43: #{cnn_rnn_forward.7} parent=39 // pred_region
              // Predicated region
              $region63: #{cnn_rnn_forward.7} parent=43 // pred_check
                _
              $region64: #{cnn_rnn_forward.7} parent=43 // pred_check_branch
                %966 = sbr.rel (0) target = $region66
              $region65: #{cnn_rnn_forward.7} parent=43 // pred_region
                %s967 = sdiv.u32.pop %s813, 48
                %s968 = srem.u32.pop %s813, 48
                // While loop
                $region67: #{cnn_rnn_forward.7} parent=65 // loop_pre_header
                  _
                $region68: #{cnn_rnn_forward.7} parent=65 // loop_header
                  %s970 = sphi 0, %s972
                  %p971 = scmp.ge.s32.totalorder %s970, %s967
                  %s975 = sphi 0, %s1076
                  %s976 = sphi %s806, %s1079
                  %s977 = sphi %s817, %s1080
                $region69: #{cnn_rnn_forward.7} parent=65 // loop_header_branch
                  %974 = sbr.rel (%p971) target = $region73
                $region70: #{cnn_rnn_forward.7} parent=65 // loop_body
                  %v978 = vld [vmem:[%s976] sm:$0xff]
                  %979 = vst [vmem:[%s977] sm:$0xff] %v978
                  %v980 = vld [vmem:[%s976 + $0x8] sm:$0xff]
                  %981 = vst [vmem:[%s977 + $0x8] sm:$0xff] %v980
                  %v982 = vld [vmem:[%s976 + $0x10] sm:$0xff]
                  %983 = vst [vmem:[%s977 + $0x10] sm:$0xff] %v982
                  %v984 = vld [vmem:[%s976 + $0x18] sm:$0xff]
                  %985 = vst [vmem:[%s977 + $0x18] sm:$0xff] %v984
                  %v986 = vld [vmem:[%s976 + $0x20] sm:$0xff]
                  %987 = vst [vmem:[%s977 + $0x20] sm:$0xff] %v986
                  %v988 = vld [vmem:[%s976 + $0x28] sm:$0xff]
                  %989 = vst [vmem:[%s977 + $0x28] sm:$0xff] %v988
                  %v990 = vld [vmem:[%s976 + $0x30] sm:$0xff]
                  %991 = vst [vmem:[%s977 + $0x30] sm:$0xff] %v990
                  %v992 = vld [vmem:[%s976 + $0x38] sm:$0xff]
                  %993 = vst [vmem:[%s977 + $0x38] sm:$0xff] %v992
                  %v994 = vld [vmem:[%s976 + $0x40] sm:$0xff]
                  %995 = vst [vmem:[%s977 + $0x40] sm:$0xff] %v994
                  %v996 = vld [vmem:[%s976 + $0x48] sm:$0xff]
                  %997 = vst [vmem:[%s977 + $0x48] sm:$0xff] %v996
                  %v998 = vld [vmem:[%s976 + $0x50] sm:$0xff]
                  %999 = vst [vmem:[%s977 + $0x50] sm:$0xff] %v998
                  %v1000 = vld [vmem:[%s976 + $0x58] sm:$0xff]
                  %1001 = vst [vmem:[%s977 + $0x58] sm:$0xff] %v1000
                  %v1002 = vld [vmem:[%s976 + $0x60] sm:$0xff]
                  %1003 = vst [vmem:[%s977 + $0x60] sm:$0xff] %v1002
                  %v1004 = vld [vmem:[%s976 + $0x68] sm:$0xff]
                  %1005 = vst [vmem:[%s977 + $0x68] sm:$0xff] %v1004
                  %v1006 = vld [vmem:[%s976 + $0x70] sm:$0xff]
                  %1007 = vst [vmem:[%s977 + $0x70] sm:$0xff] %v1006
                  %v1008 = vld [vmem:[%s976 + $0x78] sm:$0xff]
                  %1009 = vst [vmem:[%s977 + $0x78] sm:$0xff] %v1008
                  %v1010 = vld [vmem:[%s976 + $0x80] sm:$0xff]
                  %1011 = vst [vmem:[%s977 + $0x80] sm:$0xff] %v1010
                  %v1012 = vld [vmem:[%s976 + $0x88] sm:$0xff]
                  %1013 = vst [vmem:[%s977 + $0x88] sm:$0xff] %v1012
                  %v1014 = vld [vmem:[%s976 + $0x90] sm:$0xff]
                  %1015 = vst [vmem:[%s977 + $0x90] sm:$0xff] %v1014
                  %v1016 = vld [vmem:[%s976 + $0x98] sm:$0xff]
                  %1017 = vst [vmem:[%s977 + $0x98] sm:$0xff] %v1016
                  %v1018 = vld [vmem:[%s976 + $0xa0] sm:$0xff]
                  %1019 = vst [vmem:[%s977 + $0xa0] sm:$0xff] %v1018
                  %v1020 = vld [vmem:[%s976 + $0xa8] sm:$0xff]
                  %1021 = vst [vmem:[%s977 + $0xa8] sm:$0xff] %v1020
                  %v1022 = vld [vmem:[%s976 + $0xb0] sm:$0xff]
                  %1023 = vst [vmem:[%s977 + $0xb0] sm:$0xff] %v1022
                  %v1024 = vld [vmem:[%s976 + $0xb8] sm:$0xff]
                  %1025 = vst [vmem:[%s977 + $0xb8] sm:$0xff] %v1024
                  %v1026 = vld [vmem:[%s976 + $0xc0] sm:$0xff]
                  %1027 = vst [vmem:[%s977 + $0xc0] sm:$0xff] %v1026
                  %v1028 = vld [vmem:[%s976 + $0xc8] sm:$0xff]
                  %1029 = vst [vmem:[%s977 + $0xc8] sm:$0xff] %v1028
                  %v1030 = vld [vmem:[%s976 + $0xd0] sm:$0xff]
                  %1031 = vst [vmem:[%s977 + $0xd0] sm:$0xff] %v1030
                  %v1032 = vld [vmem:[%s976 + $0xd8] sm:$0xff]
                  %1033 = vst [vmem:[%s977 + $0xd8] sm:$0xff] %v1032
                  %v1034 = vld [vmem:[%s976 + $0xe0] sm:$0xff]
                  %1035 = vst [vmem:[%s977 + $0xe0] sm:$0xff] %v1034
                  %v1036 = vld [vmem:[%s976 + $0xe8] sm:$0xff]
                  %1037 = vst [vmem:[%s977 + $0xe8] sm:$0xff] %v1036
                  %v1038 = vld [vmem:[%s976 + $0xf0] sm:$0xff]
                  %1039 = vst [vmem:[%s977 + $0xf0] sm:$0xff] %v1038
                  %v1040 = vld [vmem:[%s976 + $0xf8] sm:$0xff]
                  %1041 = vst [vmem:[%s977 + $0xf8] sm:$0xff] %v1040
                  %v1042 = vld [vmem:[%s976 + $0x100] sm:$0xff]
                  %1043 = vst [vmem:[%s977 + $0x100] sm:$0xff] %v1042
                  %v1044 = vld [vmem:[%s976 + $0x108] sm:$0xff]
                  %1045 = vst [vmem:[%s977 + $0x108] sm:$0xff] %v1044
                  %v1046 = vld [vmem:[%s976 + $0x110] sm:$0xff]
                  %1047 = vst [vmem:[%s977 + $0x110] sm:$0xff] %v1046
                  %v1048 = vld [vmem:[%s976 + $0x118] sm:$0xff]
                  %1049 = vst [vmem:[%s977 + $0x118] sm:$0xff] %v1048
                  %v1050 = vld [vmem:[%s976 + $0x120] sm:$0xff]
                  %1051 = vst [vmem:[%s977 + $0x120] sm:$0xff] %v1050
                  %v1052 = vld [vmem:[%s976 + $0x128] sm:$0xff]
                  %1053 = vst [vmem:[%s977 + $0x128] sm:$0xff] %v1052
                  %v1054 = vld [vmem:[%s976 + $0x130] sm:$0xff]
                  %1055 = vst [vmem:[%s977 + $0x130] sm:$0xff] %v1054
                  %v1056 = vld [vmem:[%s976 + $0x138] sm:$0xff]
                  %1057 = vst [vmem:[%s977 + $0x138] sm:$0xff] %v1056
                  %v1058 = vld [vmem:[%s976 + $0x140] sm:$0xff]
                  %1059 = vst [vmem:[%s977 + $0x140] sm:$0xff] %v1058
                  %v1060 = vld [vmem:[%s976 + $0x148] sm:$0xff]
                  %1061 = vst [vmem:[%s977 + $0x148] sm:$0xff] %v1060
                  %v1062 = vld [vmem:[%s976 + $0x150] sm:$0xff]
                  %1063 = vst [vmem:[%s977 + $0x150] sm:$0xff] %v1062
                  %v1064 = vld [vmem:[%s976 + $0x158] sm:$0xff]
                  %1065 = vst [vmem:[%s977 + $0x158] sm:$0xff] %v1064
                  %v1066 = vld [vmem:[%s976 + $0x160] sm:$0xff]
                  %1067 = vst [vmem:[%s977 + $0x160] sm:$0xff] %v1066
                  %v1068 = vld [vmem:[%s976 + $0x168] sm:$0xff]
                  %1069 = vst [vmem:[%s977 + $0x168] sm:$0xff] %v1068
                  %v1070 = vld [vmem:[%s976 + $0x170] sm:$0xff]
                  %1071 = vst [vmem:[%s977 + $0x170] sm:$0xff] %v1070
                  %v1072 = vld [vmem:[%s976 + $0x178] sm:$0xff]
                  %1073 = vst [vmem:[%s977 + $0x178] sm:$0xff] %v1072
                  %s1074 = sadd.s32 1, %s975
                  %p1075 = scmp.ge.s32.totalorder %s1074, %s967
                  %s1076 = scalar_select %p1075, 0, %s1074
                  %s1077 = smul.u32 %s1076, 384
                  %s1078 = smul.u32 %s1076, 384
                  %s1079 = scalar_lea.vmem %s806, %s1077 [#allocation2]
                  %s1080 = scalar_lea.vmem %s817, %s1078
                $region71: #{cnn_rnn_forward.7} parent=65 // loop_footer
                  %s972 = sadd.s32 %s970, 1
                $region72: #{cnn_rnn_forward.7} parent=65 // loop_footer_branch
                  %969 = sbr.rel target = $region68
                $region73: #{cnn_rnn_forward.7} parent=65 // loop_exit
                  _
                %s1081 = sdiv.u32.pop %s813, 48
                %s1082 = srem.u32.pop %s813, 48
                %s1083 = smul.u32 %s1081, 48
                %s1084 = smul.u32 8, %s1083
                %s1085 = scalar_lea.vmem %s806, %s1084 [#allocation2]
                %s1086 = smul.u32 8, %s1083
                %s1087 = scalar_lea.vmem %s817, %s1086
                // While loop
                $region74: #{cnn_rnn_forward.7} parent=65 // loop_pre_header
                  _
                $region75: #{cnn_rnn_forward.7} parent=65 // loop_header
                  %s1089 = sphi 0, %s1091
                  %p1090 = scmp.ge.s32.totalorder %s1089, %s1082
                  %s1094 = sphi 0, %s1101
                  %s1095 = sphi %s1085, %s1104
                  %s1096 = sphi %s1087, %s1105
                $region76: #{cnn_rnn_forward.7} parent=65 // loop_header_branch
                  %1093 = sbr.rel (%p1090) target = $region80
                $region77: #{cnn_rnn_forward.7} parent=65 // loop_body
                  %v1097 = vld [vmem:[%s1095] sm:$0xff]
                  %1098 = vst [vmem:[%s1096] sm:$0xff] %v1097
                  %s1099 = sadd.s32 1, %s1094
                  %p1100 = scmp.ge.s32.totalorder %s1099, %s1082
                  %s1101 = scalar_select %p1100, 0, %s1099
                  %s1102 = smul.u32 %s1101, 8
                  %s1103 = smul.u32 %s1101, 8
                  %s1104 = scalar_lea.vmem %s1085, %s1102 [#allocation2]
                  %s1105 = scalar_lea.vmem %s1087, %s1103
                $region78: #{cnn_rnn_forward.7} parent=65 // loop_footer
                  %s1091 = sadd.s32 %s1089, 1
                $region79: #{cnn_rnn_forward.7} parent=65 // loop_footer_branch
                  %1088 = sbr.rel target = $region75
                $region80: #{cnn_rnn_forward.7} parent=65 // loop_exit
                  _
              $region66: #{cnn_rnn_forward.7} parent=43 // pred_fallthru
                _
              // Predicated region
              $region81: #{cnn_rnn_forward.7} parent=43 // pred_check
                _
              $region82: #{cnn_rnn_forward.7} parent=43 // pred_check_branch
                %1107 = sbr.rel target = $region84
              $region83: #{cnn_rnn_forward.7} parent=43 // pred_region
                _
              $region84: #{cnn_rnn_forward.7} parent=43 // pred_fallthru
                _
            $region44: #{cnn_rnn_forward.7} parent=39 // pred_fallthru
              _
            // Predicated region
            $region45: #{cnn_rnn_forward.7} parent=39 // pred_check
              _
            $region46: #{cnn_rnn_forward.7} parent=39 // pred_check_branch
              %824 = sbr.rel target = $region48
            $region47: #{cnn_rnn_forward.7} parent=39 // pred_region
              %s826 = sdiv.u32.pop %s813, 48
              %s827 = srem.u32.pop %s813, 48
              // While loop
              $region49: #{cnn_rnn_forward.7} parent=47 // loop_pre_header
                _
              $region50: #{cnn_rnn_forward.7} parent=47 // loop_header
                %s829 = sphi 0, %s831
                %p830 = scmp.ge.s32.totalorder %s829, %s826
                %s834 = sphi 0, %s935
                %s835 = sphi %s806, %s938
                %s836 = sphi %s817, %s939
              $region51: #{cnn_rnn_forward.7} parent=47 // loop_header_branch
                %833 = sbr.rel (%p830) target = $region55
              $region52: #{cnn_rnn_forward.7} parent=47 // loop_body
                %v837 = vld [vmem:[%s835] sm:$0xff]
                %838 = vst [vmem:[%s836] sm:$0xff] %v837
                %v839 = vld [vmem:[%s835 + $0x8] sm:$0xff]
                %840 = vst [vmem:[%s836 + $0x8] sm:$0xff] %v839
                %v841 = vld [vmem:[%s835 + $0x10] sm:$0xff]
                %842 = vst [vmem:[%s836 + $0x10] sm:$0xff] %v841
                %v843 = vld [vmem:[%s835 + $0x18] sm:$0xff]
                %844 = vst [vmem:[%s836 + $0x18] sm:$0xff] %v843
                %v845 = vld [vmem:[%s835 + $0x20] sm:$0xff]
                %846 = vst [vmem:[%s836 + $0x20] sm:$0xff] %v845
                %v847 = vld [vmem:[%s835 + $0x28] sm:$0xff]
                %848 = vst [vmem:[%s836 + $0x28] sm:$0xff] %v847
                %v849 = vld [vmem:[%s835 + $0x30] sm:$0xff]
                %850 = vst [vmem:[%s836 + $0x30] sm:$0xff] %v849
                %v851 = vld [vmem:[%s835 + $0x38] sm:$0xff]
                %852 = vst [vmem:[%s836 + $0x38] sm:$0xff] %v851
                %v853 = vld [vmem:[%s835 + $0x40] sm:$0xff]
                %854 = vst [vmem:[%s836 + $0x40] sm:$0xff] %v853
                %v855 = vld [vmem:[%s835 + $0x48] sm:$0xff]
                %856 = vst [vmem:[%s836 + $0x48] sm:$0xff] %v855
                %v857 = vld [vmem:[%s835 + $0x50] sm:$0xff]
                %858 = vst [vmem:[%s836 + $0x50] sm:$0xff] %v857
                %v859 = vld [vmem:[%s835 + $0x58] sm:$0xff]
                %860 = vst [vmem:[%s836 + $0x58] sm:$0xff] %v859
                %v861 = vld [vmem:[%s835 + $0x60] sm:$0xff]
                %862 = vst [vmem:[%s836 + $0x60] sm:$0xff] %v861
                %v863 = vld [vmem:[%s835 + $0x68] sm:$0xff]
                %864 = vst [vmem:[%s836 + $0x68] sm:$0xff] %v863
                %v865 = vld [vmem:[%s835 + $0x70] sm:$0xff]
                %866 = vst [vmem:[%s836 + $0x70] sm:$0xff] %v865
                %v867 = vld [vmem:[%s835 + $0x78] sm:$0xff]
                %868 = vst [vmem:[%s836 + $0x78] sm:$0xff] %v867
                %v869 = vld [vmem:[%s835 + $0x80] sm:$0xff]
                %870 = vst [vmem:[%s836 + $0x80] sm:$0xff] %v869
                %v871 = vld [vmem:[%s835 + $0x88] sm:$0xff]
                %872 = vst [vmem:[%s836 + $0x88] sm:$0xff] %v871
                %v873 = vld [vmem:[%s835 + $0x90] sm:$0xff]
                %874 = vst [vmem:[%s836 + $0x90] sm:$0xff] %v873
                %v875 = vld [vmem:[%s835 + $0x98] sm:$0xff]
                %876 = vst [vmem:[%s836 + $0x98] sm:$0xff] %v875
                %v877 = vld [vmem:[%s835 + $0xa0] sm:$0xff]
                %878 = vst [vmem:[%s836 + $0xa0] sm:$0xff] %v877
                %v879 = vld [vmem:[%s835 + $0xa8] sm:$0xff]
                %880 = vst [vmem:[%s836 + $0xa8] sm:$0xff] %v879
                %v881 = vld [vmem:[%s835 + $0xb0] sm:$0xff]
                %882 = vst [vmem:[%s836 + $0xb0] sm:$0xff] %v881
                %v883 = vld [vmem:[%s835 + $0xb8] sm:$0xff]
                %884 = vst [vmem:[%s836 + $0xb8] sm:$0xff] %v883
                %v885 = vld [vmem:[%s835 + $0xc0] sm:$0xff]
                %886 = vst [vmem:[%s836 + $0xc0] sm:$0xff] %v885
                %v887 = vld [vmem:[%s835 + $0xc8] sm:$0xff]
                %888 = vst [vmem:[%s836 + $0xc8] sm:$0xff] %v887
                %v889 = vld [vmem:[%s835 + $0xd0] sm:$0xff]
                %890 = vst [vmem:[%s836 + $0xd0] sm:$0xff] %v889
                %v891 = vld [vmem:[%s835 + $0xd8] sm:$0xff]
                %892 = vst [vmem:[%s836 + $0xd8] sm:$0xff] %v891
                %v893 = vld [vmem:[%s835 + $0xe0] sm:$0xff]
                %894 = vst [vmem:[%s836 + $0xe0] sm:$0xff] %v893
                %v895 = vld [vmem:[%s835 + $0xe8] sm:$0xff]
                %896 = vst [vmem:[%s836 + $0xe8] sm:$0xff] %v895
                %v897 = vld [vmem:[%s835 + $0xf0] sm:$0xff]
                %898 = vst [vmem:[%s836 + $0xf0] sm:$0xff] %v897
                %v899 = vld [vmem:[%s835 + $0xf8] sm:$0xff]
                %900 = vst [vmem:[%s836 + $0xf8] sm:$0xff] %v899
                %v901 = vld [vmem:[%s835 + $0x100] sm:$0xff]
                %902 = vst [vmem:[%s836 + $0x100] sm:$0xff] %v901
                %v903 = vld [vmem:[%s835 + $0x108] sm:$0xff]
                %904 = vst [vmem:[%s836 + $0x108] sm:$0xff] %v903
                %v905 = vld [vmem:[%s835 + $0x110] sm:$0xff]
                %906 = vst [vmem:[%s836 + $0x110] sm:$0xff] %v905
                %v907 = vld [vmem:[%s835 + $0x118] sm:$0xff]
                %908 = vst [vmem:[%s836 + $0x118] sm:$0xff] %v907
                %v909 = vld [vmem:[%s835 + $0x120] sm:$0xff]
                %910 = vst [vmem:[%s836 + $0x120] sm:$0xff] %v909
                %v911 = vld [vmem:[%s835 + $0x128] sm:$0xff]
                %912 = vst [vmem:[%s836 + $0x128] sm:$0xff] %v911
                %v913 = vld [vmem:[%s835 + $0x130] sm:$0xff]
                %914 = vst [vmem:[%s836 + $0x130] sm:$0xff] %v913
                %v915 = vld [vmem:[%s835 + $0x138] sm:$0xff]
                %916 = vst [vmem:[%s836 + $0x138] sm:$0xff] %v915
                %v917 = vld [vmem:[%s835 + $0x140] sm:$0xff]
                %918 = vst [vmem:[%s836 + $0x140] sm:$0xff] %v917
                %v919 = vld [vmem:[%s835 + $0x148] sm:$0xff]
                %920 = vst [vmem:[%s836 + $0x148] sm:$0xff] %v919
                %v921 = vld [vmem:[%s835 + $0x150] sm:$0xff]
                %922 = vst [vmem:[%s836 + $0x150] sm:$0xff] %v921
                %v923 = vld [vmem:[%s835 + $0x158] sm:$0xff]
                %924 = vst [vmem:[%s836 + $0x158] sm:$0xff] %v923
                %v925 = vld [vmem:[%s835 + $0x160] sm:$0xff]
                %926 = vst [vmem:[%s836 + $0x160] sm:$0xff] %v925
                %v927 = vld [vmem:[%s835 + $0x168] sm:$0xff]
                %928 = vst [vmem:[%s836 + $0x168] sm:$0xff] %v927
                %v929 = vld [vmem:[%s835 + $0x170] sm:$0xff]
                %930 = vst [vmem:[%s836 + $0x170] sm:$0xff] %v929
                %v931 = vld [vmem:[%s835 + $0x178] sm:$0xff]
                %932 = vst [vmem:[%s836 + $0x178] sm:$0xff] %v931
                %s933 = sadd.s32 1, %s834
                %p934 = scmp.ge.s32.totalorder %s933, %s826
                %s935 = scalar_select %p934, 0, %s933
                %s936 = smul.u32 %s935, 384
                %s937 = smul.u32 %s935, 384
                %s938 = scalar_lea.vmem %s806, %s936 [#allocation2]
                %s939 = scalar_lea.vmem %s817, %s937
              $region53: #{cnn_rnn_forward.7} parent=47 // loop_footer
                %s831 = sadd.s32 %s829, 1
              $region54: #{cnn_rnn_forward.7} parent=47 // loop_footer_branch
                %828 = sbr.rel target = $region50
              $region55: #{cnn_rnn_forward.7} parent=47 // loop_exit
                _
              %s940 = sdiv.u32.pop %s813, 48
              %s941 = srem.u32.pop %s813, 48
              %s942 = smul.u32 %s940, 48
              %s943 = smul.u32 8, %s942
              %s944 = scalar_lea.vmem %s806, %s943 [#allocation2]
              %s945 = smul.u32 8, %s942
              %s946 = scalar_lea.vmem %s817, %s945
              // While loop
              $region56: #{cnn_rnn_forward.7} parent=47 // loop_pre_header
                _
              $region57: #{cnn_rnn_forward.7} parent=47 // loop_header
                %s948 = sphi 0, %s950
                %p949 = scmp.ge.s32.totalorder %s948, %s941
                %s953 = sphi 0, %s960
                %s954 = sphi %s944, %s963
                %s955 = sphi %s946, %s964
              $region58: #{cnn_rnn_forward.7} parent=47 // loop_header_branch
                %952 = sbr.rel (%p949) target = $region62
              $region59: #{cnn_rnn_forward.7} parent=47 // loop_body
                %v956 = vld [vmem:[%s954] sm:$0xff]
                %957 = vst [vmem:[%s955] sm:$0xff] %v956
                %s958 = sadd.s32 1, %s953
                %p959 = scmp.ge.s32.totalorder %s958, %s941
                %s960 = scalar_select %p959, 0, %s958
                %s961 = smul.u32 %s960, 8
                %s962 = smul.u32 %s960, 8
                %s963 = scalar_lea.vmem %s944, %s961 [#allocation2]
                %s964 = scalar_lea.vmem %s946, %s962
              $region60: #{cnn_rnn_forward.7} parent=47 // loop_footer
                %s950 = sadd.s32 %s948, 1
              $region61: #{cnn_rnn_forward.7} parent=47 // loop_footer_branch
                %947 = sbr.rel target = $region57
              $region62: #{cnn_rnn_forward.7} parent=47 // loop_exit
                _
            $region48: #{cnn_rnn_forward.7} parent=39 // pred_fallthru
              _
          $region40: #{cnn_rnn_forward.7} parent=35 // pred_fallthru
            _
          %1108 = vnop
        $region36: #{cnn_rnn_forward.7} parent=31 // pred_fallthru
          _
      $region32: #{cnn_rnn_forward.7} parent=5 // pred_fallthru
        _
      %p1109 = scmp.le.s32.totalorder 2, %s9
      // Predicated region
      $region85: #{cnn_rnn_forward.7} parent=5 // pred_check
        %p1110 = pneg %p1109
      $region86: #{cnn_rnn_forward.7} parent=5 // pred_check_branch
        %1112 = sbr.rel (%p1110) target = $region88
      $region87: #{cnn_rnn_forward.7} parent=5 // pred_region
        %s1113 = ssub.s32 %s9, 2
        // Predicated region
        $region89: #{cnn_rnn_forward.7} parent=87 // pred_check
          %p1114 = pneg %p106
        $region90: #{cnn_rnn_forward.7} parent=87 // pred_check_branch
          %1116 = sbr.rel (%p1114) target = $region92
        $region91: #{cnn_rnn_forward.7} parent=87 // pred_region
          %s1117 = sand.u32 %s91, 1
          %s1118 = sand.u32 %s91, 1
          %s1119 = smul.addr %s1118, 384
          %s1120 = scalar_lea.vmem [#allocation2], %s1119
        $region92: #{cnn_rnn_forward.7} parent=87 // pred_fallthru
          _
      $region88: #{cnn_rnn_forward.7} parent=5 // pred_fallthru
        _
    $region6: #{cnn_rnn_forward.7} parent=1 // loop_footer
      %s13 = sadd.s32 1, %s9
    $region7: #{cnn_rnn_forward.7} parent=1 // loop_footer_branch
      %8 = sbr.rel target = $region3
    $region8: #{cnn_rnn_forward.7} parent=1 // loop_exit
      _

// kernel: cnn_rnn_forward.9
$region0: #{cnn_rnn_forward.9}
  #allocation0 [shape = 'u32[]', space=smem, size = 0x4, offset = 0x4, fixed_abs, tag = 'smem constant byte address 0x4 - core index']
  #allocation1 [shape = 'u32[144,128]{1,0:T(1,128)}', space=vmem, size = 0x12000, scoped, tag = 'internal scratch']
  #allocation2 [shape = 'f32[2,16]{1,0:T(2,128)}', space=vmem, size = 0x400, scoped, tag = 'scratch operand']
  #allocation3 [shape = 'f32[2,8]{1,0:T(2,128)}', space=vmem, size = 0x400, scoped, tag = 'scratch operand']
  %s0 = inlined_call_operand.vmem [shape: f32[4,2,48], index: 0, kind: input, shape index: {}]
  %s1 = inlined_call_operand.vmem [shape: f32[16,48], index: 1, kind: input, shape index: {}]
  %s2 = inlined_call_operand.vmem [shape: f32[1,48], index: 2, kind: input, shape index: {}]
  %s3 = inlined_call_operand.vmem [shape: f32[16,24], index: 3, kind: input, shape index: {}]
  %s4 = inlined_call_operand.vmem [shape: f32[1,24], index: 4, kind: input, shape index: {}]
  %s5 = inlined_call_operand.vmem [shape: f32[8,24], index: 5, kind: input, shape index: {}]
  %s6 = inlined_call_operand.vmem [shape: f32[1,24], index: 6, kind: input, shape index: {}]
  %s7 = inlined_call_operand.vmem [shape: f32[8,5], index: 7, kind: input, shape index: {}]
  %s8 = inlined_call_operand.vmem [shape: f32[1,5], index: 8, kind: input, shape index: {}]
  %s9 = inlined_call_operand.hbm [shape: f32[2,5], index: 9, kind: output, shape index: {}]
  %s10 = sld [smem:[#allocation0]]
  $region77: #{cnn_rnn_forward.9} parent=0
    _
  %s12 = ssub.s32 1, %s10
  %s13 = scalar_select 0, %s12, %s10
  $region1: #{cnn_rnn_forward.9} parent=0
    #allocation4 [shape = 'u8[1024]{0}', space=vmem, size = 0x400, scoped, tag = 'output window, operand 0, single buffered']
    #allocation5 [shape = 's32[2]{0}', space=sflag, size = 0x8, scoped, tag = 'scoped memory for cnn_rnn_forward.9']
    %14 = vsyncpa [#allocation5], 0
    loop: start=0, step=1, limit=6
    $region2: #{cnn_rnn_forward.9} parent=1 // loop_pre_header
      _
    $region3: #{cnn_rnn_forward.9} parent=1 // loop_header
      %s16 = sphi 0, %s20
      %p17 = scmp.ge.s32.totalorder %s16, 6
      %s26 = sphi 0, %s28
      %s29 = sphi 0, %s26
      %s30 = sphi 0, %s29
      %s46 = sphi 0, %s30
      %s50 = sphi 0, %s50
      %s52 = sphi 0, %s50
      %s53 = sphi 0, %s52
      %s67 = sphi 0, %s53
      %s71 = sphi 0, %s71
      %s73 = sphi 0, %s71
      %s74 = sphi 0, %s73
      %s88 = sphi 0, %s74
      %s92 = sphi 0, %s92
      %s94 = sphi 0, %s92
      %s95 = sphi 0, %s94
      %s109 = sphi 0, %s95
      %s113 = sphi 0, %s113
      %s115 = sphi 0, %s113
      %s116 = sphi 0, %s115
      %s130 = sphi 0, %s116
      %s134 = sphi 0, %s134
      %s136 = sphi 0, %s134
      %s137 = sphi 0, %s136
      %s151 = sphi 0, %s137
      %s155 = sphi 0, %s155
      %s157 = sphi 0, %s155
      %s158 = sphi 0, %s157
      %s172 = sphi 0, %s158
      %s176 = sphi 0, %s176
      %s178 = sphi 0, %s176
      %s179 = sphi 0, %s178
      %s193 = sphi 0, %s179
      %s197 = sphi 0, %s197
      %s199 = sphi 0, %s197
      %s200 = sphi 0, %s199
      %s214 = sphi 0, %s200
      %s218 = sphi 0, %s218
      %s220 = sphi 0, %s218
      %s221 = sphi 0, %s220
      %s235 = sphi 0, %s221
    $region4: #{cnn_rnn_forward.9} parent=1 // loop_header_branch
      %19 = sbr.rel (%p17) target = $region8
    $region5: #{cnn_rnn_forward.9} parent=1 // loop_body
      %s21 = ssub.s32 %s16, 1
      %s22 = ssub.s32 %s16, 2
      %s23 = sadd.s32 %s16, 1
      %s24 = ssub.s32 %s16, %s23
      %p25 = scmp.eq.s32.totalorder %s24, 0
      %s27 = sadd.s32 %s26, 1
      %s28 = scalar_select %p25, %s26, %s27
      %p31 = pneg %p25
      %p32 = scmp.eq.s32.totalorder %s16, 3
      %p33 = por %p31, %p32
      %p34 = scmp.ne.s32.totalorder %s26, %s29
      %p35 = scmp.eq.s32.totalorder %s16, 0
      %p36 = por %p34, %p35
      %p37 = scmp.ne.s32.totalorder %s26, %s29
      %p38 = scmp.eq.s32.totalorder %s21, 3
      %p39 = por %p37, %p38
      %p40 = scmp.ne.s32.totalorder %s29, %s30
      %p41 = scmp.eq.s32.totalorder %s21, 0
      %p42 = por %p40, %p41
      %p43 = scmp.ne.s32.totalorder %s29, %s30
      %p44 = scmp.eq.s32.totalorder %s22, 3
      %p45 = por %p43, %p44
      %p47 = scmp.ne.s32.totalorder %s30, %s46
      %p48 = scmp.eq.s32.totalorder %s22, 0
      %p49 = por %p47, %p48
      %s51 = sadd.s32 %s50, 1
      %p54 = scmp.eq.s32.totalorder %s16, 3
      %p55 = scmp.ne.s32.totalorder %s50, %s52
      %p56 = scmp.eq.s32.totalorder %s16, 0
      %p57 = por %p55, %p56
      %p58 = scmp.ne.s32.totalorder %s50, %s52
      %p59 = scmp.eq.s32.totalorder %s21, 3
      %p60 = por %p58, %p59
      %p61 = scmp.ne.s32.totalorder %s52, %s53
      %p62 = scmp.eq.s32.totalorder %s21, 0
      %p63 = por %p61, %p62
      %p64 = scmp.ne.s32.totalorder %s52, %s53
      %p65 = scmp.eq.s32.totalorder %s22, 3
      %p66 = por %p64, %p65
      %p68 = scmp.ne.s32.totalorder %s53, %s67
      %p69 = scmp.eq.s32.totalorder %s22, 0
      %p70 = por %p68, %p69
      %s72 = sadd.s32 %s71, 1
      %p75 = scmp.eq.s32.totalorder %s16, 3
      %p76 = scmp.ne.s32.totalorder %s71, %s73
      %p77 = scmp.eq.s32.totalorder %s16, 0
      %p78 = por %p76, %p77
      %p79 = scmp.ne.s32.totalorder %s71, %s73
      %p80 = scmp.eq.s32.totalorder %s21, 3
      %p81 = por %p79, %p80
      %p82 = scmp.ne.s32.totalorder %s73, %s74
      %p83 = scmp.eq.s32.totalorder %s21, 0
      %p84 = por %p82, %p83
      %p85 = scmp.ne.s32.totalorder %s73, %s74
      %p86 = scmp.eq.s32.totalorder %s22, 3
      %p87 = por %p85, %p86
      %p89 = scmp.ne.s32.totalorder %s74, %s88
      %p90 = scmp.eq.s32.totalorder %s22, 0
      %p91 = por %p89, %p90
      %s93 = sadd.s32 %s92, 1
      %p96 = scmp.eq.s32.totalorder %s16, 3
      %p97 = scmp.ne.s32.totalorder %s92, %s94
      %p98 = scmp.eq.s32.totalorder %s16, 0
      %p99 = por %p97, %p98
      %p100 = scmp.ne.s32.totalorder %s92, %s94
      %p101 = scmp.eq.s32.totalorder %s21, 3
      %p102 = por %p100, %p101
      %p103 = scmp.ne.s32.totalorder %s94, %s95
      %p104 = scmp.eq.s32.totalorder %s21, 0
      %p105 = por %p103, %p104
      %p106 = scmp.ne.s32.totalorder %s94, %s95
      %p107 = scmp.eq.s32.totalorder %s22, 3
      %p108 = por %p106, %p107
      %p110 = scmp.ne.s32.totalorder %s95, %s109
      %p111 = scmp.eq.s32.totalorder %s22, 0
      %p112 = por %p110, %p111
      %s114 = sadd.s32 %s113, 1
      %p117 = scmp.eq.s32.totalorder %s16, 3
      %p118 = scmp.ne.s32.totalorder %s113, %s115
      %p119 = scmp.eq.s32.totalorder %s16, 0
      %p120 = por %p118, %p119
      %p121 = scmp.ne.s32.totalorder %s113, %s115
      %p122 = scmp.eq.s32.totalorder %s21, 3
      %p123 = por %p121, %p122
      %p124 = scmp.ne.s32.totalorder %s115, %s116
      %p125 = scmp.eq.s32.totalorder %s21, 0
      %p126 = por %p124, %p125
      %p127 = scmp.ne.s32.totalorder %s115, %s116
      %p128 = scmp.eq.s32.totalorder %s22, 3
      %p129 = por %p127, %p128
      %p131 = scmp.ne.s32.totalorder %s116, %s130
      %p132 = scmp.eq.s32.totalorder %s22, 0
      %p133 = por %p131, %p132
      %s135 = sadd.s32 %s134, 1
      %p138 = scmp.eq.s32.totalorder %s16, 3
      %p139 = scmp.ne.s32.totalorder %s134, %s136
      %p140 = scmp.eq.s32.totalorder %s16, 0
      %p141 = por %p139, %p140
      %p142 = scmp.ne.s32.totalorder %s134, %s136
      %p143 = scmp.eq.s32.totalorder %s21, 3
      %p144 = por %p142, %p143
      %p145 = scmp.ne.s32.totalorder %s136, %s137
      %p146 = scmp.eq.s32.totalorder %s21, 0
      %p147 = por %p145, %p146
      %p148 = scmp.ne.s32.totalorder %s136, %s137
      %p149 = scmp.eq.s32.totalorder %s22, 3
      %p150 = por %p148, %p149
      %p152 = scmp.ne.s32.totalorder %s137, %s151
      %p153 = scmp.eq.s32.totalorder %s22, 0
      %p154 = por %p152, %p153
      %s156 = sadd.s32 %s155, 1
      %p159 = scmp.eq.s32.totalorder %s16, 3
      %p160 = scmp.ne.s32.totalorder %s155, %s157
      %p161 = scmp.eq.s32.totalorder %s16, 0
      %p162 = por %p160, %p161
      %p163 = scmp.ne.s32.totalorder %s155, %s157
      %p164 = scmp.eq.s32.totalorder %s21, 3
      %p165 = por %p163, %p164
      %p166 = scmp.ne.s32.totalorder %s157, %s158
      %p167 = scmp.eq.s32.totalorder %s21, 0
      %p168 = por %p166, %p167
      %p169 = scmp.ne.s32.totalorder %s157, %s158
      %p170 = scmp.eq.s32.totalorder %s22, 3
      %p171 = por %p169, %p170
      %p173 = scmp.ne.s32.totalorder %s158, %s172
      %p174 = scmp.eq.s32.totalorder %s22, 0
      %p175 = por %p173, %p174
      %s177 = sadd.s32 %s176, 1
      %p180 = scmp.eq.s32.totalorder %s16, 3
      %p181 = scmp.ne.s32.totalorder %s176, %s178
      %p182 = scmp.eq.s32.totalorder %s16, 0
      %p183 = por %p181, %p182
      %p184 = scmp.ne.s32.totalorder %s176, %s178
      %p185 = scmp.eq.s32.totalorder %s21, 3
      %p186 = por %p184, %p185
      %p187 = scmp.ne.s32.totalorder %s178, %s179
      %p188 = scmp.eq.s32.totalorder %s21, 0
      %p189 = por %p187, %p188
      %p190 = scmp.ne.s32.totalorder %s178, %s179
      %p191 = scmp.eq.s32.totalorder %s22, 3
      %p192 = por %p190, %p191
      %p194 = scmp.ne.s32.totalorder %s179, %s193
      %p195 = scmp.eq.s32.totalorder %s22, 0
      %p196 = por %p194, %p195
      %s198 = sadd.s32 %s197, 1
      %p201 = scmp.eq.s32.totalorder %s16, 3
      %p202 = scmp.ne.s32.totalorder %s197, %s199
      %p203 = scmp.eq.s32.totalorder %s16, 0
      %p204 = por %p202, %p203
      %p205 = scmp.ne.s32.totalorder %s197, %s199
      %p206 = scmp.eq.s32.totalorder %s21, 3
      %p207 = por %p205, %p206
      %p208 = scmp.ne.s32.totalorder %s199, %s200
      %p209 = scmp.eq.s32.totalorder %s21, 0
      %p210 = por %p208, %p209
      %p211 = scmp.ne.s32.totalorder %s199, %s200
      %p212 = scmp.eq.s32.totalorder %s22, 3
      %p213 = por %p211, %p212
      %p215 = scmp.ne.s32.totalorder %s200, %s214
      %p216 = scmp.eq.s32.totalorder %s22, 0
      %p217 = por %p215, %p216
      %s219 = sadd.s32 %s218, 1
      %p222 = scmp.eq.s32.totalorder %s16, 3
      %p223 = scmp.ne.s32.totalorder %s218, %s220
      %p224 = scmp.eq.s32.totalorder %s16, 0
      %p225 = por %p223, %p224
      %p226 = scmp.ne.s32.totalorder %s218, %s220
      %p227 = scmp.eq.s32.totalorder %s21, 3
      %p228 = por %p226, %p227
      %p229 = scmp.ne.s32.totalorder %s220, %s221
      %p230 = scmp.eq.s32.totalorder %s21, 0
      %p231 = por %p229, %p230
      %p232 = scmp.ne.s32.totalorder %s220, %s221
      %p233 = scmp.eq.s32.totalorder %s22, 3
      %p234 = por %p232, %p233
      %p236 = scmp.ne.s32.totalorder %s221, %s235
      %p237 = scmp.eq.s32.totalorder %s22, 0
      %p238 = por %p236, %p237
      %p239 = scmp.le.s32.totalorder 1, %s16
      %p240 = scmp.lt.s32.totalorder %s16, 5
      %p241 = pnand %p239, %p240
      %p242 = pneg %p241
      // Predicated region
      $region9: #{cnn_rnn_forward.9} parent=5 // pred_check
        _
      $region10: #{cnn_rnn_forward.9} parent=5 // pred_check_branch
        %244 = sbr.rel (%p241) target = $region12
      $region11: #{cnn_rnn_forward.9} parent=5 // pred_region
        %s245 = ssub.s32 %s16, 1
        // Predicated region
        $region13: #{cnn_rnn_forward.9} parent=11 // pred_check
          %p246 = pneg %p63
        $region14: #{cnn_rnn_forward.9} parent=11 // pred_check_branch
          %248 = sbr.rel (%p246) target = $region16
        $region15: #{cnn_rnn_forward.9} parent=11 // pred_region
          _
        $region16: #{cnn_rnn_forward.9} parent=11 // pred_fallthru
          _
        // Predicated region
        $region17: #{cnn_rnn_forward.9} parent=11 // pred_check
          %p249 = pneg %p84
        $region18: #{cnn_rnn_forward.9} parent=11 // pred_check_branch
          %251 = sbr.rel (%p249) target = $region20
        $region19: #{cnn_rnn_forward.9} parent=11 // pred_region
          _
        $region20: #{cnn_rnn_forward.9} parent=11 // pred_fallthru
          _
        // Predicated region
        $region21: #{cnn_rnn_forward.9} parent=11 // pred_check
          %p252 = pneg %p105
        $region22: #{cnn_rnn_forward.9} parent=11 // pred_check_branch
          %254 = sbr.rel (%p252) target = $region24
        $region23: #{cnn_rnn_forward.9} parent=11 // pred_region
          _
        $region24: #{cnn_rnn_forward.9} parent=11 // pred_fallthru
          _
        // Predicated region
        $region25: #{cnn_rnn_forward.9} parent=11 // pred_check
          %p255 = pneg %p126
        $region26: #{cnn_rnn_forward.9} parent=11 // pred_check_branch
          %257 = sbr.rel (%p255) target = $region28
        $region27: #{cnn_rnn_forward.9} parent=11 // pred_region
          _
        $region28: #{cnn_rnn_forward.9} parent=11 // pred_fallthru
          _
        // Predicated region
        $region29: #{cnn_rnn_forward.9} parent=11 // pred_check
          %p258 = pneg %p147
        $region30: #{cnn_rnn_forward.9} parent=11 // pred_check_branch
          %260 = sbr.rel (%p258) target = $region32
        $region31: #{cnn_rnn_forward.9} parent=11 // pred_region
          _
        $region32: #{cnn_rnn_forward.9} parent=11 // pred_fallthru
          _
        // Predicated region
        $region33: #{cnn_rnn_forward.9} parent=11 // pred_check
          %p261 = pneg %p168
        $region34: #{cnn_rnn_forward.9} parent=11 // pred_check_branch
          %263 = sbr.rel (%p261) target = $region36
        $region35: #{cnn_rnn_forward.9} parent=11 // pred_region
          _
        $region36: #{cnn_rnn_forward.9} parent=11 // pred_fallthru
          _
        // Predicated region
        $region37: #{cnn_rnn_forward.9} parent=11 // pred_check
          %p264 = pneg %p189
        $region38: #{cnn_rnn_forward.9} parent=11 // pred_check_branch
          %266 = sbr.rel (%p264) target = $region40
        $region39: #{cnn_rnn_forward.9} parent=11 // pred_region
          _
        $region40: #{cnn_rnn_forward.9} parent=11 // pred_fallthru
          _
        // Predicated region
        $region41: #{cnn_rnn_forward.9} parent=11 // pred_check
          %p267 = pneg %p210
        $region42: #{cnn_rnn_forward.9} parent=11 // pred_check_branch
          %269 = sbr.rel (%p267) target = $region44
        $region43: #{cnn_rnn_forward.9} parent=11 // pred_region
          _
        $region44: #{cnn_rnn_forward.9} parent=11 // pred_fallthru
          _
      $region12: #{cnn_rnn_forward.9} parent=5 // pred_fallthru
        _
      %p270 = scmp.lt.s32.totalorder %s16, 4
      // Predicated region
      $region45: #{cnn_rnn_forward.9} parent=5 // pred_check
        %p271 = pneg %p270
      $region46: #{cnn_rnn_forward.9} parent=5 // pred_check_branch
        %273 = sbr.rel (%p271) target = $region48
      $region47: #{cnn_rnn_forward.9} parent=5 // pred_region
        // Predicated region
        $region49: #{cnn_rnn_forward.9} parent=47 // pred_check
          %p274 = pneg %p36
        $region50: #{cnn_rnn_forward.9} parent=47 // pred_check_branch
          %276 = sbr.rel (%p274) target = $region52
        $region51: #{cnn_rnn_forward.9} parent=47 // pred_region
          %p277 = scmp.lt.s32.totalorder %s16, 3
          %s278 = scalar_select %p277, %s16, 3
          %s279 = smul.addr %s278, 2
          %s280 = scalar_lea.vmem %s0, %s279
        $region52: #{cnn_rnn_forward.9} parent=47 // pred_fallthru
          _
      $region48: #{cnn_rnn_forward.9} parent=5 // pred_fallthru
        _
      %p281 = scmp.le.s32.totalorder 1, %s16
      %p282 = scmp.lt.s32.totalorder %s16, 5
      %p283 = pnand %p281, %p282
      %p284 = pneg %p283
      // Predicated region
      $region53: #{cnn_rnn_forward.9} parent=5 // pred_check
        _
      $region54: #{cnn_rnn_forward.9} parent=5 // pred_check_branch
        %286 = sbr.rel (%p283) target = $region56
      $region55: #{cnn_rnn_forward.9} parent=5 // pred_region
        %s287 = ssub.s32 %s16, 1
        %p288 = scmp.lt.s32.totalorder %s21, 3
        %s289 = scalar_select %p288, %s21, 3
        %s290 = smul.addr %s289, 2
        %s291 = scalar_lea.vmem %s0, %s290
        %p292 = pneg %p42
        %p293 = pneg %p39
        %p294 = pneg %p63
        %p295 = pneg %p60
        %p296 = pneg %p84
        %p297 = pneg %p81
        %p298 = pneg %p105
        %p299 = pneg %p102
        %p300 = pneg %p126
        %p301 = pneg %p123
        %p302 = pneg %p147
        %p303 = pneg %p144
        %p304 = pneg %p168
        %p305 = pneg %p165
        %p306 = pneg %p189
        %p307 = pneg %p186
        %p308 = pneg %p210
        %p309 = pneg %p207
        %p310 = pneg %p231
        %p311 = pneg %p228
        %p312 = scmp.lt.s32.totalorder %s21, 3
        %s313 = scalar_select %p312, %s21, 3
        %s314 = smul.addr %s313, 2
        %s315 = scalar_lea.vmem %s0, %s314
        %p316 = scmp.eq.s32.totalorder %s21, 0
        // Predicated region
        $region57: #{cnn_rnn_forward.9} parent=55 // pred_check
          %p317 = pneg %p316
        $region58: #{cnn_rnn_forward.9} parent=55 // pred_check_branch
          %319 = sbr.rel (%p317) target = $region60
        $region59: #{cnn_rnn_forward.9} parent=55 // pred_region
          %vm320 = vcmask 123904
          %321 = vst.msk [vmem:[#allocation2] sm:$0x3] %vm320, 0.0
          %vm322 = vcmask 58368
          %323 = vst.msk [vmem:[#allocation3] sm:$0x3] %vm322, 0.0
        $region60: #{cnn_rnn_forward.9} parent=55 // pred_fallthru
          _
        %v324 = vld [vmem:[%s315] sm:$0x3]
        %v325 = vld [vmem:[#allocation2] sm:$0x3]
        %v326 = vld [vmem:[%s1] sm:$0xff]
        %v327 = vld [vmem:[%s1 + $0x8] sm:$0xff]
        %v328 = vld [vmem:[%s2] sm:$0x1]
        %v330 = vlaneseq
        %v331 = vshrl.u32 %v330, 7
        %v332 = vsub.s32 0, %v331
        %v333 = vrot.slane %v328, %v332
        %vm335 = vcmask 130048
        %v337 = vsel %vm335, %v325, 0
        %339 = vmatprep.subr.mxu0 0.0
        %340 = vmatpush1.msra.mxu0 %v326
        %341 = vmatprep.subr.mxu0 0.0
        %342 = vmatpush1.msra.mxu0 %v327
        %343 = vmatprep.subr.mxu0 0.0
        %344 = vmatpush1.msra.mxu0 0.0
        %345 = vmatprep.subr.mxu0 0.0
        %346 = vmatpush1.msra.mxu0 0.0
        %347 = vmatprep.subr.mxu0 0.0
        %348 = vmatpush1.msra.mxu0 0.0
        %349 = vmatprep.subr.mxu0 0.0
        %350 = vmatpush1.msra.mxu0 0.0
        %351 = vmatprep.subr.mxu0 0.0
        %352 = vmatpush1.msra.mxu0 0.0
        %353 = vmatprep.subr.mxu0 0.0
        %354 = vmatpush1.msra.mxu0 0.0
        %355 = vmatprep.subr.mxu0 0.0
        %356 = vmatpush1.msra.mxu0 0.0
        %357 = vmatprep.subr.mxu0 0.0
        %358 = vmatpush1.msra.mxu0 0.0
        %359 = vmatprep.subr.mxu0 0.0
        %360 = vmatpush1.msra.mxu0 0.0
        %361 = vmatprep.subr.mxu0 0.0
        %362 = vmatpush1.msra.mxu0 0.0
        %363 = vmatprep.subr.mxu0 0.0
        %364 = vmatpush1.msra.mxu0 0.0
        %365 = vmatprep.subr.mxu0 0.0
        %366 = vmatpush1.msra.mxu0 0.0
        %367 = vmatprep.subr.mxu0 0.0
        %368 = vmatpush1.msra.mxu0 0.0
        %369 = vmatprep.subr.mxu0 0.0
        %370 = vmatpush1.msra.mxu0 0.0
        %371 = vmatprep.subr.mxu0 0.0
        %372 = vmatpush1.msra.mxu0 0.0
        %373 = vmatprep.subr.mxu0 0.0
        %374 = vmatpush1.msra.mxu0 0.0
        %375 = vmatprep.subr.mxu0 0.0
        %376 = vmatpush1.msra.mxu0 0.0
        %377 = vmatprep.subr.mxu0 0.0
        %378 = vmatpush1.msra.mxu0 0.0
        %379 = vmatprep.subr.mxu0 0.0
        %380 = vmatpush1.msra.mxu0 0.0
        %381 = vmatprep.subr.mxu0 0.0
        %382 = vmatpush1.msra.mxu0 0.0
        %383 = vmatprep.subr.mxu0 0.0
        %384 = vmatpush1.msra.mxu0 0.0
        %385 = vmatprep.subr.mxu0 0.0
        %386 = vmatpush1.msra.mxu0 0.0
        %387 = vmatprep.subr.mxu0 0.0
        %388 = vmatpush1.msra.mxu0 0.0
        %389 = vmatprep.subr.mxu0 0.0
        %390 = vmatpush1.msra.mxu0 0.0
        %391 = vmatprep.subr.mxu0 0.0
        %392 = vmatpush1.msra.mxu0 0.0
        %393 = vmatprep.subr.mxu0 0.0
        %394 = vmatpush1.msra.mxu0 0.0
        %395 = vmatprep.subr.mxu0 0.0
        %396 = vmatpush1.msra.mxu0 0.0
        %397 = vmatprep.subr.mxu0 0.0
        %398 = vmatpush1.msra.mxu0 0.0
        %399 = vmatprep.subr.mxu0 0.0
        %400 = vmatpush1.msra.mxu0 0.0
        %401 = vmatprep.subr.mxu0 0.0
        %402 = vmatpush1.msra.mxu0 0.0
        %403 = vmatprep.mubr.f32.mxu0 0.0
        %404 = vmatmul.mubr.f32.gmra.mrb[0].mxu0 %v337
        %v405 = vpop.f32.mrb[0].mxu0
        %v406 = vadd.f32 %v333, %v405
        %v407 = vpop.f32.mrb[0].mxu0
        %408 = vdwg.mxu0
        %v409 = vadd.f32 %v324, %v406
        %v410 = vxor.u32 %v409, 2147483648
        %v411 = vmul.f32 %v410, 1.442695
        %v412 = vpow.pop %v411
        %v413 = vadd.f32 %v412, 1.0
        %v414 = vrcp.pop %v413
        %v415 = vmul.f32 1.0, %v414
        %417 = vrot.lane.b32.xlu0 %v406, 96
        %v418 = vpop.permute.xlu0 %417
        %v420 = vmul.f32 %v415, %v418
        %422 = vrot.lane.b32.xlu0 %v420, 32
        %v423 = vpop.permute.xlu0 %422
        %v425 = vadd.f32 %v324, %v423
        %v426 = vtanh.pop %v425
        %v427 = vsub.f32 1.0, %v415
        %429 = vrot.lane.b32.xlu0 %v426, 112
        %v430 = vpop.permute.xlu0 %429
        %v432 = vmul.f32 %v427, %v430
        %433 = vrot.lane.b32.xlu0 %v325, 16
        %v434 = vpop.permute.xlu0 %433
        %v436 = vmul.f32 %v415, %v434
        %v437 = vadd.f32 %v432, %v436
        %439 = vrot.lane.b32.xlu0 %v437, 112
        %v440 = vpop.permute.xlu0 %439
        %vm442 = vcmask 123904
        %443 = vst.msk [vmem:[#allocation2] sm:$0x3] %vm442, %v440
        %v444 = vld [vmem:[%s3] sm:$0xff]
        %v445 = vld [vmem:[%s3 + $0x8] sm:$0xff]
        %v446 = vld [vmem:[%s4] sm:$0x1]
        %v448 = vlaneseq
        %v449 = vshrl.u32 %v448, 7
        %v450 = vsub.s32 0, %v449
        %v451 = vrot.slane %v446, %v450
        %v453 = vsel %vm335, %v440, 0
        %455 = vmatprep.subr.mxu0 0.0
        %456 = vmatpush1.msra.mxu0 %v444
        %457 = vmatprep.subr.mxu0 0.0
        %458 = vmatpush1.msra.mxu0 %v445
        %459 = vmatprep.subr.mxu0 0.0
        %460 = vmatpush1.msra.mxu0 0.0
        %461 = vmatprep.subr.mxu0 0.0
        %462 = vmatpush1.msra.mxu0 0.0
        %463 = vmatprep.subr.mxu0 0.0
        %464 = vmatpush1.msra.mxu0 0.0
        %465 = vmatprep.subr.mxu0 0.0
        %466 = vmatpush1.msra.mxu0 0.0
        %467 = vmatprep.subr.mxu0 0.0
        %468 = vmatpush1.msra.mxu0 0.0
        %469 = vmatprep.subr.mxu0 0.0
        %470 = vmatpush1.msra.mxu0 0.0
        %471 = vmatprep.subr.mxu0 0.0
        %472 = vmatpush1.msra.mxu0 0.0
        %473 = vmatprep.subr.mxu0 0.0
        %474 = vmatpush1.msra.mxu0 0.0
        %475 = vmatprep.subr.mxu0 0.0
        %476 = vmatpush1.msra.mxu0 0.0
        %477 = vmatprep.subr.mxu0 0.0
        %478 = vmatpush1.msra.mxu0 0.0
        %479 = vmatprep.subr.mxu0 0.0
        %480 = vmatpush1.msra.mxu0 0.0
        %481 = vmatprep.subr.mxu0 0.0
        %482 = vmatpush1.msra.mxu0 0.0
        %483 = vmatprep.subr.mxu0 0.0
        %484 = vmatpush1.msra.mxu0 0.0
        %485 = vmatprep.subr.mxu0 0.0
        %486 = vmatpush1.msra.mxu0 0.0
        %487 = vmatprep.subr.mxu0 0.0
        %488 = vmatpush1.msra.mxu0 0.0
        %489 = vmatprep.subr.mxu0 0.0
        %490 = vmatpush1.msra.mxu0 0.0
        %491 = vmatprep.subr.mxu0 0.0
        %492 = vmatpush1.msra.mxu0 0.0
        %493 = vmatprep.subr.mxu0 0.0
        %494 = vmatpush1.msra.mxu0 0.0
        %495 = vmatprep.subr.mxu0 0.0
        %496 = vmatpush1.msra.mxu0 0.0
        %497 = vmatprep.subr.mxu0 0.0
        %498 = vmatpush1.msra.mxu0 0.0
        %499 = vmatprep.subr.mxu0 0.0
        %500 = vmatpush1.msra.mxu0 0.0
        %501 = vmatprep.subr.mxu0 0.0
        %502 = vmatpush1.msra.mxu0 0.0
        %503 = vmatprep.subr.mxu0 0.0
        %504 = vmatpush1.msra.mxu0 0.0
        %505 = vmatprep.subr.mxu0 0.0
        %506 = vmatpush1.msra.mxu0 0.0
        %507 = vmatprep.subr.mxu0 0.0
        %508 = vmatpush1.msra.mxu0 0.0
        %509 = vmatprep.subr.mxu0 0.0
        %510 = vmatpush1.msra.mxu0 0.0
        %511 = vmatprep.subr.mxu0 0.0
        %512 = vmatpush1.msra.mxu0 0.0
        %513 = vmatprep.subr.mxu0 0.0
        %514 = vmatpush1.msra.mxu0 0.0
        %515 = vmatprep.subr.mxu0 0.0
        %516 = vmatpush1.msra.mxu0 0.0
        %517 = vmatprep.subr.mxu0 0.0
        %518 = vmatpush1.msra.mxu0 0.0
        %519 = vmatprep.mubr.f32.mxu0 0.0
        %520 = vmatmul.mubr.f32.gmra.mrb[0].mxu0 %v453
        %v521 = vpop.f32.mrb[0].mxu0
        %v522 = vadd.f32 %v451, %v521
        %v523 = vpop.f32.mrb[0].mxu0
        %524 = vdwg.mxu0
        %v525 = vld [vmem:[#allocation3] sm:$0x3]
        %v526 = vld [vmem:[%s5] sm:$0xff]
        %v527 = vld [vmem:[%s6] sm:$0x1]
        %v529 = vlaneseq
        %v530 = vshrl.u32 %v529, 7
        %v531 = vsub.s32 0, %v530
        %v532 = vrot.slane %v527, %v531
        %vm534 = vcmask 64512
        %v536 = vsel %vm534, %v525, 0
        %538 = vmatprep.subr.mxu0 0.0
        %539 = vmatpush1.msra.mxu0 %v526
        %540 = vmatprep.subr.mxu0 0.0
        %541 = vmatpush1.msra.mxu0 0.0
        %542 = vmatprep.subr.mxu0 0.0
        %543 = vmatpush1.msra.mxu0 0.0
        %544 = vmatprep.subr.mxu0 0.0
        %545 = vmatpush1.msra.mxu0 0.0
        %546 = vmatprep.subr.mxu0 0.0
        %547 = vmatpush1.msra.mxu0 0.0
        %548 = vmatprep.subr.mxu0 0.0
        %549 = vmatpush1.msra.mxu0 0.0
        %550 = vmatprep.subr.mxu0 0.0
        %551 = vmatpush1.msra.mxu0 0.0
        %552 = vmatprep.subr.mxu0 0.0
        %553 = vmatpush1.msra.mxu0 0.0
        %554 = vmatprep.subr.mxu0 0.0
        %555 = vmatpush1.msra.mxu0 0.0
        %556 = vmatprep.subr.mxu0 0.0
        %557 = vmatpush1.msra.mxu0 0.0
        %558 = vmatprep.subr.mxu0 0.0
        %559 = vmatpush1.msra.mxu0 0.0
        %560 = vmatprep.subr.mxu0 0.0
        %561 = vmatpush1.msra.mxu0 0.0
        %562 = vmatprep.subr.mxu0 0.0
        %563 = vmatpush1.msra.mxu0 0.0
        %564 = vmatprep.subr.mxu0 0.0
        %565 = vmatpush1.msra.mxu0 0.0
        %566 = vmatprep.subr.mxu0 0.0
        %567 = vmatpush1.msra.mxu0 0.0
        %568 = vmatprep.subr.mxu0 0.0
        %569 = vmatpush1.msra.mxu0 0.0
        %570 = vmatprep.subr.mxu0 0.0
        %571 = vmatpush1.msra.mxu0 0.0
        %572 = vmatprep.subr.mxu0 0.0
        %573 = vmatpush1.msra.mxu0 0.0
        %574 = vmatprep.subr.mxu0 0.0
        %575 = vmatpush1.msra.mxu0 0.0
        %576 = vmatprep.subr.mxu0 0.0
        %577 = vmatpush1.msra.mxu0 0.0
        %578 = vmatprep.subr.mxu0 0.0
        %579 = vmatpush1.msra.mxu0 0.0
        %580 = vmatprep.subr.mxu0 0.0
        %581 = vmatpush1.msra.mxu0 0.0
        %582 = vmatprep.subr.mxu0 0.0
        %583 = vmatpush1.msra.mxu0 0.0
        %584 = vmatprep.subr.mxu0 0.0
        %585 = vmatpush1.msra.mxu0 0.0
        %586 = vmatprep.subr.mxu0 0.0
        %587 = vmatpush1.msra.mxu0 0.0
        %588 = vmatprep.subr.mxu0 0.0
        %589 = vmatpush1.msra.mxu0 0.0
        %590 = vmatprep.subr.mxu0 0.0
        %591 = vmatpush1.msra.mxu0 0.0
        %592 = vmatprep.subr.mxu0 0.0
        %593 = vmatpush1.msra.mxu0 0.0
        %594 = vmatprep.subr.mxu0 0.0
        %595 = vmatpush1.msra.mxu0 0.0
        %596 = vmatprep.subr.mxu0 0.0
        %597 = vmatpush1.msra.mxu0 0.0
        %598 = vmatprep.subr.mxu0 0.0
        %599 = vmatpush1.msra.mxu0 0.0
        %600 = vmatprep.subr.mxu0 0.0
        %601 = vmatpush1.msra.mxu0 0.0
        %602 = vmatprep.mubr.f32.mxu0 0.0
        %603 = vmatmul.mubr.f32.gmra.mrb[0].mxu0 %v536
        %v604 = vpop.f32.mrb[0].mxu0
        %v605 = vadd.f32 %v532, %v604
        %v606 = vpop.f32.mrb[0].mxu0
        %607 = vdwg.mxu0
        %v608 = vadd.f32 %v522, %v605
        %v609 = vxor.u32 %v608, 2147483648
        %v610 = vmul.f32 %v609, 1.442695
        %v611 = vpow.pop %v610
        %v612 = vadd.f32 %v611, 1.0
        %v613 = vrcp.pop %v612
        %v614 = vmul.f32 1.0, %v613
        %616 = vrot.lane.b32.xlu0 %v605, 112
        %v617 = vpop.permute.xlu0 %616
        %v619 = vmul.f32 %v614, %v617
        %621 = vrot.lane.b32.xlu0 %v619, 16
        %v622 = vpop.permute.xlu0 %621
        %v624 = vadd.f32 %v522, %v622
        %v625 = vtanh.pop %v624
        %v626 = vsub.f32 1.0, %v614
        %628 = vrot.lane.b32.xlu0 %v625, 120
        %v629 = vpop.permute.xlu0 %628
        %v631 = vmul.f32 %v626, %v629
        %632 = vrot.lane.b32.xlu0 %v525, 8
        %v633 = vpop.permute.xlu0 %632
        %v635 = vmul.f32 %v614, %v633
        %v636 = vadd.f32 %v631, %v635
        %638 = vrot.lane.b32.xlu0 %v636, 120
        %v639 = vpop.permute.xlu0 %638
        %vm641 = vcmask 58368
        %642 = vst.msk [vmem:[#allocation3] sm:$0x3] %vm641, %v639
        %p643 = scmp.eq.s32.totalorder %s21, 3
        // Predicated region
        $region61: #{cnn_rnn_forward.9} parent=55 // pred_check
          %p644 = pneg %p643
        $region62: #{cnn_rnn_forward.9} parent=55 // pred_check_branch
          %646 = sbr.rel (%p644) target = $region64
        $region63: #{cnn_rnn_forward.9} parent=55 // pred_region
          %v647 = vld [vmem:[%s7] sm:$0xff]
          %v648 = vld [vmem:[%s8] sm:$0x1]
          %v650 = vlaneseq
          %v651 = vshrl.u32 %v650, 7
          %v652 = vsub.s32 0, %v651
          %v653 = vrot.slane %v648, %v652
          %v655 = vsel %vm534, %v639, 0
          %657 = vmatprep.subr.mxu0 0.0
          %658 = vmatpush1.msra.mxu0 %v647
          %659 = vmatprep.subr.mxu0 0.0
          %660 = vmatpush1.msra.mxu0 0.0
          %661 = vmatprep.subr.mxu0 0.0
          %662 = vmatpush1.msra.mxu0 0.0
          %663 = vmatprep.subr.mxu0 0.0
          %664 = vmatpush1.msra.mxu0 0.0
          %665 = vmatprep.subr.mxu0 0.0
          %666 = vmatpush1.msra.mxu0 0.0
          %667 = vmatprep.subr.mxu0 0.0
          %668 = vmatpush1.msra.mxu0 0.0
          %669 = vmatprep.subr.mxu0 0.0
          %670 = vmatpush1.msra.mxu0 0.0
          %671 = vmatprep.subr.mxu0 0.0
          %672 = vmatpush1.msra.mxu0 0.0
          %673 = vmatprep.subr.mxu0 0.0
          %674 = vmatpush1.msra.mxu0 0.0
          %675 = vmatprep.subr.mxu0 0.0
          %676 = vmatpush1.msra.mxu0 0.0
          %677 = vmatprep.subr.mxu0 0.0
          %678 = vmatpush1.msra.mxu0 0.0
          %679 = vmatprep.subr.mxu0 0.0
          %680 = vmatpush1.msra.mxu0 0.0
          %681 = vmatprep.subr.mxu0 0.0
          %682 = vmatpush1.msra.mxu0 0.0
          %683 = vmatprep.subr.mxu0 0.0
          %684 = vmatpush1.msra.mxu0 0.0
          %685 = vmatprep.subr.mxu0 0.0
          %686 = vmatpush1.msra.mxu0 0.0
          %687 = vmatprep.subr.mxu0 0.0
          %688 = vmatpush1.msra.mxu0 0.0
          %689 = vmatprep.subr.mxu0 0.0
          %690 = vmatpush1.msra.mxu0 0.0
          %691 = vmatprep.subr.mxu0 0.0
          %692 = vmatpush1.msra.mxu0 0.0
          %693 = vmatprep.subr.mxu0 0.0
          %694 = vmatpush1.msra.mxu0 0.0
          %695 = vmatprep.subr.mxu0 0.0
          %696 = vmatpush1.msra.mxu0 0.0
          %697 = vmatprep.subr.mxu0 0.0
          %698 = vmatpush1.msra.mxu0 0.0
          %699 = vmatprep.subr.mxu0 0.0
          %700 = vmatpush1.msra.mxu0 0.0
          %701 = vmatprep.subr.mxu0 0.0
          %702 = vmatpush1.msra.mxu0 0.0
          %703 = vmatprep.subr.mxu0 0.0
          %704 = vmatpush1.msra.mxu0 0.0
          %705 = vmatprep.subr.mxu0 0.0
          %706 = vmatpush1.msra.mxu0 0.0
          %707 = vmatprep.subr.mxu0 0.0
          %708 = vmatpush1.msra.mxu0 0.0
          %709 = vmatprep.subr.mxu0 0.0
          %710 = vmatpush1.msra.mxu0 0.0
          %711 = vmatprep.subr.mxu0 0.0
          %712 = vmatpush1.msra.mxu0 0.0
          %713 = vmatprep.subr.mxu0 0.0
          %714 = vmatpush1.msra.mxu0 0.0
          %715 = vmatprep.subr.mxu0 0.0
          %716 = vmatpush1.msra.mxu0 0.0
          %717 = vmatprep.subr.mxu0 0.0
          %718 = vmatpush1.msra.mxu0 0.0
          %719 = vmatprep.subr.mxu0 0.0
          %720 = vmatpush1.msra.mxu0 0.0
          %721 = vmatprep.mubr.f32.mxu0 0.0
          %722 = vmatmul.mubr.f32.gmra.mrb[0].mxu0 %v655
          %v723 = vpop.f32.mrb[0].mxu0
          %v724 = vadd.f32 %v653, %v723
          %v725 = vpop.f32.mrb[0].mxu0
          %726 = vdwg.mxu0
          %vm727 = vcmask 33792
          %v728 = vsel %vm727, %v724, -inf
          %729 = vmax.xlane.f32.xlu0 %v728
          %v730 = vpop.xlane.xlu0 %729
          %v731 = vsub.f32 %v724, %v730
          %v732 = vmul.f32 %v731, 1.442695
          %v733 = vpow.pop %v732
          %v734 = vsel %vm727, %v733, 0.0
          %735 = vadd.xlane.f32.xlu0 %v734
          %v736 = vpop.xlane.xlu0 %735
          %v737 = vrcp.pop %v736
          %v738 = vmul.f32 %v733, %v737
          %739 = vst.msk [vmem:[#allocation4] sm:$0x3] %vm727, %v738
        $region64: #{cnn_rnn_forward.9} parent=55 // pred_fallthru
          _
        // Predicated region
        $region65: #{cnn_rnn_forward.9} parent=55 // pred_check
          %p740 = pneg %p228
        $region66: #{cnn_rnn_forward.9} parent=55 // pred_check_branch
          %742 = sbr.rel (%p740) target = $region68
        $region67: #{cnn_rnn_forward.9} parent=55 // pred_region
          %s744 = ssub.s32 32, 32
          %745 = vsyncadd [#allocation5], %s744
          %s747 = sshll.u32 [#allocation4], 4
          %s748 = int_to_ptr.vmem [resolvable:$true] %s747
          %750 = dma.vmem_to_hbm [thread:$0]  %s748, 32, %s9, [#allocation5]
        $region68: #{cnn_rnn_forward.9} parent=55 // pred_fallthru
          _
        // Predicated region
        $region69: #{cnn_rnn_forward.9} parent=55 // pred_check
          %p751 = pneg %p228
        $region70: #{cnn_rnn_forward.9} parent=55 // pred_check_branch
          %753 = sbr.rel (%p751) target = $region72
        $region71: #{cnn_rnn_forward.9} parent=55 // pred_region
          %754 = dma.done [#allocation5], 32
        $region72: #{cnn_rnn_forward.9} parent=55 // pred_fallthru
          _
      $region56: #{cnn_rnn_forward.9} parent=5 // pred_fallthru
        _
      %p755 = scmp.le.s32.totalorder 2, %s16
      // Predicated region
      $region73: #{cnn_rnn_forward.9} parent=5 // pred_check
        %p756 = pneg %p755
      $region74: #{cnn_rnn_forward.9} parent=5 // pred_check_branch
        %758 = sbr.rel (%p756) target = $region76
      $region75: #{cnn_rnn_forward.9} parent=5 // pred_region
        %s759 = ssub.s32 %s16, 2
      $region76: #{cnn_rnn_forward.9} parent=5 // pred_fallthru
        _
    $region6: #{cnn_rnn_forward.9} parent=1 // loop_footer
      %s20 = sadd.s32 1, %s16
    $region7: #{cnn_rnn_forward.9} parent=1 // loop_footer_branch
      %15 = sbr.rel target = $region3
    $region8: #{cnn_rnn_forward.9} parent=1 // loop_exit
      _
    %760 = vsyncpa [#allocation5], 1
    %s761 = scalar_lea.sflag [#allocation5], 1
    %762 = vsyncpa %s761, 1

// kernel: cnn_rnn_forward.8
$region0: #{cnn_rnn_forward.8}
  #allocation0 [shape = 'u32[]', space=smem, size = 0x4, offset = 0x4, fixed_abs, tag = 'smem constant byte address 0x4 - core index']
  #allocation1 [shape = 'u32[144,128]{1,0:T(1,128)}', space=vmem, size = 0x12000, scoped, tag = 'internal scratch']
  %s0 = inlined_call_operand.vmem [shape: f32[8,648], index: 0, kind: input, shape index: {}]
  %s1 = inlined_call_operand.vmem [shape: f32[648,32], index: 1, kind: input, shape index: {}]
  %s2 = inlined_call_operand.vmem [shape: f32[1,32], index: 2, kind: input, shape index: {}]
  %s3 = inlined_call_operand.vmem [shape: f32[32,48], index: 3, kind: input, shape index: {}]
  %s4 = inlined_call_operand.vmem [shape: f32[1,48], index: 4, kind: input, shape index: {}]
  %s5 = inlined_call_operand.vmem [shape: f32[8,48], index: 5, kind: output, shape index: {}]
  %s6 = sld [smem:[#allocation0]]
  $region30: #{cnn_rnn_forward.8} parent=0
    _
  %s8 = ssub.s32 1, %s6
  %s9 = scalar_select 0, %s8, %s6
  // Predicated region
  $region2: #{cnn_rnn_forward.8} parent=0 // pred_check
    _
  $region3: #{cnn_rnn_forward.8} parent=0 // pred_check_branch
    %11 = sbr.rel (0) target = $region5
  $region4: #{cnn_rnn_forward.8} parent=0 // pred_region
    _
  $region5: #{cnn_rnn_forward.8} parent=0 // pred_fallthru
    _
  // Predicated region
  $region6: #{cnn_rnn_forward.8} parent=0 // pred_check
    _
  $region7: #{cnn_rnn_forward.8} parent=0 // pred_check_branch
    %13 = sbr.rel (0) target = $region9
  $region8: #{cnn_rnn_forward.8} parent=0 // pred_region
    _
  $region9: #{cnn_rnn_forward.8} parent=0 // pred_fallthru
    _
  // Predicated region
  $region10: #{cnn_rnn_forward.8} parent=0 // pred_check
    _
  $region11: #{cnn_rnn_forward.8} parent=0 // pred_check_branch
    %15 = sbr.rel (0) target = $region13
  $region12: #{cnn_rnn_forward.8} parent=0 // pred_region
    _
  $region13: #{cnn_rnn_forward.8} parent=0 // pred_fallthru
    _
  // Predicated region
  $region14: #{cnn_rnn_forward.8} parent=0 // pred_check
    _
  $region15: #{cnn_rnn_forward.8} parent=0 // pred_check_branch
    %17 = sbr.rel (0) target = $region17
  $region16: #{cnn_rnn_forward.8} parent=0 // pred_region
    _
  $region17: #{cnn_rnn_forward.8} parent=0 // pred_fallthru
    _
  // Predicated region
  $region18: #{cnn_rnn_forward.8} parent=0 // pred_check
    _
  $region19: #{cnn_rnn_forward.8} parent=0 // pred_check_branch
    %19 = sbr.rel (0) target = $region21
  $region20: #{cnn_rnn_forward.8} parent=0 // pred_region
    _
  $region21: #{cnn_rnn_forward.8} parent=0 // pred_fallthru
    _
  %v20 = vld [vmem:[%s0] sm:$0xff]
  %v21 = vld [vmem:[%s0 + $0x8] sm:$0xff]
  %v22 = vld [vmem:[%s0 + $0x10] sm:$0xff]
  %v23 = vld [vmem:[%s0 + $0x18] sm:$0xff]
  %v24 = vld [vmem:[%s0 + $0x20] sm:$0xff]
  %v25 = vld [vmem:[%s0 + $0x28] sm:$0xff]
  %v26 = vld [vmem:[%s1] sm:$0xff]
  %v27 = vld [vmem:[%s1 + $0x8] sm:$0xff]
  %v28 = vld [vmem:[%s1 + $0x10] sm:$0xff]
  %v29 = vld [vmem:[%s1 + $0x18] sm:$0xff]
  %v30 = vld [vmem:[%s1 + $0x20] sm:$0xff]
  %v31 = vld [vmem:[%s1 + $0x28] sm:$0xff]
  %v32 = vld [vmem:[%s1 + $0x30] sm:$0xff]
  %v33 = vld [vmem:[%s1 + $0x38] sm:$0xff]
  %v34 = vld [vmem:[%s1 + $0x40] sm:$0xff]
  %v35 = vld [vmem:[%s1 + $0x48] sm:$0xff]
  %v36 = vld [vmem:[%s1 + $0x50] sm:$0xff]
  %v37 = vld [vmem:[%s1 + $0x58] sm:$0xff]
  %v38 = vld [vmem:[%s1 + $0x60] sm:$0xff]
  %v39 = vld [vmem:[%s1 + $0x68] sm:$0xff]
  %v40 = vld [vmem:[%s1 + $0x70] sm:$0xff]
  %v41 = vld [vmem:[%s1 + $0x78] sm:$0xff]
  %v42 = vld [vmem:[%s1 + $0x80] sm:$0xff]
  %v43 = vld [vmem:[%s1 + $0x88] sm:$0xff]
  %v44 = vld [vmem:[%s1 + $0x90] sm:$0xff]
  %v45 = vld [vmem:[%s1 + $0x98] sm:$0xff]
  %v46 = vld [vmem:[%s1 + $0xa0] sm:$0xff]
  %v47 = vld [vmem:[%s1 + $0xa8] sm:$0xff]
  %v48 = vld [vmem:[%s1 + $0xb0] sm:$0xff]
  %v49 = vld [vmem:[%s1 + $0xb8] sm:$0xff]
  %v50 = vld [vmem:[%s1 + $0xc0] sm:$0xff]
  %v51 = vld [vmem:[%s1 + $0xc8] sm:$0xff]
  %v52 = vld [vmem:[%s1 + $0xd0] sm:$0xff]
  %v53 = vld [vmem:[%s1 + $0xd8] sm:$0xff]
  %v54 = vld [vmem:[%s1 + $0xe0] sm:$0xff]
  %v55 = vld [vmem:[%s1 + $0xe8] sm:$0xff]
  %v56 = vld [vmem:[%s1 + $0xf0] sm:$0xff]
  %v57 = vld [vmem:[%s1 + $0xf8] sm:$0xff]
  %v58 = vld [vmem:[%s1 + $0x100] sm:$0xff]
  %v59 = vld [vmem:[%s1 + $0x108] sm:$0xff]
  %v60 = vld [vmem:[%s1 + $0x110] sm:$0xff]
  %v61 = vld [vmem:[%s1 + $0x118] sm:$0xff]
  %v62 = vld [vmem:[%s1 + $0x120] sm:$0xff]
  %v63 = vld [vmem:[%s1 + $0x128] sm:$0xff]
  %v64 = vld [vmem:[%s1 + $0x130] sm:$0xff]
  %v65 = vld [vmem:[%s1 + $0x138] sm:$0xff]
  %v66 = vld [vmem:[%s1 + $0x140] sm:$0xff]
  %v67 = vld [vmem:[%s1 + $0x148] sm:$0xff]
  %v68 = vld [vmem:[%s1 + $0x150] sm:$0xff]
  %v69 = vld [vmem:[%s1 + $0x158] sm:$0xff]
  %v70 = vld [vmem:[%s1 + $0x160] sm:$0xff]
  %v71 = vld [vmem:[%s1 + $0x168] sm:$0xff]
  %v72 = vld [vmem:[%s1 + $0x170] sm:$0xff]
  %v73 = vld [vmem:[%s1 + $0x178] sm:$0xff]
  %v74 = vld [vmem:[%s1 + $0x180] sm:$0xff]
  %v75 = vld [vmem:[%s1 + $0x188] sm:$0xff]
  %v76 = vld [vmem:[%s1 + $0x190] sm:$0xff]
  %v77 = vld [vmem:[%s1 + $0x198] sm:$0xff]
  %v78 = vld [vmem:[%s1 + $0x1a0] sm:$0xff]
  %v79 = vld [vmem:[%s1 + $0x1a8] sm:$0xff]
  %v80 = vld [vmem:[%s1 + $0x1b0] sm:$0xff]
  %v81 = vld [vmem:[%s1 + $0x1b8] sm:$0xff]
  %v82 = vld [vmem:[%s1 + $0x1c0] sm:$0xff]
  %v83 = vld [vmem:[%s1 + $0x1c8] sm:$0xff]
  %v84 = vld [vmem:[%s1 + $0x1d0] sm:$0xff]
  %v85 = vld [vmem:[%s1 + $0x1d8] sm:$0xff]
  %v86 = vld [vmem:[%s1 + $0x1e0] sm:$0xff]
  %v87 = vld [vmem:[%s1 + $0x1e8] sm:$0xff]
  %v88 = vld [vmem:[%s1 + $0x1f0] sm:$0xff]
  %v89 = vld [vmem:[%s1 + $0x1f8] sm:$0xff]
  %v90 = vld [vmem:[%s1 + $0x200] sm:$0xff]
  %v91 = vld [vmem:[%s1 + $0x208] sm:$0xff]
  %v92 = vld [vmem:[%s1 + $0x210] sm:$0xff]
  %v93 = vld [vmem:[%s1 + $0x218] sm:$0xff]
  %v94 = vld [vmem:[%s1 + $0x220] sm:$0xff]
  %v95 = vld [vmem:[%s1 + $0x228] sm:$0xff]
  %v96 = vld [vmem:[%s1 + $0x230] sm:$0xff]
  %v97 = vld [vmem:[%s1 + $0x238] sm:$0xff]
  %v98 = vld [vmem:[%s1 + $0x240] sm:$0xff]
  %v99 = vld [vmem:[%s1 + $0x248] sm:$0xff]
  %v100 = vld [vmem:[%s1 + $0x250] sm:$0xff]
  %v101 = vld [vmem:[%s1 + $0x258] sm:$0xff]
  %v102 = vld [vmem:[%s1 + $0x260] sm:$0xff]
  %v103 = vld [vmem:[%s1 + $0x268] sm:$0xff]
  %v104 = vld [vmem:[%s1 + $0x270] sm:$0xff]
  %v105 = vld [vmem:[%s1 + $0x278] sm:$0xff]
  %v106 = vld [vmem:[%s1 + $0x280] sm:$0xff]
  %v107 = vld [vmem:[%s2] sm:$0x1]
  %v109 = vlaneseq
  %v110 = vshrl.u32 %v109, 7
  %v111 = vsub.s32 0, %v110
  %v112 = vrot.slane %v107, %v111
  %vm114 = vcmask 64512
  %v116 = vsel %vm114, %v25, 0
  %118 = vmatprep.subr.mxu0 0.0
  %119 = vmatpush1.msra.mxu0 %v26
  %120 = vmatprep.subr.mxu0 0.0
  %121 = vmatpush1.msra.mxu0 %v27
  %122 = vmatprep.subr.mxu0 0.0
  %123 = vmatpush1.msra.mxu0 %v28
  %124 = vmatprep.subr.mxu0 0.0
  %125 = vmatpush1.msra.mxu0 %v29
  %126 = vmatprep.subr.mxu0 0.0
  %127 = vmatpush1.msra.mxu0 %v30
  %128 = vmatprep.subr.mxu0 0.0
  %129 = vmatpush1.msra.mxu0 %v31
  %130 = vmatprep.subr.mxu0 0.0
  %131 = vmatpush1.msra.mxu0 %v32
  %132 = vmatprep.subr.mxu0 0.0
  %133 = vmatpush1.msra.mxu0 %v33
  %134 = vmatprep.subr.mxu0 0.0
  %135 = vmatpush1.msra.mxu0 %v34
  %136 = vmatprep.subr.mxu0 0.0
  %137 = vmatpush1.msra.mxu0 %v35
  %138 = vmatprep.subr.mxu0 0.0
  %139 = vmatpush1.msra.mxu0 %v36
  %140 = vmatprep.subr.mxu0 0.0
  %141 = vmatpush1.msra.mxu0 %v37
  %142 = vmatprep.subr.mxu0 0.0
  %143 = vmatpush1.msra.mxu0 %v38
  %144 = vmatprep.subr.mxu0 0.0
  %145 = vmatpush1.msra.mxu0 %v39
  %146 = vmatprep.subr.mxu0 0.0
  %147 = vmatpush1.msra.mxu0 %v40
  %148 = vmatprep.subr.mxu0 0.0
  %149 = vmatpush1.msra.mxu0 %v41
  %150 = vmatprep.subr.mxu0 0.0
  %151 = vmatpush1.msra.mxu0 %v42
  %152 = vmatprep.subr.mxu0 0.0
  %153 = vmatpush1.msra.mxu0 %v43
  %154 = vmatprep.subr.mxu0 0.0
  %155 = vmatpush1.msra.mxu0 %v44
  %156 = vmatprep.subr.mxu0 0.0
  %157 = vmatpush1.msra.mxu0 %v45
  %158 = vmatprep.subr.mxu0 0.0
  %159 = vmatpush1.msra.mxu0 %v46
  %160 = vmatprep.subr.mxu0 0.0
  %161 = vmatpush1.msra.mxu0 %v47
  %162 = vmatprep.subr.mxu0 0.0
  %163 = vmatpush1.msra.mxu0 %v48
  %164 = vmatprep.subr.mxu0 0.0
  %165 = vmatpush1.msra.mxu0 %v49
  %166 = vmatprep.subr.mxu0 0.0
  %167 = vmatpush1.msra.mxu0 %v50
  %168 = vmatprep.subr.mxu0 0.0
  %169 = vmatpush1.msra.mxu0 %v51
  %170 = vmatprep.subr.mxu0 0.0
  %171 = vmatpush1.msra.mxu0 %v52
  %172 = vmatprep.subr.mxu0 0.0
  %173 = vmatpush1.msra.mxu0 %v53
  %174 = vmatprep.subr.mxu0 0.0
  %175 = vmatpush1.msra.mxu0 %v54
  %176 = vmatprep.subr.mxu0 0.0
  %177 = vmatpush1.msra.mxu0 %v55
  %178 = vmatprep.subr.mxu0 0.0
  %179 = vmatpush1.msra.mxu0 %v56
  %180 = vmatprep.subr.mxu0 0.0
  %181 = vmatpush1.msra.mxu0 %v57
  %182 = vmatprep.mubr.f32.mxu0 %v21
  %183 = vmatmul.mubr.f32.gmra.mrb[0].mxu0 %v20
  %v184 = vpop.f32.mrb[0].mxu0
  %v185 = vadd.f32 %v112, %v184
  %v186 = vpop.f32.mrb[0].mxu0
  %187 = vdwg.mxu0
  %188 = vmatprep.subr.mxu0 0.0
  %189 = vmatpush1.msra.mxu0 %v58
  %190 = vmatprep.subr.mxu0 0.0
  %191 = vmatpush1.msra.mxu0 %v59
  %192 = vmatprep.subr.mxu0 0.0
  %193 = vmatpush1.msra.mxu0 %v60
  %194 = vmatprep.subr.mxu0 0.0
  %195 = vmatpush1.msra.mxu0 %v61
  %196 = vmatprep.subr.mxu0 0.0
  %197 = vmatpush1.msra.mxu0 %v62
  %198 = vmatprep.subr.mxu0 0.0
  %199 = vmatpush1.msra.mxu0 %v63
  %200 = vmatprep.subr.mxu0 0.0
  %201 = vmatpush1.msra.mxu0 %v64
  %202 = vmatprep.subr.mxu0 0.0
  %203 = vmatpush1.msra.mxu0 %v65
  %204 = vmatprep.subr.mxu0 0.0
  %205 = vmatpush1.msra.mxu0 %v66
  %206 = vmatprep.subr.mxu0 0.0
  %207 = vmatpush1.msra.mxu0 %v67
  %208 = vmatprep.subr.mxu0 0.0
  %209 = vmatpush1.msra.mxu0 %v68
  %210 = vmatprep.subr.mxu0 0.0
  %211 = vmatpush1.msra.mxu0 %v69
  %212 = vmatprep.subr.mxu0 0.0
  %213 = vmatpush1.msra.mxu0 %v70
  %214 = vmatprep.subr.mxu0 0.0
  %215 = vmatpush1.msra.mxu0 %v71
  %216 = vmatprep.subr.mxu0 0.0
  %217 = vmatpush1.msra.mxu0 %v72
  %218 = vmatprep.subr.mxu0 0.0
  %219 = vmatpush1.msra.mxu0 %v73
  %220 = vmatprep.subr.mxu0 0.0
  %221 = vmatpush1.msra.mxu0 %v74
  %222 = vmatprep.subr.mxu0 0.0
  %223 = vmatpush1.msra.mxu0 %v75
  %224 = vmatprep.subr.mxu0 0.0
  %225 = vmatpush1.msra.mxu0 %v76
  %226 = vmatprep.subr.mxu0 0.0
  %227 = vmatpush1.msra.mxu0 %v77
  %228 = vmatprep.subr.mxu0 0.0
  %229 = vmatpush1.msra.mxu0 %v78
  %230 = vmatprep.subr.mxu0 0.0
  %231 = vmatpush1.msra.mxu0 %v79
  %232 = vmatprep.subr.mxu0 0.0
  %233 = vmatpush1.msra.mxu0 %v80
  %234 = vmatprep.subr.mxu0 0.0
  %235 = vmatpush1.msra.mxu0 %v81
  %236 = vmatprep.subr.mxu0 0.0
  %237 = vmatpush1.msra.mxu0 %v82
  %238 = vmatprep.subr.mxu0 0.0
  %239 = vmatpush1.msra.mxu0 %v83
  %240 = vmatprep.subr.mxu0 0.0
  %241 = vmatpush1.msra.mxu0 %v84
  %242 = vmatprep.subr.mxu0 0.0
  %243 = vmatpush1.msra.mxu0 %v85
  %244 = vmatprep.subr.mxu0 0.0
  %245 = vmatpush1.msra.mxu0 %v86
  %246 = vmatprep.subr.mxu0 0.0
  %247 = vmatpush1.msra.mxu0 %v87
  %248 = vmatprep.subr.mxu0 0.0
  %249 = vmatpush1.msra.mxu0 %v88
  %250 = vmatprep.subr.mxu0 0.0
  %251 = vmatpush1.msra.mxu0 %v89
  %252 = vmatprep.mubr.f32.mxu0 %v23
  %253 = vmatmul.mubr.f32.gmra.mrb[0].mxu0 %v22
  %v254 = vpop.f32.mrb[0].mxu0
  %v255 = vadd.f32 %v185, %v254
  %v256 = vpop.f32.mrb[0].mxu0
  %257 = vdwg.mxu0
  %258 = vmatprep.subr.mxu0 0.0
  %259 = vmatpush1.msra.mxu0 %v90
  %260 = vmatprep.subr.mxu0 0.0
  %261 = vmatpush1.msra.mxu0 %v91
  %262 = vmatprep.subr.mxu0 0.0
  %263 = vmatpush1.msra.mxu0 %v92
  %264 = vmatprep.subr.mxu0 0.0
  %265 = vmatpush1.msra.mxu0 %v93
  %266 = vmatprep.subr.mxu0 0.0
  %267 = vmatpush1.msra.mxu0 %v94
  %268 = vmatprep.subr.mxu0 0.0
  %269 = vmatpush1.msra.mxu0 %v95
  %270 = vmatprep.subr.mxu0 0.0
  %271 = vmatpush1.msra.mxu0 %v96
  %272 = vmatprep.subr.mxu0 0.0
  %273 = vmatpush1.msra.mxu0 %v97
  %274 = vmatprep.subr.mxu0 0.0
  %275 = vmatpush1.msra.mxu0 %v98
  %276 = vmatprep.subr.mxu0 0.0
  %277 = vmatpush1.msra.mxu0 %v99
  %278 = vmatprep.subr.mxu0 0.0
  %279 = vmatpush1.msra.mxu0 %v100
  %280 = vmatprep.subr.mxu0 0.0
  %281 = vmatpush1.msra.mxu0 %v101
  %282 = vmatprep.subr.mxu0 0.0
  %283 = vmatpush1.msra.mxu0 %v102
  %284 = vmatprep.subr.mxu0 0.0
  %285 = vmatpush1.msra.mxu0 %v103
  %286 = vmatprep.subr.mxu0 0.0
  %287 = vmatpush1.msra.mxu0 %v104
  %288 = vmatprep.subr.mxu0 0.0
  %289 = vmatpush1.msra.mxu0 %v105
  %290 = vmatprep.subr.mxu0 0.0
  %291 = vmatpush1.msra.mxu0 %v106
  %292 = vmatprep.subr.mxu0 0.0
  %293 = vmatpush1.msra.mxu0 0.0
  %294 = vmatprep.subr.mxu0 0.0
  %295 = vmatpush1.msra.mxu0 0.0
  %296 = vmatprep.subr.mxu0 0.0
  %297 = vmatpush1.msra.mxu0 0.0
  %298 = vmatprep.subr.mxu0 0.0
  %299 = vmatpush1.msra.mxu0 0.0
  %300 = vmatprep.subr.mxu0 0.0
  %301 = vmatpush1.msra.mxu0 0.0
  %302 = vmatprep.subr.mxu0 0.0
  %303 = vmatpush1.msra.mxu0 0.0
  %304 = vmatprep.subr.mxu0 0.0
  %305 = vmatpush1.msra.mxu0 0.0
  %306 = vmatprep.subr.mxu0 0.0
  %307 = vmatpush1.msra.mxu0 0.0
  %308 = vmatprep.subr.mxu0 0.0
  %309 = vmatpush1.msra.mxu0 0.0
  %310 = vmatprep.subr.mxu0 0.0
  %311 = vmatpush1.msra.mxu0 0.0
  %312 = vmatprep.subr.mxu0 0.0
  %313 = vmatpush1.msra.mxu0 0.0
  %314 = vmatprep.subr.mxu0 0.0
  %315 = vmatpush1.msra.mxu0 0.0
  %316 = vmatprep.subr.mxu0 0.0
  %317 = vmatpush1.msra.mxu0 0.0
  %318 = vmatprep.subr.mxu0 0.0
  %319 = vmatpush1.msra.mxu0 0.0
  %320 = vmatprep.subr.mxu0 0.0
  %321 = vmatpush1.msra.mxu0 0.0
  %322 = vmatprep.mubr.f32.mxu0 %v116
  %323 = vmatmul.mubr.f32.gmra.mrb[0].mxu0 %v24
  %v324 = vpop.f32.mrb[0].mxu0
  %v325 = vadd.f32 %v255, %v324
  %v326 = vpop.f32.mrb[0].mxu0
  %327 = vdwg.mxu0
  %v328 = vmax.f32 %v325, 0.0
  %v329 = vld [vmem:[%s3] sm:$0xff]
  %v330 = vld [vmem:[%s3 + $0x8] sm:$0xff]
  %v331 = vld [vmem:[%s3 + $0x10] sm:$0xff]
  %v332 = vld [vmem:[%s3 + $0x18] sm:$0xff]
  %v333 = vld [vmem:[%s4] sm:$0x1]
  %v335 = vlaneseq
  %v336 = vshrl.u32 %v335, 7
  %v337 = vsub.s32 0, %v336
  %v338 = vrot.slane %v333, %v337
  %vm340 = vcmask 261120
  %v342 = vsel %vm340, %v328, 0
  %344 = vmatprep.subr.mxu0 0.0
  %345 = vmatpush1.msra.mxu0 %v329
  %346 = vmatprep.subr.mxu0 0.0
  %347 = vmatpush1.msra.mxu0 %v330
  %348 = vmatprep.subr.mxu0 0.0
  %349 = vmatpush1.msra.mxu0 %v331
  %350 = vmatprep.subr.mxu0 0.0
  %351 = vmatpush1.msra.mxu0 %v332
  %352 = vmatprep.subr.mxu0 0.0
  %353 = vmatpush1.msra.mxu0 0.0
  %354 = vmatprep.subr.mxu0 0.0
  %355 = vmatpush1.msra.mxu0 0.0
  %356 = vmatprep.subr.mxu0 0.0
  %357 = vmatpush1.msra.mxu0 0.0
  %358 = vmatprep.subr.mxu0 0.0
  %359 = vmatpush1.msra.mxu0 0.0
  %360 = vmatprep.subr.mxu0 0.0
  %361 = vmatpush1.msra.mxu0 0.0
  %362 = vmatprep.subr.mxu0 0.0
  %363 = vmatpush1.msra.mxu0 0.0
  %364 = vmatprep.subr.mxu0 0.0
  %365 = vmatpush1.msra.mxu0 0.0
  %366 = vmatprep.subr.mxu0 0.0
  %367 = vmatpush1.msra.mxu0 0.0
  %368 = vmatprep.subr.mxu0 0.0
  %369 = vmatpush1.msra.mxu0 0.0
  %370 = vmatprep.subr.mxu0 0.0
  %371 = vmatpush1.msra.mxu0 0.0
  %372 = vmatprep.subr.mxu0 0.0
  %373 = vmatpush1.msra.mxu0 0.0
  %374 = vmatprep.subr.mxu0 0.0
  %375 = vmatpush1.msra.mxu0 0.0
  %376 = vmatprep.subr.mxu0 0.0
  %377 = vmatpush1.msra.mxu0 0.0
  %378 = vmatprep.subr.mxu0 0.0
  %379 = vmatpush1.msra.mxu0 0.0
  %380 = vmatprep.subr.mxu0 0.0
  %381 = vmatpush1.msra.mxu0 0.0
  %382 = vmatprep.subr.mxu0 0.0
  %383 = vmatpush1.msra.mxu0 0.0
  %384 = vmatprep.subr.mxu0 0.0
  %385 = vmatpush1.msra.mxu0 0.0
  %386 = vmatprep.subr.mxu0 0.0
  %387 = vmatpush1.msra.mxu0 0.0
  %388 = vmatprep.subr.mxu0 0.0
  %389 = vmatpush1.msra.mxu0 0.0
  %390 = vmatprep.subr.mxu0 0.0
  %391 = vmatpush1.msra.mxu0 0.0
  %392 = vmatprep.subr.mxu0 0.0
  %393 = vmatpush1.msra.mxu0 0.0
  %394 = vmatprep.subr.mxu0 0.0
  %395 = vmatpush1.msra.mxu0 0.0
  %396 = vmatprep.subr.mxu0 0.0
  %397 = vmatpush1.msra.mxu0 0.0
  %398 = vmatprep.subr.mxu0 0.0
  %399 = vmatpush1.msra.mxu0 0.0
  %400 = vmatprep.subr.mxu0 0.0
  %401 = vmatpush1.msra.mxu0 0.0
  %402 = vmatprep.subr.mxu0 0.0
  %403 = vmatpush1.msra.mxu0 0.0
  %404 = vmatprep.subr.mxu0 0.0
  %405 = vmatpush1.msra.mxu0 0.0
  %406 = vmatprep.subr.mxu0 0.0
  %407 = vmatpush1.msra.mxu0 0.0
  %408 = vmatprep.mubr.f32.mxu0 0.0
  %409 = vmatmul.mubr.f32.gmra.mrb[0].mxu0 %v342
  %v410 = vpop.f32.mrb[0].mxu0
  %v411 = vadd.f32 %v338, %v410
  %v412 = vpop.f32.mrb[0].mxu0
  %413 = vdwg.mxu0
  %vm414 = vcmask 392192
  %415 = vst.msk [vmem:[%s5] sm:$0xff] %vm414, %v411
  // Predicated region
  $region22: #{cnn_rnn_forward.8} parent=0 // pred_check
    _
  $region23: #{cnn_rnn_forward.8} parent=0 // pred_check_branch
    %417 = sbr.rel (0) target = $region25
  $region24: #{cnn_rnn_forward.8} parent=0 // pred_region
    _
  $region25: #{cnn_rnn_forward.8} parent=0 // pred_fallthru
    _
  // Predicated region
  $region26: #{cnn_rnn_forward.8} parent=0 // pred_check
    _
  $region27: #{cnn_rnn_forward.8} parent=0 // pred_check_branch
    %419 = sbr.rel (0) target = $region29
  $region28: #{cnn_rnn_forward.8} parent=0 // pred_region
    _
  $region29: #{cnn_rnn_forward.8} parent=0 // pred_fallthru
    _

</llo_original>
